<compile_context>
chip_gen: v7x
topology: tpu7x:2x2x1
jax: 0.10.0
libtpu: 0.0.40
codegen_flags: <defaults>
</compile_context>

<pallas_src>
import functools

import jax
import jax.numpy as jnp
from jax.experimental import pallas as pl
from jax.experimental.pallas import tpu as pltpu

LN_EPS = 1e-5  # PyTorch nn.LayerNorm default


def _round_up(x, m):
    return ((x + m - 1) // m) * m


# ---------------------------------------------------------------------------
# Fused Pallas kernel:  Y = LayerNorm(X @ W + bias) * gamma + beta   (bf16 out)
# ---------------------------------------------------------------------------
def _proj_ln_kernel(x_ref, w_ref, p_ref, o_ref, *, eps):
    # x_ref: (tm, K) bf16    w_ref: (K, E) bf16
    # p_ref: (8, E)  f32  packed params: row 0 = conv bias, 1 = gamma, 2 = beta
    # o_ref: (tm, E) bf16
    y = jnp.dot(x_ref[...], w_ref[...], preferred_element_type=jnp.float32)
    y = y + p_ref[0:1, :]                                  # conv bias (f32 epilogue)

    # single-pass LayerNorm statistics (one XLU reduce pair, no second pass)
    e_inv = 1.0 / y.shape[-1]
    s1 = jnp.sum(y, axis=-1, keepdims=True)
    s2 = jnp.sum(y * y, axis=-1, keepdims=True)
    mean = s1 * e_inv
    var = jnp.maximum(s2 * e_inv - mean * mean, 0.0)
    inv = jax.lax.rsqrt(var + eps)                         # EUP

    out = (y - mean) * inv * p_ref[1:2, :] + p_ref[2:3, :]  # f32 math
    o_ref[...] = out.astype(o_ref.dtype)                    # cast only at store


def fused_proj_layernorm(patches, wm, packed_params, *, eps=LN_EPS, tm_max=1024):
    """patches: (M, K) bf16, wm: (K, E) bf16, packed_params: (8, E) f32 -> (M, E) bf16."""
    M, K = patches.shape
    E = wm.shape[1]

    # Tile / grid selection:
    #   - single step when M fits (no forced multi-step on single-TC v5e/v6e)
    #   - when splitting, use an EVEN step count so v7x's two TCs balance
    #   - tm is a multiple of 16 (bf16 LHS min sublane tile)
    steps = pl.cdiv(M, tm_max)
    if steps > 1 and steps % 2 == 1:
        steps += 1
    tm = min(tm_max, _round_up(pl.cdiv(M, steps), 16))
    grid = (pl.cdiv(M, tm),)   # ragged tail handled by masked writeback (LN is row-local)

    return pl.pallas_call(
        functools.partial(_proj_ln_kernel, eps=eps),
        out_shape=jax.ShapeDtypeStruct((M, E), jnp.bfloat16),
        grid=grid,
        in_specs=[
            pl.BlockSpec((tm, K), lambda i: (i, 0)),   # row tile of patch matrix
            pl.BlockSpec((K, E), lambda i: (0, 0)),    # full weight (VMEM-resident)
            pl.BlockSpec((8, E), lambda i: (0, 0)),    # packed bias/gamma/beta
        ],
        out_specs=pl.BlockSpec((tm, E), lambda i: (i, 0)),   # lane-dense (E = 128)
        compiler_params=pltpu.CompilerParams(
            dimension_semantics=("parallel",)),
    )(patches, wm, packed_params)


# ---------------------------------------------------------------------------
# Module forward
# ---------------------------------------------------------------------------
@jax.jit
def _forward_impl(x, params):
    # x: (B, C, H, W, D) float32, same layout the PyTorch module consumes.
    B, Cin, H, W, D = x.shape
    w = params["proj_w"]                      # (E, Cin, 2, 2, 2)
    E = w.shape[0]
    Ho, Wo, Do = H // 2 + 1, W // 2 + 1, D // 2 + 1   # (dim + 2*1 - 2)//2 + 1

    # Pad in NCDHW so the pad fuses as a producer into the single
    # transpose+cast below (one materialized HBM pass for the relayout).
    xp = jnp.pad(
        x,
        ((0, 0), (0, 0),
         (1, 2 * Ho - H - 1),
         (1, 2 * Wo - W - 1),
         (1, 2 * Do - D - 1)),
    )
    # kernel_size == stride => non-overlapping taps: space-to-depth, no im2col blow-up.
    # TODO(synk): patch_size != stride (true overlapping patches) would need a
    # general im2col / in-kernel tap accumulation; module default is 2/2.
    xr = xp.reshape(B, Cin, Ho, 2, Wo, 2, Do, 2)
    xt = jnp.transpose(xr, (0, 2, 4, 6, 3, 5, 7, 1)).astype(jnp.bfloat16)
    patches = xt.reshape(B * Ho * Wo * Do, 8 * Cin)        # (M, K), free flatten

    # weight to matmul form matching the (kh, kw, kd, Cin) patch ordering
    wm = jnp.transpose(w, (2, 3, 4, 1, 0)).reshape(8 * Cin, E).astype(jnp.bfloat16)

    # pack conv bias + LayerNorm gamma/beta into one (8, E) f32 operand
    packed = jnp.pad(
        jnp.stack([params["proj_b"], params["ln_w"], params["ln_b"]]).astype(jnp.float32),
        ((0, 5), (0, 0)),
    )

    y = fused_proj_layernorm(patches, wm, packed)
    return y.reshape(B, Ho * Wo * Do, E)


def overlap_patch_embed_forward(x, params):
    """Returns (tokens (B, N, E) bf16, H', W', D') — same math as the PyTorch forward."""
    _, _, H, W, D = x.shape
    return _forward_impl(x, params), H // 2 + 1, W // 2 + 1, D // 2 + 1


# ---------------------------------------------------------------------------
# Pure-JAX reference (lax conv + LayerNorm), NCDHW layout
# ---------------------------------------------------------------------------
def reference_forward(x, params, matmul_dtype=jnp.float32):
    w = params["proj_w"].astype(matmul_dtype)
    y = jax.lax.conv_general_dilated(
        x.astype(matmul_dtype), w,
        window_strides=(2, 2, 2), padding=[(1, 1)] * 3,
        dimension_numbers=("NCDHW", "OIDHW", "NCDHW"),
        preferred_element_type=jnp.float32,
    )
    y = y + params["proj_b"].reshape(1, -1, 1, 1, 1)
    B, E = y.shape[:2]
    t = jnp.transpose(y.reshape(B, E, -1), (0, 2, 1))   # (B, N, E)
    mean = jnp.mean(t, axis=-1, keepdims=True)
    var = jnp.mean((t - mean) ** 2, axis=-1, keepdims=True)
    tn = (t - mean) * jax.lax.rsqrt(var + LN_EPS)
    return tn * params["ln_w"] + params["ln_b"]


def init_params(key, in_chans, embed_dim, patch_size=2):
    k1, k2 = jax.random.split(key)
    s = 1.0 / (in_chans * patch_size ** 3) ** 0.5
    return {
        "proj_w": jax.random.normal(
            k1, (embed_dim, in_chans) + (patch_size,) * 3, jnp.float32) * s,
        "proj_b": jax.random.normal(k2, (embed_dim,), jnp.float32) * s,
        "ln_w": jnp.ones((embed_dim,), jnp.float32),    # module init: weight = 1
        "ln_b": jnp.zeros((embed_dim,), jnp.float32),   # module init: bias = 0
    }


if __name__ == "__main__":
    key = jax.random.PRNGKey(0)
    kx, kp = jax.random.split(key)

    # module defaults: in_chans=3, embed_dim=128; small spatial volume
    B, Cin, H, W, D = 2, 3, 16, 16, 16
    E = 128
    x = jax.random.normal(kx, (B, Cin, H, W, D), jnp.float32)
    params = init_params(kp, Cin, E)

    out, Ho, Wo, Do = overlap_patch_embed_forward(x, params)
    out = jax.block_until_ready(out)
    assert (Ho, Wo, Do) == (H // 2 + 1, W // 2 + 1, D // 2 + 1), (Ho, Wo, Do)
    assert out.shape == (B, Ho * Wo * Do, E), out.shape
    assert out.dtype == jnp.bfloat16, out.dtype
    out_f32 = out.astype(jnp.float32)

    # check vs a reference using the same bf16 matmul inputs / f32 accumulation
    # (tolerance covers the bf16 rounding of the stored output)
    ref_bf16 = jax.block_until_ready(reference_forward(x, params, jnp.bfloat16))
    assert jnp.allclose(out_f32, ref_bf16, atol=3e-2, rtol=3e-2), \
        float(jnp.max(jnp.abs(out_f32 - ref_bf16)))
    # loose check vs the full-f32 PyTorch-equivalent math
    ref_f32 = jax.block_until_ready(reference_forward(x, params, jnp.float32))
    assert jnp.allclose(out_f32, ref_f32, atol=8e-2, rtol=8e-2), \
        float(jnp.max(jnp.abs(out_f32 - ref_f32)))

    print("KERNEL_OK")
</pallas_src>

<mosaic_0001>
module attributes {stable_mosaic.version = 11 : i64} {
  func.func @_proj_ln_kernel(%arg0: i32, %arg1: memref<736x24xbf16, #tpu.memory_space<vmem>>, %arg2: memref<24x128xbf16, #tpu.memory_space<vmem>>, %arg3: memref<8x128xf32, #tpu.memory_space<vmem>>, %arg4: memref<736x128xbf16, #tpu.memory_space<vmem>>) attributes {dimension_semantics = [#tpu.dimension_semantics<parallel>], iteration_bounds = array<i64: 2>, scalar_prefetch = 0 : i64, scratch_operands = 0 : i64, tpu.core_type = #tpu.core_type<tc>, window_params = [{transform_indices = @transform_0, window_bounds = array<i64: 736, 24>}, {pipeline_mode = #tpu.pipeline_mode<synchronous>, transform_indices = @transform_1, window_bounds = array<i64: 24, 128>}, {pipeline_mode = #tpu.pipeline_mode<synchronous>, transform_indices = @transform_2, window_bounds = array<i64: 8, 128>}, {transform_indices = @transform_3, window_bounds = array<i64: 736, 128>}]} {
    %c0 = arith.constant 0 : index
    %c0_0 = arith.constant 0 : index
    %0 = vector.load %arg1[%c0, %c0_0] : memref<736x24xbf16, #tpu.memory_space<vmem>>, vector<736x24xbf16>
    %c0_1 = arith.constant 0 : index
    %c0_2 = arith.constant 0 : index
    %1 = vector.load %arg2[%c0_1, %c0_2] : memref<24x128xbf16, #tpu.memory_space<vmem>>, vector<24x128xbf16>
    %cst = arith.constant dense<0.000000e+00> : vector<736x128xf32>
    %2 = tpu.matmul %0, %1, %cst {dimension_numbers = #tpu.dot_dimension_numbers<[1], [0], [0], [1], [0, 0, 1, 1], [], []>} : vector<736x24xbf16>, vector<24x128xbf16>, vector<736x128xf32> -> vector<736x128xf32>
    %c0_3 = arith.constant 0 : index
    %c0_4 = arith.constant 0 : index
    %3 = vector.load %arg3[%c0_3, %c0_4] : memref<8x128xf32, #tpu.memory_space<vmem>>, vector<1x128xf32>
    %4 = vector.broadcast %3 : vector<1x128xf32> to vector<736x128xf32>
    %5 = arith.addf %2, %4 : vector<736x128xf32>
    %cst_5 = arith.constant dense<0.000000e+00> : vector<736xf32>
    %6 = vector.multi_reduction <add>, %5, %cst_5 [1] : vector<736x128xf32> to vector<736xf32>
    %7 = vector.shape_cast %6 : vector<736xf32> to vector<736x1xf32>
    %8 = arith.mulf %5, %5 : vector<736x128xf32>
    %cst_6 = arith.constant dense<0.000000e+00> : vector<736xf32>
    %9 = vector.multi_reduction <add>, %8, %cst_6 [1] : vector<736x128xf32> to vector<736xf32>
    %10 = vector.shape_cast %9 : vector<736xf32> to vector<736x1xf32>
    %cst_7 = arith.constant 7.812500e-03 : f32
    %11 = vector.broadcast %cst_7 : f32 to vector<736x1xf32>
    %12 = arith.mulf %7, %11 : vector<736x1xf32>
    %cst_8 = arith.constant 7.812500e-03 : f32
    %13 = vector.broadcast %cst_8 : f32 to vector<736x1xf32>
    %14 = arith.mulf %10, %13 : vector<736x1xf32>
    %15 = arith.mulf %12, %12 : vector<736x1xf32>
    %16 = arith.subf %14, %15 : vector<736x1xf32>
    %cst_9 = arith.constant 0.000000e+00 : f32
    %17 = vector.broadcast %cst_9 : f32 to vector<736x1xf32>
    %18 = arith.maximumf %16, %17 : vector<736x1xf32>
    %cst_10 = arith.constant 9.99999974E-6 : f32
    %19 = vector.broadcast %cst_10 : f32 to vector<736x1xf32>
    %20 = arith.addf %18, %19 : vector<736x1xf32>
    %21 = math.rsqrt %20 : vector<736x1xf32>
    %22 = vector.broadcast %12 : vector<736x1xf32> to vector<736x128xf32>
    %23 = arith.subf %5, %22 : vector<736x128xf32>
    %24 = vector.broadcast %21 : vector<736x1xf32> to vector<736x128xf32>
    %25 = arith.mulf %23, %24 : vector<736x128xf32>
    %c1 = arith.constant 1 : index
    %c0_11 = arith.constant 0 : index
    %26 = vector.load %arg3[%c1, %c0_11] : memref<8x128xf32, #tpu.memory_space<vmem>>, vector<1x128xf32>
    %27 = vector.broadcast %26 : vector<1x128xf32> to vector<736x128xf32>
    %28 = arith.mulf %25, %27 : vector<736x128xf32>
    %c2 = arith.constant 2 : index
    %c0_12 = arith.constant 0 : index
    %29 = vector.load %arg3[%c2, %c0_12] : memref<8x128xf32, #tpu.memory_space<vmem>>, vector<1x128xf32>
    %30 = vector.broadcast %29 : vector<1x128xf32> to vector<736x128xf32>
    %31 = arith.addf %28, %30 : vector<736x128xf32>
    %32 = arith.truncf %31 : vector<736x128xf32> to vector<736x128xbf16>
    %c0_13 = arith.constant 0 : index
    %c0_14 = arith.constant 0 : index
    %33 = vector.load %arg4[%c0_13, %c0_14] : memref<736x128xbf16, #tpu.memory_space<vmem>>, vector<736x128xbf16>
    tpu.vector_store %arg4[%c0_13, %c0_14], %32 {strides = array<i32>} : memref<736x128xbf16, #tpu.memory_space<vmem>>, vector<736x128xbf16>,
    return
  }
  func.func @transform_0(%arg0: i32) -> (i32, i32) {
    %c0_i32 = arith.constant 0 : i32
    %c0_i32_0 = arith.constant 0 : i32
    return %arg0, %c0_i32 : i32, i32
  }
  func.func @transform_1(%arg0: i32) -> (i32, i32) {
    %c0_i32 = arith.constant 0 : i32
    %c0_i32_0 = arith.constant 0 : i32
    %c0_i32_1 = arith.constant 0 : i32
    return %c0_i32, %c0_i32_0 : i32, i32
  }
  func.func @transform_2(%arg0: i32) -> (i32, i32) {
    %c0_i32 = arith.constant 0 : i32
    %c0_i32_0 = arith.constant 0 : i32
    %c0_i32_1 = arith.constant 0 : i32
    return %c0_i32, %c0_i32_0 : i32, i32
  }
  func.func @transform_3(%arg0: i32) -> (i32, i32) {
    %c0_i32 = arith.constant 0 : i32
    %c0_i32_0 = arith.constant 0 : i32
    return %arg0, %c0_i32 : i32, i32
  }
}

</mosaic_0001>

<llo_original>
// kernel: _forward_impl.1
$region0: #{_forward_impl.1}
  #allocation0 [shape = 'u32[]', space=smem, size = 0x4, offset = 0x4, fixed_abs, tag = 'smem constant byte address 0x4 - core index']
  #allocation1 [shape = 'u32[144,128]{1,0:T(1,128)}', space=vmem, size = 0x12000, scoped, tag = 'internal scratch']
  %s0 = inlined_call_operand.vmem [shape: bf16[1458,24], index: 0, kind: input, shape index: {}]
  %s1 = inlined_call_operand.vmem [shape: bf16[24,128], index: 1, kind: input, shape index: {}]
  %s2 = inlined_call_operand.vmem [shape: f32[8,128], index: 2, kind: input, shape index: {}]
  %s3 = inlined_call_operand.vmem [shape: bf16[1458,128], index: 3, kind: output, shape index: {}]
  %s4 = sld [smem:[#allocation0]]
  $region89: #{_forward_impl.1} parent=0
    _
  %s6 = ssub.s32 1, %s4
  %s7 = scalar_select 0, %s6, %s4
  $region1: #{_forward_impl.1} parent=0
    #allocation2 [shape = 'u8[376832]{0}', space=vmem, size = 0x5c000, scoped, tag = 'output window, operand 0']
    loop: start=0, step=1, limit=4
    $region2: #{_forward_impl.1} parent=1 // loop_pre_header
      _
    $region3: #{_forward_impl.1} parent=1 // loop_header
      %s9 = sphi 0, %s13
      %p10 = scmp.ge.s32.totalorder %s9, 4
      %s19 = sphi 0, %s21
      %s22 = sphi 0, %s19
      %s23 = sphi 0, %s22
      %s39 = sphi 0, %s23
      %s43 = sphi 0, %s43
      %s45 = sphi 0, %s43
      %s46 = sphi 0, %s45
      %s60 = sphi 0, %s46
      %s64 = sphi 0, %s64
      %s66 = sphi 0, %s64
      %s67 = sphi 0, %s66
      %s81 = sphi 0, %s67
      %s87 = sphi 0, %s89
      %s90 = sphi 0, %s87
      %s91 = sphi 0, %s90
      %s107 = sphi 0, %s91
    $region4: #{_forward_impl.1} parent=1 // loop_header_branch
      %12 = sbr.rel (%p10) target = $region8
    $region5: #{_forward_impl.1} parent=1 // loop_body
      %s14 = ssub.s32 %s9, 1
      %s15 = ssub.s32 %s9, 2
      %s16 = sadd.s32 %s9, 1
      %s17 = ssub.s32 %s9, %s16
      %p18 = scmp.eq.s32.totalorder %s17, 0
      %s20 = sadd.s32 %s19, 1
      %s21 = scalar_select %p18, %s19, %s20
      %p24 = pneg %p18
      %p25 = scmp.eq.s32.totalorder %s9, 1
      %p26 = por %p24, %p25
      %p27 = scmp.ne.s32.totalorder %s19, %s22
      %p28 = scmp.eq.s32.totalorder %s9, 0
      %p29 = por %p27, %p28
      %p30 = scmp.ne.s32.totalorder %s19, %s22
      %p31 = scmp.eq.s32.totalorder %s14, 1
      %p32 = por %p30, %p31
      %p33 = scmp.ne.s32.totalorder %s22, %s23
      %p34 = scmp.eq.s32.totalorder %s14, 0
      %p35 = por %p33, %p34
      %p36 = scmp.ne.s32.totalorder %s22, %s23
      %p37 = scmp.eq.s32.totalorder %s15, 1
      %p38 = por %p36, %p37
      %p40 = scmp.ne.s32.totalorder %s23, %s39
      %p41 = scmp.eq.s32.totalorder %s15, 0
      %p42 = por %p40, %p41
      %s44 = sadd.s32 %s43, 1
      %p47 = scmp.eq.s32.totalorder %s9, 1
      %p48 = scmp.ne.s32.totalorder %s43, %s45
      %p49 = scmp.eq.s32.totalorder %s9, 0
      %p50 = por %p48, %p49
      %p51 = scmp.ne.s32.totalorder %s43, %s45
      %p52 = scmp.eq.s32.totalorder %s14, 1
      %p53 = por %p51, %p52
      %p54 = scmp.ne.s32.totalorder %s45, %s46
      %p55 = scmp.eq.s32.totalorder %s14, 0
      %p56 = por %p54, %p55
      %p57 = scmp.ne.s32.totalorder %s45, %s46
      %p58 = scmp.eq.s32.totalorder %s15, 1
      %p59 = por %p57, %p58
      %p61 = scmp.ne.s32.totalorder %s46, %s60
      %p62 = scmp.eq.s32.totalorder %s15, 0
      %p63 = por %p61, %p62
      %s65 = sadd.s32 %s64, 1
      %p68 = scmp.eq.s32.totalorder %s9, 1
      %p69 = scmp.ne.s32.totalorder %s64, %s66
      %p70 = scmp.eq.s32.totalorder %s9, 0
      %p71 = por %p69, %p70
      %p72 = scmp.ne.s32.totalorder %s64, %s66
      %p73 = scmp.eq.s32.totalorder %s14, 1
      %p74 = por %p72, %p73
      %p75 = scmp.ne.s32.totalorder %s66, %s67
      %p76 = scmp.eq.s32.totalorder %s14, 0
      %p77 = por %p75, %p76
      %p78 = scmp.ne.s32.totalorder %s66, %s67
      %p79 = scmp.eq.s32.totalorder %s15, 1
      %p80 = por %p78, %p79
      %p82 = scmp.ne.s32.totalorder %s67, %s81
      %p83 = scmp.eq.s32.totalorder %s15, 0
      %p84 = por %p82, %p83
      %s85 = ssub.s32 %s9, %s16
      %p86 = scmp.eq.s32.totalorder %s85, 0
      %s88 = sadd.s32 %s87, 1
      %s89 = scalar_select %p86, %s87, %s88
      %p92 = pneg %p86
      %p93 = scmp.eq.s32.totalorder %s9, 1
      %p94 = por %p92, %p93
      %p95 = scmp.ne.s32.totalorder %s87, %s90
      %p96 = scmp.eq.s32.totalorder %s9, 0
      %p97 = por %p95, %p96
      %p98 = scmp.ne.s32.totalorder %s87, %s90
      %p99 = scmp.eq.s32.totalorder %s14, 1
      %p100 = por %p98, %p99
      %p101 = scmp.ne.s32.totalorder %s90, %s91
      %p102 = scmp.eq.s32.totalorder %s14, 0
      %p103 = por %p101, %p102
      %p104 = scmp.ne.s32.totalorder %s90, %s91
      %p105 = scmp.eq.s32.totalorder %s15, 1
      %p106 = por %p104, %p105
      %p108 = scmp.ne.s32.totalorder %s91, %s107
      %p109 = scmp.eq.s32.totalorder %s15, 0
      %p110 = por %p108, %p109
      %p111 = scmp.le.s32.totalorder 1, %s9
      %p112 = scmp.lt.s32.totalorder %s9, 3
      %p113 = pnand %p111, %p112
      %p114 = pneg %p113
      // Predicated region
      $region9: #{_forward_impl.1} parent=5 // pred_check
        _
      $region10: #{_forward_impl.1} parent=5 // pred_check_branch
        %116 = sbr.rel (%p113) target = $region12
      $region11: #{_forward_impl.1} parent=5 // pred_region
        %s117 = ssub.s32 %s9, 1
        // Predicated region
        $region13: #{_forward_impl.1} parent=11 // pred_check
          %p118 = pneg %p56
        $region14: #{_forward_impl.1} parent=11 // pred_check_branch
          %120 = sbr.rel (%p118) target = $region16
        $region15: #{_forward_impl.1} parent=11 // pred_region
          _
        $region16: #{_forward_impl.1} parent=11 // pred_fallthru
          _
        // Predicated region
        $region17: #{_forward_impl.1} parent=11 // pred_check
          %p121 = pneg %p77
        $region18: #{_forward_impl.1} parent=11 // pred_check_branch
          %123 = sbr.rel (%p121) target = $region20
        $region19: #{_forward_impl.1} parent=11 // pred_region
          _
        $region20: #{_forward_impl.1} parent=11 // pred_fallthru
          _
      $region12: #{_forward_impl.1} parent=5 // pred_fallthru
        _
      %p124 = scmp.lt.s32.totalorder %s9, 2
      // Predicated region
      $region21: #{_forward_impl.1} parent=5 // pred_check
        %p125 = pneg %p124
      $region22: #{_forward_impl.1} parent=5 // pred_check_branch
        %127 = sbr.rel (%p125) target = $region24
      $region23: #{_forward_impl.1} parent=5 // pred_region
        // Predicated region
        $region25: #{_forward_impl.1} parent=23 // pred_check
          %p128 = pneg %p29
        $region26: #{_forward_impl.1} parent=23 // pred_check_branch
          %130 = sbr.rel (%p128) target = $region28
        $region27: #{_forward_impl.1} parent=23 // pred_region
          %s131 = smul.u32 92, %s9
          %s132 = ssub.s32 183, %s131
          %p133 = scmp.lt.s32.totalorder %s132, 92
          %s134 = scalar_select %p133, %s132, 92
          %s135 = smul.u32 64, %s134
          %p136 = scmp.lt.s32.totalorder %s131, 182
          %s137 = scalar_select %p136, %s131, 182
          %s138 = smul.addr %s137, 4
          %s139 = scalar_lea.vmem %s0, %s138
          %s140 = smul.u32 92, %s9
          %s141 = ssub.s32 183, %s140
          %p142 = scmp.lt.s32.totalorder %s141, 92
          %s143 = scalar_select %p142, %s141, 92
          %s144 = smul.u32 64, %s143
        $region28: #{_forward_impl.1} parent=23 // pred_fallthru
          _
      $region24: #{_forward_impl.1} parent=5 // pred_fallthru
        _
      %p145 = scmp.le.s32.totalorder 1, %s9
      %p146 = scmp.lt.s32.totalorder %s9, 3
      %p147 = pnand %p145, %p146
      %p148 = pneg %p147
      // Predicated region
      $region29: #{_forward_impl.1} parent=5 // pred_check
        _
      $region30: #{_forward_impl.1} parent=5 // pred_check_branch
        %150 = sbr.rel (%p147) target = $region32
      $region31: #{_forward_impl.1} parent=5 // pred_region
        %s151 = ssub.s32 %s9, 1
        %s152 = smul.u32 92, %s14
        %s153 = ssub.s32 183, %s152
        %p154 = scmp.lt.s32.totalorder %s153, 92
        %s155 = scalar_select %p154, %s153, 92
        %s156 = smul.u32 64, %s155
        %p157 = scmp.lt.s32.totalorder %s152, 182
        %s158 = scalar_select %p157, %s152, 182
        %s159 = smul.addr %s158, 4
        %s160 = scalar_lea.vmem %s0, %s159
        %p161 = pneg %p35
        %p162 = pneg %p32
        %p163 = pneg %p56
        %p164 = pneg %p53
        %p165 = pneg %p77
        %p166 = pneg %p74
        %p167 = pneg %p103
        %p168 = pneg %p100
        %s169 = sand.u32 %s90, 1
        %s170 = sand.u32 %s90, 1
        %s171 = smul.addr %s170, 368
        %s172 = scalar_lea.vmem [#allocation2], %s171
        %s173 = smul.u32 92, %s14
        %s174 = ssub.s32 183, %s173
        %p175 = scmp.lt.s32.totalorder %s174, 92
        %s176 = scalar_select %p175, %s174, 92
        %s177 = smul.u32 64, %s176
        %p178 = scmp.lt.s32.totalorder %s173, 182
        %s179 = scalar_select %p178, %s173, 182
        %s180 = smul.addr %s179, 4
        %s181 = scalar_lea.vmem %s0, %s180
        %s182 = smul.u32 92, %s14
        %s183 = ssub.s32 183, %s182
        %p184 = scmp.lt.s32.totalorder %s183, 92
        %s185 = scalar_select %p184, %s183, 92
        %s186 = smul.u32 64, %s185
        %s187 = smul.u32 92, %s14
        %s188 = ssub.s32 183, %s187
        %p189 = scmp.lt.s32.totalorder %s188, 92
        %s190 = scalar_select %p189, %s188, 92
        %s191 = smul.u32 64, %s190
        %v193 = vld [vmem:[%s181] sm:$0xf]
        %v194 = vld [vmem:[%s181 + $0x4] sm:$0xf]
        %v195 = vld [vmem:[%s181 + $0x8] sm:$0xf]
        %v196 = vld [vmem:[%s181 + $0xc] sm:$0xf]
        %v197 = vld [vmem:[%s181 + $0x10] sm:$0xf]
        %v198 = vld [vmem:[%s181 + $0x14] sm:$0xf]
        %v199 = vld [vmem:[%s181 + $0x18] sm:$0xf]
        %v200 = vld [vmem:[%s181 + $0x1c] sm:$0xf]
        %v201 = vld [vmem:[%s181 + $0x20] sm:$0xf]
        %v202 = vld [vmem:[%s181 + $0x24] sm:$0xf]
        %v203 = vld [vmem:[%s181 + $0x28] sm:$0xf]
        %v204 = vld [vmem:[%s181 + $0x2c] sm:$0xf]
        %v205 = vld [vmem:[%s181 + $0x30] sm:$0xf]
        %v206 = vld [vmem:[%s181 + $0x34] sm:$0xf]
        %v207 = vld [vmem:[%s181 + $0x38] sm:$0xf]
        %v208 = vld [vmem:[%s181 + $0x3c] sm:$0xf]
        %v209 = vld [vmem:[%s181 + $0x40] sm:$0xf]
        %v210 = vld [vmem:[%s181 + $0x44] sm:$0xf]
        %v211 = vld [vmem:[%s181 + $0x48] sm:$0xf]
        %v212 = vld [vmem:[%s181 + $0x4c] sm:$0xf]
        %v213 = vld [vmem:[%s181 + $0x50] sm:$0xf]
        %v214 = vld [vmem:[%s181 + $0x54] sm:$0xf]
        %v215 = vld [vmem:[%s181 + $0x58] sm:$0xf]
        %v216 = vld [vmem:[%s181 + $0x5c] sm:$0xf]
        %v217 = vld [vmem:[%s181 + $0x60] sm:$0xf]
        %v218 = vld [vmem:[%s181 + $0x64] sm:$0xf]
        %v219 = vld [vmem:[%s181 + $0x68] sm:$0xf]
        %v220 = vld [vmem:[%s181 + $0x6c] sm:$0xf]
        %v221 = vld [vmem:[%s181 + $0x70] sm:$0xf]
        %v222 = vld [vmem:[%s181 + $0x74] sm:$0xf]
        %v223 = vld [vmem:[%s181 + $0x78] sm:$0xf]
        %v224 = vld [vmem:[%s181 + $0x7c] sm:$0xf]
        %v225 = vld [vmem:[%s181 + $0x80] sm:$0xf]
        %v226 = vld [vmem:[%s181 + $0x84] sm:$0xf]
        %v227 = vld [vmem:[%s181 + $0x88] sm:$0xf]
        %v228 = vld [vmem:[%s181 + $0x8c] sm:$0xf]
        %v229 = vld [vmem:[%s181 + $0x90] sm:$0xf]
        %v230 = vld [vmem:[%s181 + $0x94] sm:$0xf]
        %v231 = vld [vmem:[%s181 + $0x98] sm:$0xf]
        %v232 = vld [vmem:[%s181 + $0x9c] sm:$0xf]
        %v233 = vld [vmem:[%s181 + $0xa0] sm:$0xf]
        %v234 = vld [vmem:[%s181 + $0xa4] sm:$0xf]
        %v235 = vld [vmem:[%s181 + $0xa8] sm:$0xf]
        %v236 = vld [vmem:[%s181 + $0xac] sm:$0xf]
        %v237 = vld [vmem:[%s181 + $0xb0] sm:$0xf]
        %v238 = vld [vmem:[%s181 + $0xb4] sm:$0xf]
        %v239 = vld [vmem:[%s181 + $0xb8] sm:$0xf]
        %v240 = vld [vmem:[%s181 + $0xbc] sm:$0xf]
        %v241 = vld [vmem:[%s181 + $0xc0] sm:$0xf]
        %v242 = vld [vmem:[%s181 + $0xc4] sm:$0xf]
        %v243 = vld [vmem:[%s181 + $0xc8] sm:$0xf]
        %v244 = vld [vmem:[%s181 + $0xcc] sm:$0xf]
        %v245 = vld [vmem:[%s181 + $0xd0] sm:$0xf]
        %v246 = vld [vmem:[%s181 + $0xd4] sm:$0xf]
        %v247 = vld [vmem:[%s181 + $0xd8] sm:$0xf]
        %v248 = vld [vmem:[%s181 + $0xdc] sm:$0xf]
        %v249 = vld [vmem:[%s181 + $0xe0] sm:$0xf]
        %v250 = vld [vmem:[%s181 + $0xe4] sm:$0xf]
        %v251 = vld [vmem:[%s181 + $0xe8] sm:$0xf]
        %v252 = vld [vmem:[%s181 + $0xec] sm:$0xf]
        %v253 = vld [vmem:[%s181 + $0xf0] sm:$0xf]
        %v254 = vld [vmem:[%s181 + $0xf4] sm:$0xf]
        %v255 = vld [vmem:[%s181 + $0xf8] sm:$0xf]
        %v256 = vld [vmem:[%s181 + $0xfc] sm:$0xf]
        %v257 = vld [vmem:[%s181 + $0x100] sm:$0xf]
        %v258 = vld [vmem:[%s181 + $0x104] sm:$0xf]
        %v259 = vld [vmem:[%s181 + $0x108] sm:$0xf]
        %v260 = vld [vmem:[%s181 + $0x10c] sm:$0xf]
        %v261 = vld [vmem:[%s181 + $0x110] sm:$0xf]
        %v262 = vld [vmem:[%s181 + $0x114] sm:$0xf]
        %v263 = vld [vmem:[%s181 + $0x118] sm:$0xf]
        %v264 = vld [vmem:[%s181 + $0x11c] sm:$0xf]
        %v265 = vld [vmem:[%s181 + $0x120] sm:$0xf]
        %v266 = vld [vmem:[%s181 + $0x124] sm:$0xf]
        %v267 = vld [vmem:[%s181 + $0x128] sm:$0xf]
        %v268 = vld [vmem:[%s181 + $0x12c] sm:$0xf]
        %v269 = vld [vmem:[%s181 + $0x130] sm:$0xf]
        %v270 = vld [vmem:[%s181 + $0x134] sm:$0xf]
        %v271 = vld [vmem:[%s181 + $0x138] sm:$0xf]
        %v272 = vld [vmem:[%s181 + $0x13c] sm:$0xf]
        %v273 = vld [vmem:[%s181 + $0x140] sm:$0xf]
        %v274 = vld [vmem:[%s181 + $0x144] sm:$0xf]
        %v275 = vld [vmem:[%s181 + $0x148] sm:$0xf]
        %v276 = vld [vmem:[%s181 + $0x14c] sm:$0xf]
        %v277 = vld [vmem:[%s181 + $0x150] sm:$0xf]
        %v278 = vld [vmem:[%s181 + $0x154] sm:$0xf]
        %v279 = vld [vmem:[%s181 + $0x158] sm:$0xf]
        %v280 = vld [vmem:[%s181 + $0x15c] sm:$0xf]
        %v281 = vld [vmem:[%s181 + $0x160] sm:$0xf]
        %v282 = vld [vmem:[%s181 + $0x164] sm:$0xf]
        %v283 = vld [vmem:[%s181 + $0x168] sm:$0xf]
        %v284 = vld [vmem:[%s181 + $0x16c] sm:$0xf]
        %v285 = vld [vmem:[%s1] sm:$0xf]
        %v286 = vld [vmem:[%s1 + $0x4] sm:$0xf]
        %v287 = vld [vmem:[%s1 + $0x8] sm:$0xf]
        %v288 = vld [vmem:[%s2] sm:$0x1]
        %v289 = vlaneseq
        %v290 = vshrl.u32 %v289, 7
        %v291 = vsub.s32 0, %v290
        %v292 = vrot.slane %v288, %v291
        %v385 = vunpack.c.l.b16 %v193
        %v386 = vunpack.c.l.b16 %v194
        %v387 = vunpack.c.l.b16 %v195
        %v388 = vunpack.c.l.b16 %v196
        %v389 = vunpack.c.l.b16 %v197
        %v390 = vunpack.c.l.b16 %v198
        %v391 = vunpack.c.l.b16 %v199
        %v392 = vunpack.c.l.b16 %v200
        %v393 = vunpack.c.l.b16 %v201
        %v394 = vunpack.c.l.b16 %v202
        %v395 = vunpack.c.l.b16 %v203
        %v396 = vunpack.c.l.b16 %v204
        %v397 = vunpack.c.l.b16 %v205
        %v398 = vunpack.c.l.b16 %v206
        %v399 = vunpack.c.l.b16 %v207
        %v400 = vunpack.c.l.b16 %v208
        %v401 = vunpack.c.l.b16 %v209
        %v402 = vunpack.c.l.b16 %v210
        %v403 = vunpack.c.l.b16 %v211
        %v404 = vunpack.c.l.b16 %v212
        %v405 = vunpack.c.l.b16 %v213
        %v406 = vunpack.c.l.b16 %v214
        %v407 = vunpack.c.l.b16 %v215
        %v408 = vunpack.c.l.b16 %v216
        %v409 = vunpack.c.l.b16 %v217
        %v410 = vunpack.c.l.b16 %v218
        %v411 = vunpack.c.l.b16 %v219
        %v412 = vunpack.c.l.b16 %v220
        %v413 = vunpack.c.l.b16 %v221
        %v414 = vunpack.c.l.b16 %v222
        %v415 = vunpack.c.l.b16 %v223
        %v416 = vunpack.c.l.b16 %v224
        %v417 = vunpack.c.l.b16 %v225
        %v418 = vunpack.c.l.b16 %v226
        %v419 = vunpack.c.l.b16 %v227
        %v420 = vunpack.c.l.b16 %v228
        %v421 = vunpack.c.l.b16 %v229
        %v422 = vunpack.c.l.b16 %v230
        %v423 = vunpack.c.l.b16 %v231
        %v424 = vunpack.c.l.b16 %v232
        %v425 = vunpack.c.l.b16 %v233
        %v426 = vunpack.c.l.b16 %v234
        %v427 = vunpack.c.l.b16 %v235
        %v428 = vunpack.c.l.b16 %v236
        %v429 = vunpack.c.l.b16 %v237
        %v430 = vunpack.c.l.b16 %v238
        %v431 = vunpack.c.l.b16 %v239
        %v432 = vunpack.c.l.b16 %v240
        %v433 = vunpack.c.l.b16 %v241
        %v434 = vunpack.c.l.b16 %v242
        %v435 = vunpack.c.l.b16 %v243
        %v436 = vunpack.c.l.b16 %v244
        %v437 = vunpack.c.l.b16 %v245
        %v438 = vunpack.c.l.b16 %v246
        %v439 = vunpack.c.l.b16 %v247
        %v440 = vunpack.c.l.b16 %v248
        %v441 = vunpack.c.l.b16 %v249
        %v442 = vunpack.c.l.b16 %v250
        %v443 = vunpack.c.l.b16 %v251
        %v444 = vunpack.c.l.b16 %v252
        %v445 = vunpack.c.l.b16 %v253
        %v446 = vunpack.c.l.b16 %v254
        %v447 = vunpack.c.l.b16 %v255
        %v448 = vunpack.c.l.b16 %v256
        %v449 = vunpack.c.l.b16 %v257
        %v450 = vunpack.c.l.b16 %v258
        %v451 = vunpack.c.l.b16 %v259
        %v452 = vunpack.c.l.b16 %v260
        %v453 = vunpack.c.l.b16 %v261
        %v454 = vunpack.c.l.b16 %v262
        %v455 = vunpack.c.l.b16 %v263
        %v456 = vunpack.c.l.b16 %v264
        %v457 = vunpack.c.l.b16 %v265
        %v458 = vunpack.c.l.b16 %v266
        %v459 = vunpack.c.l.b16 %v267
        %v460 = vunpack.c.l.b16 %v268
        %v461 = vunpack.c.l.b16 %v269
        %v462 = vunpack.c.l.b16 %v270
        %v463 = vunpack.c.l.b16 %v271
        %v464 = vunpack.c.l.b16 %v272
        %v465 = vunpack.c.l.b16 %v273
        %v466 = vunpack.c.l.b16 %v274
        %v467 = vunpack.c.l.b16 %v275
        %v468 = vunpack.c.l.b16 %v276
        %v469 = vunpack.c.l.b16 %v277
        %v470 = vunpack.c.l.b16 %v278
        %v471 = vunpack.c.l.b16 %v279
        %v472 = vunpack.c.l.b16 %v280
        %v473 = vunpack.c.l.b16 %v281
        %v474 = vunpack.c.l.b16 %v282
        %v475 = vunpack.c.l.b16 %v283
        %v476 = vunpack.c.l.b16 %v284
        %v477 = vpack.c.b16 %v386, %v385
        %v478 = vpack.c.b16 %v388, %v387
        %v479 = vpack.c.b16 %v390, %v389
        %v480 = vpack.c.b16 %v392, %v391
        %v481 = vpack.c.b16 %v394, %v393
        %v482 = vpack.c.b16 %v396, %v395
        %v483 = vpack.c.b16 %v398, %v397
        %v484 = vpack.c.b16 %v400, %v399
        %v485 = vpack.c.b16 %v402, %v401
        %v486 = vpack.c.b16 %v404, %v403
        %v487 = vpack.c.b16 %v406, %v405
        %v488 = vpack.c.b16 %v408, %v407
        %v489 = vpack.c.b16 %v410, %v409
        %v490 = vpack.c.b16 %v412, %v411
        %v491 = vpack.c.b16 %v414, %v413
        %v492 = vpack.c.b16 %v416, %v415
        %v493 = vpack.c.b16 %v418, %v417
        %v494 = vpack.c.b16 %v420, %v419
        %v495 = vpack.c.b16 %v422, %v421
        %v496 = vpack.c.b16 %v424, %v423
        %v497 = vpack.c.b16 %v426, %v425
        %v498 = vpack.c.b16 %v428, %v427
        %v499 = vpack.c.b16 %v430, %v429
        %v500 = vpack.c.b16 %v432, %v431
        %v501 = vpack.c.b16 %v434, %v433
        %v502 = vpack.c.b16 %v436, %v435
        %v503 = vpack.c.b16 %v438, %v437
        %v504 = vpack.c.b16 %v440, %v439
        %v505 = vpack.c.b16 %v442, %v441
        %v506 = vpack.c.b16 %v444, %v443
        %v507 = vpack.c.b16 %v446, %v445
        %v508 = vpack.c.b16 %v448, %v447
        %v509 = vpack.c.b16 %v450, %v449
        %v510 = vpack.c.b16 %v452, %v451
        %v511 = vpack.c.b16 %v454, %v453
        %v512 = vpack.c.b16 %v456, %v455
        %v513 = vpack.c.b16 %v458, %v457
        %v514 = vpack.c.b16 %v460, %v459
        %v515 = vpack.c.b16 %v462, %v461
        %v516 = vpack.c.b16 %v464, %v463
        %v517 = vpack.c.b16 %v466, %v465
        %v518 = vpack.c.b16 %v468, %v467
        %v519 = vpack.c.b16 %v470, %v469
        %v520 = vpack.c.b16 %v472, %v471
        %v521 = vpack.c.b16 %v474, %v473
        %v522 = vpack.c.b16 %v476, %v475
        %v526 = vunpack.c.l.b16 %v285
        %v527 = vunpack.c.l.b16 %v286
        %v528 = vunpack.c.l.b16 %v287
        %v529 = vpack.c.b16 %v527, %v526
        %v530 = vpack.c.b16 %v528, %v528
        %vm532 = vcmask 195584
        %v534 = vsel %vm532, %v477, 0
        %v537 = vsel %vm532, %v478, 0
        %v540 = vsel %vm532, %v479, 0
        %v543 = vsel %vm532, %v480, 0
        %v546 = vsel %vm532, %v481, 0
        %v549 = vsel %vm532, %v482, 0
        %v552 = vsel %vm532, %v483, 0
        %v555 = vsel %vm532, %v484, 0
        %v558 = vsel %vm532, %v485, 0
        %v561 = vsel %vm532, %v486, 0
        %v564 = vsel %vm532, %v487, 0
        %v567 = vsel %vm532, %v488, 0
        %v570 = vsel %vm532, %v489, 0
        %v573 = vsel %vm532, %v490, 0
        %v576 = vsel %vm532, %v491, 0
        %v579 = vsel %vm532, %v492, 0
        %v582 = vsel %vm532, %v493, 0
        %v585 = vsel %vm532, %v494, 0
        %v588 = vsel %vm532, %v495, 0
        %v591 = vsel %vm532, %v496, 0
        %v594 = vsel %vm532, %v497, 0
        %v597 = vsel %vm532, %v498, 0
        %v600 = vsel %vm532, %v499, 0
        %v603 = vsel %vm532, %v500, 0
        %v606 = vsel %vm532, %v501, 0
        %v609 = vsel %vm532, %v502, 0
        %v612 = vsel %vm532, %v503, 0
        %v615 = vsel %vm532, %v504, 0
        %v618 = vsel %vm532, %v505, 0
        %v621 = vsel %vm532, %v506, 0
        %v624 = vsel %vm532, %v507, 0
        %v627 = vsel %vm532, %v508, 0
        %v630 = vsel %vm532, %v509, 0
        %v633 = vsel %vm532, %v510, 0
        %v636 = vsel %vm532, %v511, 0
        %v639 = vsel %vm532, %v512, 0
        %v642 = vsel %vm532, %v513, 0
        %v645 = vsel %vm532, %v514, 0
        %v648 = vsel %vm532, %v515, 0
        %v651 = vsel %vm532, %v516, 0
        %v654 = vsel %vm532, %v517, 0
        %v657 = vsel %vm532, %v518, 0
        %v660 = vsel %vm532, %v519, 0
        %v663 = vsel %vm532, %v520, 0
        %v666 = vsel %vm532, %v521, 0
        %v669 = vsel %vm532, %v522, 0
        %vm671 = vcmask 1043456
        %v673 = vsel %vm671, %v530, 0
        %675 = vmatprep.subr.bf16.mxu0 0
        %676 = vmatpush1.bf16.msra.mxu0 %v529
        %677 = vmatprep.subr.bf16.mxu0 0
        %678 = vmatpush1.bf16.msra.mxu0 %v673
        %679 = vmatprep.subr.bf16.mxu0 0
        %680 = vmatpush1.bf16.msra.mxu0 0
        %681 = vmatprep.subr.bf16.mxu0 0
        %682 = vmatpush1.bf16.msra.mxu0 0
        %683 = vmatprep.subr.bf16.mxu0 0
        %684 = vmatpush1.bf16.msra.mxu0 0
        %685 = vmatprep.subr.bf16.mxu0 0
        %686 = vmatpush1.bf16.msra.mxu0 0
        %687 = vmatprep.subr.bf16.mxu0 0
        %688 = vmatpush1.bf16.msra.mxu0 0
        %689 = vmatprep.subr.bf16.mxu0 0
        %690 = vmatpush1.bf16.msra.mxu0 0
        %691 = vmatprep.subr.bf16.mxu0 0
        %692 = vmatpush1.bf16.msra.mxu0 0
        %693 = vmatprep.subr.bf16.mxu0 0
        %694 = vmatpush1.bf16.msra.mxu0 0
        %695 = vmatprep.subr.bf16.mxu0 0
        %696 = vmatpush1.bf16.msra.mxu0 0
        %697 = vmatprep.subr.bf16.mxu0 0
        %698 = vmatpush1.bf16.msra.mxu0 0
        %699 = vmatprep.subr.bf16.mxu0 0
        %700 = vmatpush1.bf16.msra.mxu0 0
        %701 = vmatprep.subr.bf16.mxu0 0
        %702 = vmatpush1.bf16.msra.mxu0 0
        %703 = vmatprep.subr.bf16.mxu0 0
        %704 = vmatpush1.bf16.msra.mxu0 0
        %705 = vmatprep.subr.bf16.mxu0 0
        %706 = vmatpush1.bf16.msra.mxu0 0
        %707 = vmatprep.mubr.bf16.mxu0 0
        %708 = vmatmul.mubr.bf16.gmra.mrb[0].mxu0 %v534
        %v709 = vpop.f32.mrb[0].mxu0
        %v710 = vadd.f32 %v292, %v709
        %v711 = vpop.f32.mrb[0].mxu0
        %v712 = vpop.f32.mrb[0].mxu0
        %v713 = vadd.f32 %v292, %v712
        %v714 = vpop.f32.mrb[0].mxu0
        %715 = vmatprep.mubr.bf16.mxu0 0
        %716 = vmatmul.mubr.bf16.gmra.mrb[0].mxu0 %v537
        %v717 = vpop.f32.mrb[0].mxu0
        %v718 = vadd.f32 %v292, %v717
        %v719 = vpop.f32.mrb[0].mxu0
        %v720 = vpop.f32.mrb[0].mxu0
        %v721 = vadd.f32 %v292, %v720
        %v722 = vpop.f32.mrb[0].mxu0
        %723 = vmatprep.mubr.bf16.mxu0 0
        %724 = vmatmul.mubr.bf16.gmra.mrb[0].mxu0 %v540
        %v725 = vpop.f32.mrb[0].mxu0
        %v726 = vadd.f32 %v292, %v725
        %v727 = vpop.f32.mrb[0].mxu0
        %v728 = vpop.f32.mrb[0].mxu0
        %v729 = vadd.f32 %v292, %v728
        %v730 = vpop.f32.mrb[0].mxu0
        %731 = vmatprep.mubr.bf16.mxu0 0
        %732 = vmatmul.mubr.bf16.gmra.mrb[0].mxu0 %v543
        %v733 = vpop.f32.mrb[0].mxu0
        %v734 = vadd.f32 %v292, %v733
        %v735 = vpop.f32.mrb[0].mxu0
        %v736 = vpop.f32.mrb[0].mxu0
        %v737 = vadd.f32 %v292, %v736
        %v738 = vpop.f32.mrb[0].mxu0
        %739 = vmatprep.mubr.bf16.mxu0 0
        %740 = vmatmul.mubr.bf16.gmra.mrb[0].mxu0 %v546
        %v741 = vpop.f32.mrb[0].mxu0
        %v742 = vadd.f32 %v292, %v741
        %v743 = vpop.f32.mrb[0].mxu0
        %v744 = vpop.f32.mrb[0].mxu0
        %v745 = vadd.f32 %v292, %v744
        %v746 = vpop.f32.mrb[0].mxu0
        %747 = vmatprep.mubr.bf16.mxu0 0
        %748 = vmatmul.mubr.bf16.gmra.mrb[0].mxu0 %v549
        %v749 = vpop.f32.mrb[0].mxu0
        %v750 = vadd.f32 %v292, %v749
        %v751 = vpop.f32.mrb[0].mxu0
        %v752 = vpop.f32.mrb[0].mxu0
        %v753 = vadd.f32 %v292, %v752
        %v754 = vpop.f32.mrb[0].mxu0
        %755 = vmatprep.mubr.bf16.mxu0 0
        %756 = vmatmul.mubr.bf16.gmra.mrb[0].mxu0 %v552
        %v757 = vpop.f32.mrb[0].mxu0
        %v758 = vadd.f32 %v292, %v757
        %v759 = vpop.f32.mrb[0].mxu0
        %v760 = vpop.f32.mrb[0].mxu0
        %v761 = vadd.f32 %v292, %v760
        %v762 = vpop.f32.mrb[0].mxu0
        %763 = vmatprep.mubr.bf16.mxu0 0
        %764 = vmatmul.mubr.bf16.gmra.mrb[0].mxu0 %v555
        %v765 = vpop.f32.mrb[0].mxu0
        %v766 = vadd.f32 %v292, %v765
        %v767 = vpop.f32.mrb[0].mxu0
        %v768 = vpop.f32.mrb[0].mxu0
        %v769 = vadd.f32 %v292, %v768
        %v770 = vpop.f32.mrb[0].mxu0
        %771 = vmatprep.mubr.bf16.mxu0 0
        %772 = vmatmul.mubr.bf16.gmra.mrb[0].mxu0 %v558
        %v773 = vpop.f32.mrb[0].mxu0
        %v774 = vadd.f32 %v292, %v773
        %v775 = vpop.f32.mrb[0].mxu0
        %v776 = vpop.f32.mrb[0].mxu0
        %v777 = vadd.f32 %v292, %v776
        %v778 = vpop.f32.mrb[0].mxu0
        %779 = vmatprep.mubr.bf16.mxu0 0
        %780 = vmatmul.mubr.bf16.gmra.mrb[0].mxu0 %v561
        %v781 = vpop.f32.mrb[0].mxu0
        %v782 = vadd.f32 %v292, %v781
        %v783 = vpop.f32.mrb[0].mxu0
        %v784 = vpop.f32.mrb[0].mxu0
        %v785 = vadd.f32 %v292, %v784
        %v786 = vpop.f32.mrb[0].mxu0
        %787 = vmatprep.mubr.bf16.mxu0 0
        %788 = vmatmul.mubr.bf16.gmra.mrb[0].mxu0 %v564
        %v789 = vpop.f32.mrb[0].mxu0
        %v790 = vadd.f32 %v292, %v789
        %v791 = vpop.f32.mrb[0].mxu0
        %v792 = vpop.f32.mrb[0].mxu0
        %v793 = vadd.f32 %v292, %v792
        %v794 = vpop.f32.mrb[0].mxu0
        %795 = vmatprep.mubr.bf16.mxu0 0
        %796 = vmatmul.mubr.bf16.gmra.mrb[0].mxu0 %v567
        %v797 = vpop.f32.mrb[0].mxu0
        %v798 = vadd.f32 %v292, %v797
        %v799 = vpop.f32.mrb[0].mxu0
        %v800 = vpop.f32.mrb[0].mxu0
        %v801 = vadd.f32 %v292, %v800
        %v802 = vpop.f32.mrb[0].mxu0
        %803 = vmatprep.mubr.bf16.mxu0 0
        %804 = vmatmul.mubr.bf16.gmra.mrb[0].mxu0 %v570
        %v805 = vpop.f32.mrb[0].mxu0
        %v806 = vadd.f32 %v292, %v805
        %v807 = vpop.f32.mrb[0].mxu0
        %v808 = vpop.f32.mrb[0].mxu0
        %v809 = vadd.f32 %v292, %v808
        %v810 = vpop.f32.mrb[0].mxu0
        %811 = vmatprep.mubr.bf16.mxu0 0
        %812 = vmatmul.mubr.bf16.gmra.mrb[0].mxu0 %v573
        %v813 = vpop.f32.mrb[0].mxu0
        %v814 = vadd.f32 %v292, %v813
        %v815 = vpop.f32.mrb[0].mxu0
        %v816 = vpop.f32.mrb[0].mxu0
        %v817 = vadd.f32 %v292, %v816
        %v818 = vpop.f32.mrb[0].mxu0
        %819 = vmatprep.mubr.bf16.mxu0 0
        %820 = vmatmul.mubr.bf16.gmra.mrb[0].mxu0 %v576
        %v821 = vpop.f32.mrb[0].mxu0
        %v822 = vadd.f32 %v292, %v821
        %v823 = vpop.f32.mrb[0].mxu0
        %v824 = vpop.f32.mrb[0].mxu0
        %v825 = vadd.f32 %v292, %v824
        %v826 = vpop.f32.mrb[0].mxu0
        %827 = vmatprep.mubr.bf16.mxu0 0
        %828 = vmatmul.mubr.bf16.gmra.mrb[0].mxu0 %v579
        %v829 = vpop.f32.mrb[0].mxu0
        %v830 = vadd.f32 %v292, %v829
        %v831 = vpop.f32.mrb[0].mxu0
        %v832 = vpop.f32.mrb[0].mxu0
        %v833 = vadd.f32 %v292, %v832
        %v834 = vpop.f32.mrb[0].mxu0
        %835 = vmatprep.mubr.bf16.mxu0 0
        %836 = vmatmul.mubr.bf16.gmra.mrb[0].mxu0 %v582
        %v837 = vpop.f32.mrb[0].mxu0
        %v838 = vadd.f32 %v292, %v837
        %v839 = vpop.f32.mrb[0].mxu0
        %v840 = vpop.f32.mrb[0].mxu0
        %v841 = vadd.f32 %v292, %v840
        %v842 = vpop.f32.mrb[0].mxu0
        %843 = vmatprep.mubr.bf16.mxu0 0
        %844 = vmatmul.mubr.bf16.gmra.mrb[0].mxu0 %v585
        %v845 = vpop.f32.mrb[0].mxu0
        %v846 = vadd.f32 %v292, %v845
        %v847 = vpop.f32.mrb[0].mxu0
        %v848 = vpop.f32.mrb[0].mxu0
        %v849 = vadd.f32 %v292, %v848
        %v850 = vpop.f32.mrb[0].mxu0
        %851 = vmatprep.mubr.bf16.mxu0 0
        %852 = vmatmul.mubr.bf16.gmra.mrb[0].mxu0 %v588
        %v853 = vpop.f32.mrb[0].mxu0
        %v854 = vadd.f32 %v292, %v853
        %v855 = vpop.f32.mrb[0].mxu0
        %v856 = vpop.f32.mrb[0].mxu0
        %v857 = vadd.f32 %v292, %v856
        %v858 = vpop.f32.mrb[0].mxu0
        %859 = vmatprep.mubr.bf16.mxu0 0
        %860 = vmatmul.mubr.bf16.gmra.mrb[0].mxu0 %v591
        %v861 = vpop.f32.mrb[0].mxu0
        %v862 = vadd.f32 %v292, %v861
        %v863 = vpop.f32.mrb[0].mxu0
        %v864 = vpop.f32.mrb[0].mxu0
        %v865 = vadd.f32 %v292, %v864
        %v866 = vpop.f32.mrb[0].mxu0
        %867 = vmatprep.mubr.bf16.mxu0 0
        %868 = vmatmul.mubr.bf16.gmra.mrb[0].mxu0 %v594
        %v869 = vpop.f32.mrb[0].mxu0
        %v870 = vadd.f32 %v292, %v869
        %v871 = vpop.f32.mrb[0].mxu0
        %v872 = vpop.f32.mrb[0].mxu0
        %v873 = vadd.f32 %v292, %v872
        %v874 = vpop.f32.mrb[0].mxu0
        %875 = vmatprep.mubr.bf16.mxu0 0
        %876 = vmatmul.mubr.bf16.gmra.mrb[0].mxu0 %v597
        %v877 = vpop.f32.mrb[0].mxu0
        %v878 = vadd.f32 %v292, %v877
        %v879 = vpop.f32.mrb[0].mxu0
        %v880 = vpop.f32.mrb[0].mxu0
        %v881 = vadd.f32 %v292, %v880
        %v882 = vpop.f32.mrb[0].mxu0
        %883 = vmatprep.mubr.bf16.mxu0 0
        %884 = vmatmul.mubr.bf16.gmra.mrb[0].mxu0 %v600
        %v885 = vpop.f32.mrb[0].mxu0
        %v886 = vadd.f32 %v292, %v885
        %v887 = vpop.f32.mrb[0].mxu0
        %v888 = vpop.f32.mrb[0].mxu0
        %v889 = vadd.f32 %v292, %v888
        %v890 = vpop.f32.mrb[0].mxu0
        %891 = vmatprep.mubr.bf16.mxu0 0
        %892 = vmatmul.mubr.bf16.gmra.mrb[0].mxu0 %v603
        %v893 = vpop.f32.mrb[0].mxu0
        %v894 = vadd.f32 %v292, %v893
        %v895 = vpop.f32.mrb[0].mxu0
        %v896 = vpop.f32.mrb[0].mxu0
        %v897 = vadd.f32 %v292, %v896
        %v898 = vpop.f32.mrb[0].mxu0
        %899 = vmatprep.mubr.bf16.mxu0 0
        %900 = vmatmul.mubr.bf16.gmra.mrb[0].mxu0 %v606
        %v901 = vpop.f32.mrb[0].mxu0
        %v902 = vadd.f32 %v292, %v901
        %v903 = vpop.f32.mrb[0].mxu0
        %v904 = vpop.f32.mrb[0].mxu0
        %v905 = vadd.f32 %v292, %v904
        %v906 = vpop.f32.mrb[0].mxu0
        %907 = vmatprep.mubr.bf16.mxu0 0
        %908 = vmatmul.mubr.bf16.gmra.mrb[0].mxu0 %v609
        %v909 = vpop.f32.mrb[0].mxu0
        %v910 = vadd.f32 %v292, %v909
        %v911 = vpop.f32.mrb[0].mxu0
        %v912 = vpop.f32.mrb[0].mxu0
        %v913 = vadd.f32 %v292, %v912
        %v914 = vpop.f32.mrb[0].mxu0
        %915 = vmatprep.mubr.bf16.mxu0 0
        %916 = vmatmul.mubr.bf16.gmra.mrb[0].mxu0 %v612
        %v917 = vpop.f32.mrb[0].mxu0
        %v918 = vadd.f32 %v292, %v917
        %v919 = vpop.f32.mrb[0].mxu0
        %v920 = vpop.f32.mrb[0].mxu0
        %v921 = vadd.f32 %v292, %v920
        %v922 = vpop.f32.mrb[0].mxu0
        %923 = vmatprep.mubr.bf16.mxu0 0
        %924 = vmatmul.mubr.bf16.gmra.mrb[0].mxu0 %v615
        %v925 = vpop.f32.mrb[0].mxu0
        %v926 = vadd.f32 %v292, %v925
        %v927 = vpop.f32.mrb[0].mxu0
        %v928 = vpop.f32.mrb[0].mxu0
        %v929 = vadd.f32 %v292, %v928
        %v930 = vpop.f32.mrb[0].mxu0
        %931 = vmatprep.mubr.bf16.mxu0 0
        %932 = vmatmul.mubr.bf16.gmra.mrb[0].mxu0 %v618
        %v933 = vpop.f32.mrb[0].mxu0
        %v934 = vadd.f32 %v292, %v933
        %v935 = vpop.f32.mrb[0].mxu0
        %v936 = vpop.f32.mrb[0].mxu0
        %v937 = vadd.f32 %v292, %v936
        %v938 = vpop.f32.mrb[0].mxu0
        %939 = vmatprep.mubr.bf16.mxu0 0
        %940 = vmatmul.mubr.bf16.gmra.mrb[0].mxu0 %v621
        %v941 = vpop.f32.mrb[0].mxu0
        %v942 = vadd.f32 %v292, %v941
        %v943 = vpop.f32.mrb[0].mxu0
        %v944 = vpop.f32.mrb[0].mxu0
        %v945 = vadd.f32 %v292, %v944
        %v946 = vpop.f32.mrb[0].mxu0
        %947 = vmatprep.mubr.bf16.mxu0 0
        %948 = vmatmul.mubr.bf16.gmra.mrb[0].mxu0 %v624
        %v949 = vpop.f32.mrb[0].mxu0
        %v950 = vadd.f32 %v292, %v949
        %v951 = vpop.f32.mrb[0].mxu0
        %v952 = vpop.f32.mrb[0].mxu0
        %v953 = vadd.f32 %v292, %v952
        %v954 = vpop.f32.mrb[0].mxu0
        %955 = vmatprep.mubr.bf16.mxu0 0
        %956 = vmatmul.mubr.bf16.gmra.mrb[0].mxu0 %v627
        %v957 = vpop.f32.mrb[0].mxu0
        %v958 = vadd.f32 %v292, %v957
        %v959 = vpop.f32.mrb[0].mxu0
        %v960 = vpop.f32.mrb[0].mxu0
        %v961 = vadd.f32 %v292, %v960
        %v962 = vpop.f32.mrb[0].mxu0
        %963 = vmatprep.mubr.bf16.mxu0 0
        %964 = vmatmul.mubr.bf16.gmra.mrb[0].mxu0 %v630
        %v965 = vpop.f32.mrb[0].mxu0
        %v966 = vadd.f32 %v292, %v965
        %v967 = vpop.f32.mrb[0].mxu0
        %v968 = vpop.f32.mrb[0].mxu0
        %v969 = vadd.f32 %v292, %v968
        %v970 = vpop.f32.mrb[0].mxu0
        %971 = vmatprep.mubr.bf16.mxu0 0
        %972 = vmatmul.mubr.bf16.gmra.mrb[0].mxu0 %v633
        %v973 = vpop.f32.mrb[0].mxu0
        %v974 = vadd.f32 %v292, %v973
        %v975 = vpop.f32.mrb[0].mxu0
        %v976 = vpop.f32.mrb[0].mxu0
        %v977 = vadd.f32 %v292, %v976
        %v978 = vpop.f32.mrb[0].mxu0
        %979 = vmatprep.mubr.bf16.mxu0 0
        %980 = vmatmul.mubr.bf16.gmra.mrb[0].mxu0 %v636
        %v981 = vpop.f32.mrb[0].mxu0
        %v982 = vadd.f32 %v292, %v981
        %v983 = vpop.f32.mrb[0].mxu0
        %v984 = vpop.f32.mrb[0].mxu0
        %v985 = vadd.f32 %v292, %v984
        %v986 = vpop.f32.mrb[0].mxu0
        %987 = vmatprep.mubr.bf16.mxu0 0
        %988 = vmatmul.mubr.bf16.gmra.mrb[0].mxu0 %v639
        %v989 = vpop.f32.mrb[0].mxu0
        %v990 = vadd.f32 %v292, %v989
        %v991 = vpop.f32.mrb[0].mxu0
        %v992 = vpop.f32.mrb[0].mxu0
        %v993 = vadd.f32 %v292, %v992
        %v994 = vpop.f32.mrb[0].mxu0
        %995 = vmatprep.mubr.bf16.mxu0 0
        %996 = vmatmul.mubr.bf16.gmra.mrb[0].mxu0 %v642
        %v997 = vpop.f32.mrb[0].mxu0
        %v998 = vadd.f32 %v292, %v997
        %v999 = vpop.f32.mrb[0].mxu0
        %v1000 = vpop.f32.mrb[0].mxu0
        %v1001 = vadd.f32 %v292, %v1000
        %v1002 = vpop.f32.mrb[0].mxu0
        %1003 = vmatprep.mubr.bf16.mxu0 0
        %1004 = vmatmul.mubr.bf16.gmra.mrb[0].mxu0 %v645
        %v1005 = vpop.f32.mrb[0].mxu0
        %v1006 = vadd.f32 %v292, %v1005
        %v1007 = vpop.f32.mrb[0].mxu0
        %v1008 = vpop.f32.mrb[0].mxu0
        %v1009 = vadd.f32 %v292, %v1008
        %v1010 = vpop.f32.mrb[0].mxu0
        %1011 = vmatprep.mubr.bf16.mxu0 0
        %1012 = vmatmul.mubr.bf16.gmra.mrb[0].mxu0 %v648
        %v1013 = vpop.f32.mrb[0].mxu0
        %v1014 = vadd.f32 %v292, %v1013
        %v1015 = vpop.f32.mrb[0].mxu0
        %v1016 = vpop.f32.mrb[0].mxu0
        %v1017 = vadd.f32 %v292, %v1016
        %v1018 = vpop.f32.mrb[0].mxu0
        %1019 = vmatprep.mubr.bf16.mxu0 0
        %1020 = vmatmul.mubr.bf16.gmra.mrb[0].mxu0 %v651
        %v1021 = vpop.f32.mrb[0].mxu0
        %v1022 = vadd.f32 %v292, %v1021
        %v1023 = vpop.f32.mrb[0].mxu0
        %v1024 = vpop.f32.mrb[0].mxu0
        %v1025 = vadd.f32 %v292, %v1024
        %v1026 = vpop.f32.mrb[0].mxu0
        %1027 = vmatprep.mubr.bf16.mxu0 0
        %1028 = vmatmul.mubr.bf16.gmra.mrb[0].mxu0 %v654
        %v1029 = vpop.f32.mrb[0].mxu0
        %v1030 = vadd.f32 %v292, %v1029
        %v1031 = vpop.f32.mrb[0].mxu0
        %v1032 = vpop.f32.mrb[0].mxu0
        %v1033 = vadd.f32 %v292, %v1032
        %v1034 = vpop.f32.mrb[0].mxu0
        %1035 = vmatprep.mubr.bf16.mxu0 0
        %1036 = vmatmul.mubr.bf16.gmra.mrb[0].mxu0 %v657
        %v1037 = vpop.f32.mrb[0].mxu0
        %v1038 = vadd.f32 %v292, %v1037
        %v1039 = vpop.f32.mrb[0].mxu0
        %v1040 = vpop.f32.mrb[0].mxu0
        %v1041 = vadd.f32 %v292, %v1040
        %v1042 = vpop.f32.mrb[0].mxu0
        %1043 = vmatprep.mubr.bf16.mxu0 0
        %1044 = vmatmul.mubr.bf16.gmra.mrb[0].mxu0 %v660
        %v1045 = vpop.f32.mrb[0].mxu0
        %v1046 = vadd.f32 %v292, %v1045
        %v1047 = vpop.f32.mrb[0].mxu0
        %v1048 = vpop.f32.mrb[0].mxu0
        %v1049 = vadd.f32 %v292, %v1048
        %v1050 = vpop.f32.mrb[0].mxu0
        %1051 = vmatprep.mubr.bf16.mxu0 0
        %1052 = vmatmul.mubr.bf16.gmra.mrb[0].mxu0 %v663
        %v1053 = vpop.f32.mrb[0].mxu0
        %v1054 = vadd.f32 %v292, %v1053
        %v1055 = vpop.f32.mrb[0].mxu0
        %v1056 = vpop.f32.mrb[0].mxu0
        %v1057 = vadd.f32 %v292, %v1056
        %v1058 = vpop.f32.mrb[0].mxu0
        %1059 = vmatprep.mubr.bf16.mxu0 0
        %1060 = vmatmul.mubr.bf16.gmra.mrb[0].mxu0 %v666
        %v1061 = vpop.f32.mrb[0].mxu0
        %v1062 = vadd.f32 %v292, %v1061
        %v1063 = vpop.f32.mrb[0].mxu0
        %v1064 = vpop.f32.mrb[0].mxu0
        %v1065 = vadd.f32 %v292, %v1064
        %v1066 = vpop.f32.mrb[0].mxu0
        %1067 = vmatprep.mubr.bf16.mxu0 0
        %1068 = vmatmul.mubr.bf16.gmra.mrb[0].mxu0 %v669
        %v1069 = vpop.f32.mrb[0].mxu0
        %v1070 = vadd.f32 %v292, %v1069
        %v1071 = vpop.f32.mrb[0].mxu0
        %v1072 = vpop.f32.mrb[0].mxu0
        %v1073 = vadd.f32 %v292, %v1072
        %v1074 = vpop.f32.mrb[0].mxu0
        %1075 = vdwg.mxu0
        %1076 = vadd.xlane.f32.xlu0 %v710
        %v1077 = vpop.xlane.xlu0 %1076
        %1078 = vadd.xlane.f32.xlu0 %v713
        %v1079 = vpop.xlane.xlu0 %1078
        %1080 = vadd.xlane.f32.xlu0 %v718
        %v1081 = vpop.xlane.xlu0 %1080
        %1082 = vadd.xlane.f32.xlu0 %v721
        %v1083 = vpop.xlane.xlu0 %1082
        %1084 = vadd.xlane.f32.xlu0 %v726
        %v1085 = vpop.xlane.xlu0 %1084
        %1086 = vadd.xlane.f32.xlu0 %v729
        %v1087 = vpop.xlane.xlu0 %1086
        %1088 = vadd.xlane.f32.xlu0 %v734
        %v1089 = vpop.xlane.xlu0 %1088
        %1090 = vadd.xlane.f32.xlu0 %v737
        %v1091 = vpop.xlane.xlu0 %1090
        %1092 = vadd.xlane.f32.xlu0 %v742
        %v1093 = vpop.xlane.xlu0 %1092
        %1094 = vadd.xlane.f32.xlu0 %v745
        %v1095 = vpop.xlane.xlu0 %1094
        %1096 = vadd.xlane.f32.xlu0 %v750
        %v1097 = vpop.xlane.xlu0 %1096
        %1098 = vadd.xlane.f32.xlu0 %v753
        %v1099 = vpop.xlane.xlu0 %1098
        %1100 = vadd.xlane.f32.xlu0 %v758
        %v1101 = vpop.xlane.xlu0 %1100
        %1102 = vadd.xlane.f32.xlu0 %v761
        %v1103 = vpop.xlane.xlu0 %1102
        %1104 = vadd.xlane.f32.xlu0 %v766
        %v1105 = vpop.xlane.xlu0 %1104
        %1106 = vadd.xlane.f32.xlu0 %v769
        %v1107 = vpop.xlane.xlu0 %1106
        %1108 = vadd.xlane.f32.xlu0 %v774
        %v1109 = vpop.xlane.xlu0 %1108
        %1110 = vadd.xlane.f32.xlu0 %v777
        %v1111 = vpop.xlane.xlu0 %1110
        %1112 = vadd.xlane.f32.xlu0 %v782
        %v1113 = vpop.xlane.xlu0 %1112
        %1114 = vadd.xlane.f32.xlu0 %v785
        %v1115 = vpop.xlane.xlu0 %1114
        %1116 = vadd.xlane.f32.xlu0 %v790
        %v1117 = vpop.xlane.xlu0 %1116
        %1118 = vadd.xlane.f32.xlu0 %v793
        %v1119 = vpop.xlane.xlu0 %1118
        %1120 = vadd.xlane.f32.xlu0 %v798
        %v1121 = vpop.xlane.xlu0 %1120
        %1122 = vadd.xlane.f32.xlu0 %v801
        %v1123 = vpop.xlane.xlu0 %1122
        %1124 = vadd.xlane.f32.xlu0 %v806
        %v1125 = vpop.xlane.xlu0 %1124
        %1126 = vadd.xlane.f32.xlu0 %v809
        %v1127 = vpop.xlane.xlu0 %1126
        %1128 = vadd.xlane.f32.xlu0 %v814
        %v1129 = vpop.xlane.xlu0 %1128
        %1130 = vadd.xlane.f32.xlu0 %v817
        %v1131 = vpop.xlane.xlu0 %1130
        %1132 = vadd.xlane.f32.xlu0 %v822
        %v1133 = vpop.xlane.xlu0 %1132
        %1134 = vadd.xlane.f32.xlu0 %v825
        %v1135 = vpop.xlane.xlu0 %1134
        %1136 = vadd.xlane.f32.xlu0 %v830
        %v1137 = vpop.xlane.xlu0 %1136
        %1138 = vadd.xlane.f32.xlu0 %v833
        %v1139 = vpop.xlane.xlu0 %1138
        %1140 = vadd.xlane.f32.xlu0 %v838
        %v1141 = vpop.xlane.xlu0 %1140
        %1142 = vadd.xlane.f32.xlu0 %v841
        %v1143 = vpop.xlane.xlu0 %1142
        %1144 = vadd.xlane.f32.xlu0 %v846
        %v1145 = vpop.xlane.xlu0 %1144
        %1146 = vadd.xlane.f32.xlu0 %v849
        %v1147 = vpop.xlane.xlu0 %1146
        %1148 = vadd.xlane.f32.xlu0 %v854
        %v1149 = vpop.xlane.xlu0 %1148
        %1150 = vadd.xlane.f32.xlu0 %v857
        %v1151 = vpop.xlane.xlu0 %1150
        %1152 = vadd.xlane.f32.xlu0 %v862
        %v1153 = vpop.xlane.xlu0 %1152
        %1154 = vadd.xlane.f32.xlu0 %v865
        %v1155 = vpop.xlane.xlu0 %1154
        %1156 = vadd.xlane.f32.xlu0 %v870
        %v1157 = vpop.xlane.xlu0 %1156
        %1158 = vadd.xlane.f32.xlu0 %v873
        %v1159 = vpop.xlane.xlu0 %1158
        %1160 = vadd.xlane.f32.xlu0 %v878
        %v1161 = vpop.xlane.xlu0 %1160
        %1162 = vadd.xlane.f32.xlu0 %v881
        %v1163 = vpop.xlane.xlu0 %1162
        %1164 = vadd.xlane.f32.xlu0 %v886
        %v1165 = vpop.xlane.xlu0 %1164
        %1166 = vadd.xlane.f32.xlu0 %v889
        %v1167 = vpop.xlane.xlu0 %1166
        %1168 = vadd.xlane.f32.xlu0 %v894
        %v1169 = vpop.xlane.xlu0 %1168
        %1170 = vadd.xlane.f32.xlu0 %v897
        %v1171 = vpop.xlane.xlu0 %1170
        %1172 = vadd.xlane.f32.xlu0 %v902
        %v1173 = vpop.xlane.xlu0 %1172
        %1174 = vadd.xlane.f32.xlu0 %v905
        %v1175 = vpop.xlane.xlu0 %1174
        %1176 = vadd.xlane.f32.xlu0 %v910
        %v1177 = vpop.xlane.xlu0 %1176
        %1178 = vadd.xlane.f32.xlu0 %v913
        %v1179 = vpop.xlane.xlu0 %1178
        %1180 = vadd.xlane.f32.xlu0 %v918
        %v1181 = vpop.xlane.xlu0 %1180
        %1182 = vadd.xlane.f32.xlu0 %v921
        %v1183 = vpop.xlane.xlu0 %1182
        %1184 = vadd.xlane.f32.xlu0 %v926
        %v1185 = vpop.xlane.xlu0 %1184
        %1186 = vadd.xlane.f32.xlu0 %v929
        %v1187 = vpop.xlane.xlu0 %1186
        %1188 = vadd.xlane.f32.xlu0 %v934
        %v1189 = vpop.xlane.xlu0 %1188
        %1190 = vadd.xlane.f32.xlu0 %v937
        %v1191 = vpop.xlane.xlu0 %1190
        %1192 = vadd.xlane.f32.xlu0 %v942
        %v1193 = vpop.xlane.xlu0 %1192
        %1194 = vadd.xlane.f32.xlu0 %v945
        %v1195 = vpop.xlane.xlu0 %1194
        %1196 = vadd.xlane.f32.xlu0 %v950
        %v1197 = vpop.xlane.xlu0 %1196
        %1198 = vadd.xlane.f32.xlu0 %v953
        %v1199 = vpop.xlane.xlu0 %1198
        %1200 = vadd.xlane.f32.xlu0 %v958
        %v1201 = vpop.xlane.xlu0 %1200
        %1202 = vadd.xlane.f32.xlu0 %v961
        %v1203 = vpop.xlane.xlu0 %1202
        %1204 = vadd.xlane.f32.xlu0 %v966
        %v1205 = vpop.xlane.xlu0 %1204
        %1206 = vadd.xlane.f32.xlu0 %v969
        %v1207 = vpop.xlane.xlu0 %1206
        %1208 = vadd.xlane.f32.xlu0 %v974
        %v1209 = vpop.xlane.xlu0 %1208
        %1210 = vadd.xlane.f32.xlu0 %v977
        %v1211 = vpop.xlane.xlu0 %1210
        %1212 = vadd.xlane.f32.xlu0 %v982
        %v1213 = vpop.xlane.xlu0 %1212
        %1214 = vadd.xlane.f32.xlu0 %v985
        %v1215 = vpop.xlane.xlu0 %1214
        %1216 = vadd.xlane.f32.xlu0 %v990
        %v1217 = vpop.xlane.xlu0 %1216
        %1218 = vadd.xlane.f32.xlu0 %v993
        %v1219 = vpop.xlane.xlu0 %1218
        %1220 = vadd.xlane.f32.xlu0 %v998
        %v1221 = vpop.xlane.xlu0 %1220
        %1222 = vadd.xlane.f32.xlu0 %v1001
        %v1223 = vpop.xlane.xlu0 %1222
        %1224 = vadd.xlane.f32.xlu0 %v1006
        %v1225 = vpop.xlane.xlu0 %1224
        %1226 = vadd.xlane.f32.xlu0 %v1009
        %v1227 = vpop.xlane.xlu0 %1226
        %1228 = vadd.xlane.f32.xlu0 %v1014
        %v1229 = vpop.xlane.xlu0 %1228
        %1230 = vadd.xlane.f32.xlu0 %v1017
        %v1231 = vpop.xlane.xlu0 %1230
        %1232 = vadd.xlane.f32.xlu0 %v1022
        %v1233 = vpop.xlane.xlu0 %1232
        %1234 = vadd.xlane.f32.xlu0 %v1025
        %v1235 = vpop.xlane.xlu0 %1234
        %1236 = vadd.xlane.f32.xlu0 %v1030
        %v1237 = vpop.xlane.xlu0 %1236
        %1238 = vadd.xlane.f32.xlu0 %v1033
        %v1239 = vpop.xlane.xlu0 %1238
        %1240 = vadd.xlane.f32.xlu0 %v1038
        %v1241 = vpop.xlane.xlu0 %1240
        %1242 = vadd.xlane.f32.xlu0 %v1041
        %v1243 = vpop.xlane.xlu0 %1242
        %1244 = vadd.xlane.f32.xlu0 %v1046
        %v1245 = vpop.xlane.xlu0 %1244
        %1246 = vadd.xlane.f32.xlu0 %v1049
        %v1247 = vpop.xlane.xlu0 %1246
        %1248 = vadd.xlane.f32.xlu0 %v1054
        %v1249 = vpop.xlane.xlu0 %1248
        %1250 = vadd.xlane.f32.xlu0 %v1057
        %v1251 = vpop.xlane.xlu0 %1250
        %1252 = vadd.xlane.f32.xlu0 %v1062
        %v1253 = vpop.xlane.xlu0 %1252
        %1254 = vadd.xlane.f32.xlu0 %v1065
        %v1255 = vpop.xlane.xlu0 %1254
        %1256 = vadd.xlane.f32.xlu0 %v1070
        %v1257 = vpop.xlane.xlu0 %1256
        %1258 = vadd.xlane.f32.xlu0 %v1073
        %v1259 = vpop.xlane.xlu0 %1258
        %v1260 = vmul.f32 %v710, %v710
        %v1261 = vmul.f32 %v713, %v713
        %v1262 = vmul.f32 %v718, %v718
        %v1263 = vmul.f32 %v721, %v721
        %v1264 = vmul.f32 %v726, %v726
        %v1265 = vmul.f32 %v729, %v729
        %v1266 = vmul.f32 %v734, %v734
        %v1267 = vmul.f32 %v737, %v737
        %v1268 = vmul.f32 %v742, %v742
        %v1269 = vmul.f32 %v745, %v745
        %v1270 = vmul.f32 %v750, %v750
        %v1271 = vmul.f32 %v753, %v753
        %v1272 = vmul.f32 %v758, %v758
        %v1273 = vmul.f32 %v761, %v761
        %v1274 = vmul.f32 %v766, %v766
        %v1275 = vmul.f32 %v769, %v769
        %v1276 = vmul.f32 %v774, %v774
        %v1277 = vmul.f32 %v777, %v777
        %v1278 = vmul.f32 %v782, %v782
        %v1279 = vmul.f32 %v785, %v785
        %v1280 = vmul.f32 %v790, %v790
        %v1281 = vmul.f32 %v793, %v793
        %v1282 = vmul.f32 %v798, %v798
        %v1283 = vmul.f32 %v801, %v801
        %v1284 = vmul.f32 %v806, %v806
        %v1285 = vmul.f32 %v809, %v809
        %v1286 = vmul.f32 %v814, %v814
        %v1287 = vmul.f32 %v817, %v817
        %v1288 = vmul.f32 %v822, %v822
        %v1289 = vmul.f32 %v825, %v825
        %v1290 = vmul.f32 %v830, %v830
        %v1291 = vmul.f32 %v833, %v833
        %v1292 = vmul.f32 %v838, %v838
        %v1293 = vmul.f32 %v841, %v841
        %v1294 = vmul.f32 %v846, %v846
        %v1295 = vmul.f32 %v849, %v849
        %v1296 = vmul.f32 %v854, %v854
        %v1297 = vmul.f32 %v857, %v857
        %v1298 = vmul.f32 %v862, %v862
        %v1299 = vmul.f32 %v865, %v865
        %v1300 = vmul.f32 %v870, %v870
        %v1301 = vmul.f32 %v873, %v873
        %v1302 = vmul.f32 %v878, %v878
        %v1303 = vmul.f32 %v881, %v881
        %v1304 = vmul.f32 %v886, %v886
        %v1305 = vmul.f32 %v889, %v889
        %v1306 = vmul.f32 %v894, %v894
        %v1307 = vmul.f32 %v897, %v897
        %v1308 = vmul.f32 %v902, %v902
        %v1309 = vmul.f32 %v905, %v905
        %v1310 = vmul.f32 %v910, %v910
        %v1311 = vmul.f32 %v913, %v913
        %v1312 = vmul.f32 %v918, %v918
        %v1313 = vmul.f32 %v921, %v921
        %v1314 = vmul.f32 %v926, %v926
        %v1315 = vmul.f32 %v929, %v929
        %v1316 = vmul.f32 %v934, %v934
        %v1317 = vmul.f32 %v937, %v937
        %v1318 = vmul.f32 %v942, %v942
        %v1319 = vmul.f32 %v945, %v945
        %v1320 = vmul.f32 %v950, %v950
        %v1321 = vmul.f32 %v953, %v953
        %v1322 = vmul.f32 %v958, %v958
        %v1323 = vmul.f32 %v961, %v961
        %v1324 = vmul.f32 %v966, %v966
        %v1325 = vmul.f32 %v969, %v969
        %v1326 = vmul.f32 %v974, %v974
        %v1327 = vmul.f32 %v977, %v977
        %v1328 = vmul.f32 %v982, %v982
        %v1329 = vmul.f32 %v985, %v985
        %v1330 = vmul.f32 %v990, %v990
        %v1331 = vmul.f32 %v993, %v993
        %v1332 = vmul.f32 %v998, %v998
        %v1333 = vmul.f32 %v1001, %v1001
        %v1334 = vmul.f32 %v1006, %v1006
        %v1335 = vmul.f32 %v1009, %v1009
        %v1336 = vmul.f32 %v1014, %v1014
        %v1337 = vmul.f32 %v1017, %v1017
        %v1338 = vmul.f32 %v1022, %v1022
        %v1339 = vmul.f32 %v1025, %v1025
        %v1340 = vmul.f32 %v1030, %v1030
        %v1341 = vmul.f32 %v1033, %v1033
        %v1342 = vmul.f32 %v1038, %v1038
        %v1343 = vmul.f32 %v1041, %v1041
        %v1344 = vmul.f32 %v1046, %v1046
        %v1345 = vmul.f32 %v1049, %v1049
        %v1346 = vmul.f32 %v1054, %v1054
        %v1347 = vmul.f32 %v1057, %v1057
        %v1348 = vmul.f32 %v1062, %v1062
        %v1349 = vmul.f32 %v1065, %v1065
        %v1350 = vmul.f32 %v1070, %v1070
        %v1351 = vmul.f32 %v1073, %v1073
        %1352 = vadd.xlane.f32.xlu0 %v1260
        %v1353 = vpop.xlane.xlu0 %1352
        %1354 = vadd.xlane.f32.xlu0 %v1261
        %v1355 = vpop.xlane.xlu0 %1354
        %1356 = vadd.xlane.f32.xlu0 %v1262
        %v1357 = vpop.xlane.xlu0 %1356
        %1358 = vadd.xlane.f32.xlu0 %v1263
        %v1359 = vpop.xlane.xlu0 %1358
        %1360 = vadd.xlane.f32.xlu0 %v1264
        %v1361 = vpop.xlane.xlu0 %1360
        %1362 = vadd.xlane.f32.xlu0 %v1265
        %v1363 = vpop.xlane.xlu0 %1362
        %1364 = vadd.xlane.f32.xlu0 %v1266
        %v1365 = vpop.xlane.xlu0 %1364
        %1366 = vadd.xlane.f32.xlu0 %v1267
        %v1367 = vpop.xlane.xlu0 %1366
        %1368 = vadd.xlane.f32.xlu0 %v1268
        %v1369 = vpop.xlane.xlu0 %1368
        %1370 = vadd.xlane.f32.xlu0 %v1269
        %v1371 = vpop.xlane.xlu0 %1370
        %1372 = vadd.xlane.f32.xlu0 %v1270
        %v1373 = vpop.xlane.xlu0 %1372
        %1374 = vadd.xlane.f32.xlu0 %v1271
        %v1375 = vpop.xlane.xlu0 %1374
        %1376 = vadd.xlane.f32.xlu0 %v1272
        %v1377 = vpop.xlane.xlu0 %1376
        %1378 = vadd.xlane.f32.xlu0 %v1273
        %v1379 = vpop.xlane.xlu0 %1378
        %1380 = vadd.xlane.f32.xlu0 %v1274
        %v1381 = vpop.xlane.xlu0 %1380
        %1382 = vadd.xlane.f32.xlu0 %v1275
        %v1383 = vpop.xlane.xlu0 %1382
        %1384 = vadd.xlane.f32.xlu0 %v1276
        %v1385 = vpop.xlane.xlu0 %1384
        %1386 = vadd.xlane.f32.xlu0 %v1277
        %v1387 = vpop.xlane.xlu0 %1386
        %1388 = vadd.xlane.f32.xlu0 %v1278
        %v1389 = vpop.xlane.xlu0 %1388
        %1390 = vadd.xlane.f32.xlu0 %v1279
        %v1391 = vpop.xlane.xlu0 %1390
        %1392 = vadd.xlane.f32.xlu0 %v1280
        %v1393 = vpop.xlane.xlu0 %1392
        %1394 = vadd.xlane.f32.xlu0 %v1281
        %v1395 = vpop.xlane.xlu0 %1394
        %1396 = vadd.xlane.f32.xlu0 %v1282
        %v1397 = vpop.xlane.xlu0 %1396
        %1398 = vadd.xlane.f32.xlu0 %v1283
        %v1399 = vpop.xlane.xlu0 %1398
        %1400 = vadd.xlane.f32.xlu0 %v1284
        %v1401 = vpop.xlane.xlu0 %1400
        %1402 = vadd.xlane.f32.xlu0 %v1285
        %v1403 = vpop.xlane.xlu0 %1402
        %1404 = vadd.xlane.f32.xlu0 %v1286
        %v1405 = vpop.xlane.xlu0 %1404
        %1406 = vadd.xlane.f32.xlu0 %v1287
        %v1407 = vpop.xlane.xlu0 %1406
        %1408 = vadd.xlane.f32.xlu0 %v1288
        %v1409 = vpop.xlane.xlu0 %1408
        %1410 = vadd.xlane.f32.xlu0 %v1289
        %v1411 = vpop.xlane.xlu0 %1410
        %1412 = vadd.xlane.f32.xlu0 %v1290
        %v1413 = vpop.xlane.xlu0 %1412
        %1414 = vadd.xlane.f32.xlu0 %v1291
        %v1415 = vpop.xlane.xlu0 %1414
        %1416 = vadd.xlane.f32.xlu0 %v1292
        %v1417 = vpop.xlane.xlu0 %1416
        %1418 = vadd.xlane.f32.xlu0 %v1293
        %v1419 = vpop.xlane.xlu0 %1418
        %1420 = vadd.xlane.f32.xlu0 %v1294
        %v1421 = vpop.xlane.xlu0 %1420
        %1422 = vadd.xlane.f32.xlu0 %v1295
        %v1423 = vpop.xlane.xlu0 %1422
        %1424 = vadd.xlane.f32.xlu0 %v1296
        %v1425 = vpop.xlane.xlu0 %1424
        %1426 = vadd.xlane.f32.xlu0 %v1297
        %v1427 = vpop.xlane.xlu0 %1426
        %1428 = vadd.xlane.f32.xlu0 %v1298
        %v1429 = vpop.xlane.xlu0 %1428
        %1430 = vadd.xlane.f32.xlu0 %v1299
        %v1431 = vpop.xlane.xlu0 %1430
        %1432 = vadd.xlane.f32.xlu0 %v1300
        %v1433 = vpop.xlane.xlu0 %1432
        %1434 = vadd.xlane.f32.xlu0 %v1301
        %v1435 = vpop.xlane.xlu0 %1434
        %1436 = vadd.xlane.f32.xlu0 %v1302
        %v1437 = vpop.xlane.xlu0 %1436
        %1438 = vadd.xlane.f32.xlu0 %v1303
        %v1439 = vpop.xlane.xlu0 %1438
        %1440 = vadd.xlane.f32.xlu0 %v1304
        %v1441 = vpop.xlane.xlu0 %1440
        %1442 = vadd.xlane.f32.xlu0 %v1305
        %v1443 = vpop.xlane.xlu0 %1442
        %1444 = vadd.xlane.f32.xlu0 %v1306
        %v1445 = vpop.xlane.xlu0 %1444
        %1446 = vadd.xlane.f32.xlu0 %v1307
        %v1447 = vpop.xlane.xlu0 %1446
        %1448 = vadd.xlane.f32.xlu0 %v1308
        %v1449 = vpop.xlane.xlu0 %1448
        %1450 = vadd.xlane.f32.xlu0 %v1309
        %v1451 = vpop.xlane.xlu0 %1450
        %1452 = vadd.xlane.f32.xlu0 %v1310
        %v1453 = vpop.xlane.xlu0 %1452
        %1454 = vadd.xlane.f32.xlu0 %v1311
        %v1455 = vpop.xlane.xlu0 %1454
        %1456 = vadd.xlane.f32.xlu0 %v1312
        %v1457 = vpop.xlane.xlu0 %1456
        %1458 = vadd.xlane.f32.xlu0 %v1313
        %v1459 = vpop.xlane.xlu0 %1458
        %1460 = vadd.xlane.f32.xlu0 %v1314
        %v1461 = vpop.xlane.xlu0 %1460
        %1462 = vadd.xlane.f32.xlu0 %v1315
        %v1463 = vpop.xlane.xlu0 %1462
        %1464 = vadd.xlane.f32.xlu0 %v1316
        %v1465 = vpop.xlane.xlu0 %1464
        %1466 = vadd.xlane.f32.xlu0 %v1317
        %v1467 = vpop.xlane.xlu0 %1466
        %1468 = vadd.xlane.f32.xlu0 %v1318
        %v1469 = vpop.xlane.xlu0 %1468
        %1470 = vadd.xlane.f32.xlu0 %v1319
        %v1471 = vpop.xlane.xlu0 %1470
        %1472 = vadd.xlane.f32.xlu0 %v1320
        %v1473 = vpop.xlane.xlu0 %1472
        %1474 = vadd.xlane.f32.xlu0 %v1321
        %v1475 = vpop.xlane.xlu0 %1474
        %1476 = vadd.xlane.f32.xlu0 %v1322
        %v1477 = vpop.xlane.xlu0 %1476
        %1478 = vadd.xlane.f32.xlu0 %v1323
        %v1479 = vpop.xlane.xlu0 %1478
        %1480 = vadd.xlane.f32.xlu0 %v1324
        %v1481 = vpop.xlane.xlu0 %1480
        %1482 = vadd.xlane.f32.xlu0 %v1325
        %v1483 = vpop.xlane.xlu0 %1482
        %1484 = vadd.xlane.f32.xlu0 %v1326
        %v1485 = vpop.xlane.xlu0 %1484
        %1486 = vadd.xlane.f32.xlu0 %v1327
        %v1487 = vpop.xlane.xlu0 %1486
        %1488 = vadd.xlane.f32.xlu0 %v1328
        %v1489 = vpop.xlane.xlu0 %1488
        %1490 = vadd.xlane.f32.xlu0 %v1329
        %v1491 = vpop.xlane.xlu0 %1490
        %1492 = vadd.xlane.f32.xlu0 %v1330
        %v1493 = vpop.xlane.xlu0 %1492
        %1494 = vadd.xlane.f32.xlu0 %v1331
        %v1495 = vpop.xlane.xlu0 %1494
        %1496 = vadd.xlane.f32.xlu0 %v1332
        %v1497 = vpop.xlane.xlu0 %1496
        %1498 = vadd.xlane.f32.xlu0 %v1333
        %v1499 = vpop.xlane.xlu0 %1498
        %1500 = vadd.xlane.f32.xlu0 %v1334
        %v1501 = vpop.xlane.xlu0 %1500
        %1502 = vadd.xlane.f32.xlu0 %v1335
        %v1503 = vpop.xlane.xlu0 %1502
        %1504 = vadd.xlane.f32.xlu0 %v1336
        %v1505 = vpop.xlane.xlu0 %1504
        %1506 = vadd.xlane.f32.xlu0 %v1337
        %v1507 = vpop.xlane.xlu0 %1506
        %1508 = vadd.xlane.f32.xlu0 %v1338
        %v1509 = vpop.xlane.xlu0 %1508
        %1510 = vadd.xlane.f32.xlu0 %v1339
        %v1511 = vpop.xlane.xlu0 %1510
        %1512 = vadd.xlane.f32.xlu0 %v1340
        %v1513 = vpop.xlane.xlu0 %1512
        %1514 = vadd.xlane.f32.xlu0 %v1341
        %v1515 = vpop.xlane.xlu0 %1514
        %1516 = vadd.xlane.f32.xlu0 %v1342
        %v1517 = vpop.xlane.xlu0 %1516
        %1518 = vadd.xlane.f32.xlu0 %v1343
        %v1519 = vpop.xlane.xlu0 %1518
        %1520 = vadd.xlane.f32.xlu0 %v1344
        %v1521 = vpop.xlane.xlu0 %1520
        %1522 = vadd.xlane.f32.xlu0 %v1345
        %v1523 = vpop.xlane.xlu0 %1522
        %1524 = vadd.xlane.f32.xlu0 %v1346
        %v1525 = vpop.xlane.xlu0 %1524
        %1526 = vadd.xlane.f32.xlu0 %v1347
        %v1527 = vpop.xlane.xlu0 %1526
        %1528 = vadd.xlane.f32.xlu0 %v1348
        %v1529 = vpop.xlane.xlu0 %1528
        %1530 = vadd.xlane.f32.xlu0 %v1349
        %v1531 = vpop.xlane.xlu0 %1530
        %1532 = vadd.xlane.f32.xlu0 %v1350
        %v1533 = vpop.xlane.xlu0 %1532
        %1534 = vadd.xlane.f32.xlu0 %v1351
        %v1535 = vpop.xlane.xlu0 %1534
        %v1536 = vmul.f32 %v1077, 0.0078125
        %v1537 = vmul.f32 %v1079, 0.0078125
        %v1538 = vmul.f32 %v1081, 0.0078125
        %v1539 = vmul.f32 %v1083, 0.0078125
        %v1540 = vmul.f32 %v1085, 0.0078125
        %v1541 = vmul.f32 %v1087, 0.0078125
        %v1542 = vmul.f32 %v1089, 0.0078125
        %v1543 = vmul.f32 %v1091, 0.0078125
        %v1544 = vmul.f32 %v1093, 0.0078125
        %v1545 = vmul.f32 %v1095, 0.0078125
        %v1546 = vmul.f32 %v1097, 0.0078125
        %v1547 = vmul.f32 %v1099, 0.0078125
        %v1548 = vmul.f32 %v1101, 0.0078125
        %v1549 = vmul.f32 %v1103, 0.0078125
        %v1550 = vmul.f32 %v1105, 0.0078125
        %v1551 = vmul.f32 %v1107, 0.0078125
        %v1552 = vmul.f32 %v1109, 0.0078125
        %v1553 = vmul.f32 %v1111, 0.0078125
        %v1554 = vmul.f32 %v1113, 0.0078125
        %v1555 = vmul.f32 %v1115, 0.0078125
        %v1556 = vmul.f32 %v1117, 0.0078125
        %v1557 = vmul.f32 %v1119, 0.0078125
        %v1558 = vmul.f32 %v1121, 0.0078125
        %v1559 = vmul.f32 %v1123, 0.0078125
        %v1560 = vmul.f32 %v1125, 0.0078125
        %v1561 = vmul.f32 %v1127, 0.0078125
        %v1562 = vmul.f32 %v1129, 0.0078125
        %v1563 = vmul.f32 %v1131, 0.0078125
        %v1564 = vmul.f32 %v1133, 0.0078125
        %v1565 = vmul.f32 %v1135, 0.0078125
        %v1566 = vmul.f32 %v1137, 0.0078125
        %v1567 = vmul.f32 %v1139, 0.0078125
        %v1568 = vmul.f32 %v1141, 0.0078125
        %v1569 = vmul.f32 %v1143, 0.0078125
        %v1570 = vmul.f32 %v1145, 0.0078125
        %v1571 = vmul.f32 %v1147, 0.0078125
        %v1572 = vmul.f32 %v1149, 0.0078125
        %v1573 = vmul.f32 %v1151, 0.0078125
        %v1574 = vmul.f32 %v1153, 0.0078125
        %v1575 = vmul.f32 %v1155, 0.0078125
        %v1576 = vmul.f32 %v1157, 0.0078125
        %v1577 = vmul.f32 %v1159, 0.0078125
        %v1578 = vmul.f32 %v1161, 0.0078125
        %v1579 = vmul.f32 %v1163, 0.0078125
        %v1580 = vmul.f32 %v1165, 0.0078125
        %v1581 = vmul.f32 %v1167, 0.0078125
        %v1582 = vmul.f32 %v1169, 0.0078125
        %v1583 = vmul.f32 %v1171, 0.0078125
        %v1584 = vmul.f32 %v1173, 0.0078125
        %v1585 = vmul.f32 %v1175, 0.0078125
        %v1586 = vmul.f32 %v1177, 0.0078125
        %v1587 = vmul.f32 %v1179, 0.0078125
        %v1588 = vmul.f32 %v1181, 0.0078125
        %v1589 = vmul.f32 %v1183, 0.0078125
        %v1590 = vmul.f32 %v1185, 0.0078125
        %v1591 = vmul.f32 %v1187, 0.0078125
        %v1592 = vmul.f32 %v1189, 0.0078125
        %v1593 = vmul.f32 %v1191, 0.0078125
        %v1594 = vmul.f32 %v1193, 0.0078125
        %v1595 = vmul.f32 %v1195, 0.0078125
        %v1596 = vmul.f32 %v1197, 0.0078125
        %v1597 = vmul.f32 %v1199, 0.0078125
        %v1598 = vmul.f32 %v1201, 0.0078125
        %v1599 = vmul.f32 %v1203, 0.0078125
        %v1600 = vmul.f32 %v1205, 0.0078125
        %v1601 = vmul.f32 %v1207, 0.0078125
        %v1602 = vmul.f32 %v1209, 0.0078125
        %v1603 = vmul.f32 %v1211, 0.0078125
        %v1604 = vmul.f32 %v1213, 0.0078125
        %v1605 = vmul.f32 %v1215, 0.0078125
        %v1606 = vmul.f32 %v1217, 0.0078125
        %v1607 = vmul.f32 %v1219, 0.0078125
        %v1608 = vmul.f32 %v1221, 0.0078125
        %v1609 = vmul.f32 %v1223, 0.0078125
        %v1610 = vmul.f32 %v1225, 0.0078125
        %v1611 = vmul.f32 %v1227, 0.0078125
        %v1612 = vmul.f32 %v1229, 0.0078125
        %v1613 = vmul.f32 %v1231, 0.0078125
        %v1614 = vmul.f32 %v1233, 0.0078125
        %v1615 = vmul.f32 %v1235, 0.0078125
        %v1616 = vmul.f32 %v1237, 0.0078125
        %v1617 = vmul.f32 %v1239, 0.0078125
        %v1618 = vmul.f32 %v1241, 0.0078125
        %v1619 = vmul.f32 %v1243, 0.0078125
        %v1620 = vmul.f32 %v1245, 0.0078125
        %v1621 = vmul.f32 %v1247, 0.0078125
        %v1622 = vmul.f32 %v1249, 0.0078125
        %v1623 = vmul.f32 %v1251, 0.0078125
        %v1624 = vmul.f32 %v1253, 0.0078125
        %v1625 = vmul.f32 %v1255, 0.0078125
        %v1626 = vmul.f32 %v1257, 0.0078125
        %v1627 = vmul.f32 %v1259, 0.0078125
        %v1628 = vmul.f32 %v1353, 0.0078125
        %v1629 = vmul.f32 %v1355, 0.0078125
        %v1630 = vmul.f32 %v1357, 0.0078125
        %v1631 = vmul.f32 %v1359, 0.0078125
        %v1632 = vmul.f32 %v1361, 0.0078125
        %v1633 = vmul.f32 %v1363, 0.0078125
        %v1634 = vmul.f32 %v1365, 0.0078125
        %v1635 = vmul.f32 %v1367, 0.0078125
        %v1636 = vmul.f32 %v1369, 0.0078125
        %v1637 = vmul.f32 %v1371, 0.0078125
        %v1638 = vmul.f32 %v1373, 0.0078125
        %v1639 = vmul.f32 %v1375, 0.0078125
        %v1640 = vmul.f32 %v1377, 0.0078125
        %v1641 = vmul.f32 %v1379, 0.0078125
        %v1642 = vmul.f32 %v1381, 0.0078125
        %v1643 = vmul.f32 %v1383, 0.0078125
        %v1644 = vmul.f32 %v1385, 0.0078125
        %v1645 = vmul.f32 %v1387, 0.0078125
        %v1646 = vmul.f32 %v1389, 0.0078125
        %v1647 = vmul.f32 %v1391, 0.0078125
        %v1648 = vmul.f32 %v1393, 0.0078125
        %v1649 = vmul.f32 %v1395, 0.0078125
        %v1650 = vmul.f32 %v1397, 0.0078125
        %v1651 = vmul.f32 %v1399, 0.0078125
        %v1652 = vmul.f32 %v1401, 0.0078125
        %v1653 = vmul.f32 %v1403, 0.0078125
        %v1654 = vmul.f32 %v1405, 0.0078125
        %v1655 = vmul.f32 %v1407, 0.0078125
        %v1656 = vmul.f32 %v1409, 0.0078125
        %v1657 = vmul.f32 %v1411, 0.0078125
        %v1658 = vmul.f32 %v1413, 0.0078125
        %v1659 = vmul.f32 %v1415, 0.0078125
        %v1660 = vmul.f32 %v1417, 0.0078125
        %v1661 = vmul.f32 %v1419, 0.0078125
        %v1662 = vmul.f32 %v1421, 0.0078125
        %v1663 = vmul.f32 %v1423, 0.0078125
        %v1664 = vmul.f32 %v1425, 0.0078125
        %v1665 = vmul.f32 %v1427, 0.0078125
        %v1666 = vmul.f32 %v1429, 0.0078125
        %v1667 = vmul.f32 %v1431, 0.0078125
        %v1668 = vmul.f32 %v1433, 0.0078125
        %v1669 = vmul.f32 %v1435, 0.0078125
        %v1670 = vmul.f32 %v1437, 0.0078125
        %v1671 = vmul.f32 %v1439, 0.0078125
        %v1672 = vmul.f32 %v1441, 0.0078125
        %v1673 = vmul.f32 %v1443, 0.0078125
        %v1674 = vmul.f32 %v1445, 0.0078125
        %v1675 = vmul.f32 %v1447, 0.0078125
        %v1676 = vmul.f32 %v1449, 0.0078125
        %v1677 = vmul.f32 %v1451, 0.0078125
        %v1678 = vmul.f32 %v1453, 0.0078125
        %v1679 = vmul.f32 %v1455, 0.0078125
        %v1680 = vmul.f32 %v1457, 0.0078125
        %v1681 = vmul.f32 %v1459, 0.0078125
        %v1682 = vmul.f32 %v1461, 0.0078125
        %v1683 = vmul.f32 %v1463, 0.0078125
        %v1684 = vmul.f32 %v1465, 0.0078125
        %v1685 = vmul.f32 %v1467, 0.0078125
        %v1686 = vmul.f32 %v1469, 0.0078125
        %v1687 = vmul.f32 %v1471, 0.0078125
        %v1688 = vmul.f32 %v1473, 0.0078125
        %v1689 = vmul.f32 %v1475, 0.0078125
        %v1690 = vmul.f32 %v1477, 0.0078125
        %v1691 = vmul.f32 %v1479, 0.0078125
        %v1692 = vmul.f32 %v1481, 0.0078125
        %v1693 = vmul.f32 %v1483, 0.0078125
        %v1694 = vmul.f32 %v1485, 0.0078125
        %v1695 = vmul.f32 %v1487, 0.0078125
        %v1696 = vmul.f32 %v1489, 0.0078125
        %v1697 = vmul.f32 %v1491, 0.0078125
        %v1698 = vmul.f32 %v1493, 0.0078125
        %v1699 = vmul.f32 %v1495, 0.0078125
        %v1700 = vmul.f32 %v1497, 0.0078125
        %v1701 = vmul.f32 %v1499, 0.0078125
        %v1702 = vmul.f32 %v1501, 0.0078125
        %v1703 = vmul.f32 %v1503, 0.0078125
        %v1704 = vmul.f32 %v1505, 0.0078125
        %v1705 = vmul.f32 %v1507, 0.0078125
        %v1706 = vmul.f32 %v1509, 0.0078125
        %v1707 = vmul.f32 %v1511, 0.0078125
        %v1708 = vmul.f32 %v1513, 0.0078125
        %v1709 = vmul.f32 %v1515, 0.0078125
        %v1710 = vmul.f32 %v1517, 0.0078125
        %v1711 = vmul.f32 %v1519, 0.0078125
        %v1712 = vmul.f32 %v1521, 0.0078125
        %v1713 = vmul.f32 %v1523, 0.0078125
        %v1714 = vmul.f32 %v1525, 0.0078125
        %v1715 = vmul.f32 %v1527, 0.0078125
        %v1716 = vmul.f32 %v1529, 0.0078125
        %v1717 = vmul.f32 %v1531, 0.0078125
        %v1718 = vmul.f32 %v1533, 0.0078125
        %v1719 = vmul.f32 %v1535, 0.0078125
        %v1720 = vmul.f32 %v1536, %v1536
        %v1721 = vmul.f32 %v1537, %v1537
        %v1722 = vmul.f32 %v1538, %v1538
        %v1723 = vmul.f32 %v1539, %v1539
        %v1724 = vmul.f32 %v1540, %v1540
        %v1725 = vmul.f32 %v1541, %v1541
        %v1726 = vmul.f32 %v1542, %v1542
        %v1727 = vmul.f32 %v1543, %v1543
        %v1728 = vmul.f32 %v1544, %v1544
        %v1729 = vmul.f32 %v1545, %v1545
        %v1730 = vmul.f32 %v1546, %v1546
        %v1731 = vmul.f32 %v1547, %v1547
        %v1732 = vmul.f32 %v1548, %v1548
        %v1733 = vmul.f32 %v1549, %v1549
        %v1734 = vmul.f32 %v1550, %v1550
        %v1735 = vmul.f32 %v1551, %v1551
        %v1736 = vmul.f32 %v1552, %v1552
        %v1737 = vmul.f32 %v1553, %v1553
        %v1738 = vmul.f32 %v1554, %v1554
        %v1739 = vmul.f32 %v1555, %v1555
        %v1740 = vmul.f32 %v1556, %v1556
        %v1741 = vmul.f32 %v1557, %v1557
        %v1742 = vmul.f32 %v1558, %v1558
        %v1743 = vmul.f32 %v1559, %v1559
        %v1744 = vmul.f32 %v1560, %v1560
        %v1745 = vmul.f32 %v1561, %v1561
        %v1746 = vmul.f32 %v1562, %v1562
        %v1747 = vmul.f32 %v1563, %v1563
        %v1748 = vmul.f32 %v1564, %v1564
        %v1749 = vmul.f32 %v1565, %v1565
        %v1750 = vmul.f32 %v1566, %v1566
        %v1751 = vmul.f32 %v1567, %v1567
        %v1752 = vmul.f32 %v1568, %v1568
        %v1753 = vmul.f32 %v1569, %v1569
        %v1754 = vmul.f32 %v1570, %v1570
        %v1755 = vmul.f32 %v1571, %v1571
        %v1756 = vmul.f32 %v1572, %v1572
        %v1757 = vmul.f32 %v1573, %v1573
        %v1758 = vmul.f32 %v1574, %v1574
        %v1759 = vmul.f32 %v1575, %v1575
        %v1760 = vmul.f32 %v1576, %v1576
        %v1761 = vmul.f32 %v1577, %v1577
        %v1762 = vmul.f32 %v1578, %v1578
        %v1763 = vmul.f32 %v1579, %v1579
        %v1764 = vmul.f32 %v1580, %v1580
        %v1765 = vmul.f32 %v1581, %v1581
        %v1766 = vmul.f32 %v1582, %v1582
        %v1767 = vmul.f32 %v1583, %v1583
        %v1768 = vmul.f32 %v1584, %v1584
        %v1769 = vmul.f32 %v1585, %v1585
        %v1770 = vmul.f32 %v1586, %v1586
        %v1771 = vmul.f32 %v1587, %v1587
        %v1772 = vmul.f32 %v1588, %v1588
        %v1773 = vmul.f32 %v1589, %v1589
        %v1774 = vmul.f32 %v1590, %v1590
        %v1775 = vmul.f32 %v1591, %v1591
        %v1776 = vmul.f32 %v1592, %v1592
        %v1777 = vmul.f32 %v1593, %v1593
        %v1778 = vmul.f32 %v1594, %v1594
        %v1779 = vmul.f32 %v1595, %v1595
        %v1780 = vmul.f32 %v1596, %v1596
        %v1781 = vmul.f32 %v1597, %v1597
        %v1782 = vmul.f32 %v1598, %v1598
        %v1783 = vmul.f32 %v1599, %v1599
        %v1784 = vmul.f32 %v1600, %v1600
        %v1785 = vmul.f32 %v1601, %v1601
        %v1786 = vmul.f32 %v1602, %v1602
        %v1787 = vmul.f32 %v1603, %v1603
        %v1788 = vmul.f32 %v1604, %v1604
        %v1789 = vmul.f32 %v1605, %v1605
        %v1790 = vmul.f32 %v1606, %v1606
        %v1791 = vmul.f32 %v1607, %v1607
        %v1792 = vmul.f32 %v1608, %v1608
        %v1793 = vmul.f32 %v1609, %v1609
        %v1794 = vmul.f32 %v1610, %v1610
        %v1795 = vmul.f32 %v1611, %v1611
        %v1796 = vmul.f32 %v1612, %v1612
        %v1797 = vmul.f32 %v1613, %v1613
        %v1798 = vmul.f32 %v1614, %v1614
        %v1799 = vmul.f32 %v1615, %v1615
        %v1800 = vmul.f32 %v1616, %v1616
        %v1801 = vmul.f32 %v1617, %v1617
        %v1802 = vmul.f32 %v1618, %v1618
        %v1803 = vmul.f32 %v1619, %v1619
        %v1804 = vmul.f32 %v1620, %v1620
        %v1805 = vmul.f32 %v1621, %v1621
        %v1806 = vmul.f32 %v1622, %v1622
        %v1807 = vmul.f32 %v1623, %v1623
        %v1808 = vmul.f32 %v1624, %v1624
        %v1809 = vmul.f32 %v1625, %v1625
        %v1810 = vmul.f32 %v1626, %v1626
        %v1811 = vmul.f32 %v1627, %v1627
        %v1812 = vsub.f32 %v1628, %v1720
        %v1813 = vsub.f32 %v1629, %v1721
        %v1814 = vsub.f32 %v1630, %v1722
        %v1815 = vsub.f32 %v1631, %v1723
        %v1816 = vsub.f32 %v1632, %v1724
        %v1817 = vsub.f32 %v1633, %v1725
        %v1818 = vsub.f32 %v1634, %v1726
        %v1819 = vsub.f32 %v1635, %v1727
        %v1820 = vsub.f32 %v1636, %v1728
        %v1821 = vsub.f32 %v1637, %v1729
        %v1822 = vsub.f32 %v1638, %v1730
        %v1823 = vsub.f32 %v1639, %v1731
        %v1824 = vsub.f32 %v1640, %v1732
        %v1825 = vsub.f32 %v1641, %v1733
        %v1826 = vsub.f32 %v1642, %v1734
        %v1827 = vsub.f32 %v1643, %v1735
        %v1828 = vsub.f32 %v1644, %v1736
        %v1829 = vsub.f32 %v1645, %v1737
        %v1830 = vsub.f32 %v1646, %v1738
        %v1831 = vsub.f32 %v1647, %v1739
        %v1832 = vsub.f32 %v1648, %v1740
        %v1833 = vsub.f32 %v1649, %v1741
        %v1834 = vsub.f32 %v1650, %v1742
        %v1835 = vsub.f32 %v1651, %v1743
        %v1836 = vsub.f32 %v1652, %v1744
        %v1837 = vsub.f32 %v1653, %v1745
        %v1838 = vsub.f32 %v1654, %v1746
        %v1839 = vsub.f32 %v1655, %v1747
        %v1840 = vsub.f32 %v1656, %v1748
        %v1841 = vsub.f32 %v1657, %v1749
        %v1842 = vsub.f32 %v1658, %v1750
        %v1843 = vsub.f32 %v1659, %v1751
        %v1844 = vsub.f32 %v1660, %v1752
        %v1845 = vsub.f32 %v1661, %v1753
        %v1846 = vsub.f32 %v1662, %v1754
        %v1847 = vsub.f32 %v1663, %v1755
        %v1848 = vsub.f32 %v1664, %v1756
        %v1849 = vsub.f32 %v1665, %v1757
        %v1850 = vsub.f32 %v1666, %v1758
        %v1851 = vsub.f32 %v1667, %v1759
        %v1852 = vsub.f32 %v1668, %v1760
        %v1853 = vsub.f32 %v1669, %v1761
        %v1854 = vsub.f32 %v1670, %v1762
        %v1855 = vsub.f32 %v1671, %v1763
        %v1856 = vsub.f32 %v1672, %v1764
        %v1857 = vsub.f32 %v1673, %v1765
        %v1858 = vsub.f32 %v1674, %v1766
        %v1859 = vsub.f32 %v1675, %v1767
        %v1860 = vsub.f32 %v1676, %v1768
        %v1861 = vsub.f32 %v1677, %v1769
        %v1862 = vsub.f32 %v1678, %v1770
        %v1863 = vsub.f32 %v1679, %v1771
        %v1864 = vsub.f32 %v1680, %v1772
        %v1865 = vsub.f32 %v1681, %v1773
        %v1866 = vsub.f32 %v1682, %v1774
        %v1867 = vsub.f32 %v1683, %v1775
        %v1868 = vsub.f32 %v1684, %v1776
        %v1869 = vsub.f32 %v1685, %v1777
        %v1870 = vsub.f32 %v1686, %v1778
        %v1871 = vsub.f32 %v1687, %v1779
        %v1872 = vsub.f32 %v1688, %v1780
        %v1873 = vsub.f32 %v1689, %v1781
        %v1874 = vsub.f32 %v1690, %v1782
        %v1875 = vsub.f32 %v1691, %v1783
        %v1876 = vsub.f32 %v1692, %v1784
        %v1877 = vsub.f32 %v1693, %v1785
        %v1878 = vsub.f32 %v1694, %v1786
        %v1879 = vsub.f32 %v1695, %v1787
        %v1880 = vsub.f32 %v1696, %v1788
        %v1881 = vsub.f32 %v1697, %v1789
        %v1882 = vsub.f32 %v1698, %v1790
        %v1883 = vsub.f32 %v1699, %v1791
        %v1884 = vsub.f32 %v1700, %v1792
        %v1885 = vsub.f32 %v1701, %v1793
        %v1886 = vsub.f32 %v1702, %v1794
        %v1887 = vsub.f32 %v1703, %v1795
        %v1888 = vsub.f32 %v1704, %v1796
        %v1889 = vsub.f32 %v1705, %v1797
        %v1890 = vsub.f32 %v1706, %v1798
        %v1891 = vsub.f32 %v1707, %v1799
        %v1892 = vsub.f32 %v1708, %v1800
        %v1893 = vsub.f32 %v1709, %v1801
        %v1894 = vsub.f32 %v1710, %v1802
        %v1895 = vsub.f32 %v1711, %v1803
        %v1896 = vsub.f32 %v1712, %v1804
        %v1897 = vsub.f32 %v1713, %v1805
        %v1898 = vsub.f32 %v1714, %v1806
        %v1899 = vsub.f32 %v1715, %v1807
        %v1900 = vsub.f32 %v1716, %v1808
        %v1901 = vsub.f32 %v1717, %v1809
        %v1902 = vsub.f32 %v1718, %v1810
        %v1903 = vsub.f32 %v1719, %v1811
        %v1904 = vmax.f32 %v1812, 0.0
        %v1905 = vmax.f32 %v1813, 0.0
        %v1906 = vmax.f32 %v1814, 0.0
        %v1907 = vmax.f32 %v1815, 0.0
        %v1908 = vmax.f32 %v1816, 0.0
        %v1909 = vmax.f32 %v1817, 0.0
        %v1910 = vmax.f32 %v1818, 0.0
        %v1911 = vmax.f32 %v1819, 0.0
        %v1912 = vmax.f32 %v1820, 0.0
        %v1913 = vmax.f32 %v1821, 0.0
        %v1914 = vmax.f32 %v1822, 0.0
        %v1915 = vmax.f32 %v1823, 0.0
        %v1916 = vmax.f32 %v1824, 0.0
        %v1917 = vmax.f32 %v1825, 0.0
        %v1918 = vmax.f32 %v1826, 0.0
        %v1919 = vmax.f32 %v1827, 0.0
        %v1920 = vmax.f32 %v1828, 0.0
        %v1921 = vmax.f32 %v1829, 0.0
        %v1922 = vmax.f32 %v1830, 0.0
        %v1923 = vmax.f32 %v1831, 0.0
        %v1924 = vmax.f32 %v1832, 0.0
        %v1925 = vmax.f32 %v1833, 0.0
        %v1926 = vmax.f32 %v1834, 0.0
        %v1927 = vmax.f32 %v1835, 0.0
        %v1928 = vmax.f32 %v1836, 0.0
        %v1929 = vmax.f32 %v1837, 0.0
        %v1930 = vmax.f32 %v1838, 0.0
        %v1931 = vmax.f32 %v1839, 0.0
        %v1932 = vmax.f32 %v1840, 0.0
        %v1933 = vmax.f32 %v1841, 0.0
        %v1934 = vmax.f32 %v1842, 0.0
        %v1935 = vmax.f32 %v1843, 0.0
        %v1936 = vmax.f32 %v1844, 0.0
        %v1937 = vmax.f32 %v1845, 0.0
        %v1938 = vmax.f32 %v1846, 0.0
        %v1939 = vmax.f32 %v1847, 0.0
        %v1940 = vmax.f32 %v1848, 0.0
        %v1941 = vmax.f32 %v1849, 0.0
        %v1942 = vmax.f32 %v1850, 0.0
        %v1943 = vmax.f32 %v1851, 0.0
        %v1944 = vmax.f32 %v1852, 0.0
        %v1945 = vmax.f32 %v1853, 0.0
        %v1946 = vmax.f32 %v1854, 0.0
        %v1947 = vmax.f32 %v1855, 0.0
        %v1948 = vmax.f32 %v1856, 0.0
        %v1949 = vmax.f32 %v1857, 0.0
        %v1950 = vmax.f32 %v1858, 0.0
        %v1951 = vmax.f32 %v1859, 0.0
        %v1952 = vmax.f32 %v1860, 0.0
        %v1953 = vmax.f32 %v1861, 0.0
        %v1954 = vmax.f32 %v1862, 0.0
        %v1955 = vmax.f32 %v1863, 0.0
        %v1956 = vmax.f32 %v1864, 0.0
        %v1957 = vmax.f32 %v1865, 0.0
        %v1958 = vmax.f32 %v1866, 0.0
        %v1959 = vmax.f32 %v1867, 0.0
        %v1960 = vmax.f32 %v1868, 0.0
        %v1961 = vmax.f32 %v1869, 0.0
        %v1962 = vmax.f32 %v1870, 0.0
        %v1963 = vmax.f32 %v1871, 0.0
        %v1964 = vmax.f32 %v1872, 0.0
        %v1965 = vmax.f32 %v1873, 0.0
        %v1966 = vmax.f32 %v1874, 0.0
        %v1967 = vmax.f32 %v1875, 0.0
        %v1968 = vmax.f32 %v1876, 0.0
        %v1969 = vmax.f32 %v1877, 0.0
        %v1970 = vmax.f32 %v1878, 0.0
        %v1971 = vmax.f32 %v1879, 0.0
        %v1972 = vmax.f32 %v1880, 0.0
        %v1973 = vmax.f32 %v1881, 0.0
        %v1974 = vmax.f32 %v1882, 0.0
        %v1975 = vmax.f32 %v1883, 0.0
        %v1976 = vmax.f32 %v1884, 0.0
        %v1977 = vmax.f32 %v1885, 0.0
        %v1978 = vmax.f32 %v1886, 0.0
        %v1979 = vmax.f32 %v1887, 0.0
        %v1980 = vmax.f32 %v1888, 0.0
        %v1981 = vmax.f32 %v1889, 0.0
        %v1982 = vmax.f32 %v1890, 0.0
        %v1983 = vmax.f32 %v1891, 0.0
        %v1984 = vmax.f32 %v1892, 0.0
        %v1985 = vmax.f32 %v1893, 0.0
        %v1986 = vmax.f32 %v1894, 0.0
        %v1987 = vmax.f32 %v1895, 0.0
        %v1988 = vmax.f32 %v1896, 0.0
        %v1989 = vmax.f32 %v1897, 0.0
        %v1990 = vmax.f32 %v1898, 0.0
        %v1991 = vmax.f32 %v1899, 0.0
        %v1992 = vmax.f32 %v1900, 0.0
        %v1993 = vmax.f32 %v1901, 0.0
        %v1994 = vmax.f32 %v1902, 0.0
        %v1995 = vmax.f32 %v1903, 0.0
        %v1996 = vadd.f32 %v1904, 1e-05
        %v1997 = vadd.f32 %v1905, 1e-05
        %v1998 = vadd.f32 %v1906, 1e-05
        %v1999 = vadd.f32 %v1907, 1e-05
        %v2000 = vadd.f32 %v1908, 1e-05
        %v2001 = vadd.f32 %v1909, 1e-05
        %v2002 = vadd.f32 %v1910, 1e-05
        %v2003 = vadd.f32 %v1911, 1e-05
        %v2004 = vadd.f32 %v1912, 1e-05
        %v2005 = vadd.f32 %v1913, 1e-05
        %v2006 = vadd.f32 %v1914, 1e-05
        %v2007 = vadd.f32 %v1915, 1e-05
        %v2008 = vadd.f32 %v1916, 1e-05
        %v2009 = vadd.f32 %v1917, 1e-05
        %v2010 = vadd.f32 %v1918, 1e-05
        %v2011 = vadd.f32 %v1919, 1e-05
        %v2012 = vadd.f32 %v1920, 1e-05
        %v2013 = vadd.f32 %v1921, 1e-05
        %v2014 = vadd.f32 %v1922, 1e-05
        %v2015 = vadd.f32 %v1923, 1e-05
        %v2016 = vadd.f32 %v1924, 1e-05
        %v2017 = vadd.f32 %v1925, 1e-05
        %v2018 = vadd.f32 %v1926, 1e-05
        %v2019 = vadd.f32 %v1927, 1e-05
        %v2020 = vadd.f32 %v1928, 1e-05
        %v2021 = vadd.f32 %v1929, 1e-05
        %v2022 = vadd.f32 %v1930, 1e-05
        %v2023 = vadd.f32 %v1931, 1e-05
        %v2024 = vadd.f32 %v1932, 1e-05
        %v2025 = vadd.f32 %v1933, 1e-05
        %v2026 = vadd.f32 %v1934, 1e-05
        %v2027 = vadd.f32 %v1935, 1e-05
        %v2028 = vadd.f32 %v1936, 1e-05
        %v2029 = vadd.f32 %v1937, 1e-05
        %v2030 = vadd.f32 %v1938, 1e-05
        %v2031 = vadd.f32 %v1939, 1e-05
        %v2032 = vadd.f32 %v1940, 1e-05
        %v2033 = vadd.f32 %v1941, 1e-05
        %v2034 = vadd.f32 %v1942, 1e-05
        %v2035 = vadd.f32 %v1943, 1e-05
        %v2036 = vadd.f32 %v1944, 1e-05
        %v2037 = vadd.f32 %v1945, 1e-05
        %v2038 = vadd.f32 %v1946, 1e-05
        %v2039 = vadd.f32 %v1947, 1e-05
        %v2040 = vadd.f32 %v1948, 1e-05
        %v2041 = vadd.f32 %v1949, 1e-05
        %v2042 = vadd.f32 %v1950, 1e-05
        %v2043 = vadd.f32 %v1951, 1e-05
        %v2044 = vadd.f32 %v1952, 1e-05
        %v2045 = vadd.f32 %v1953, 1e-05
        %v2046 = vadd.f32 %v1954, 1e-05
        %v2047 = vadd.f32 %v1955, 1e-05
        %v2048 = vadd.f32 %v1956, 1e-05
        %v2049 = vadd.f32 %v1957, 1e-05
        %v2050 = vadd.f32 %v1958, 1e-05
        %v2051 = vadd.f32 %v1959, 1e-05
        %v2052 = vadd.f32 %v1960, 1e-05
        %v2053 = vadd.f32 %v1961, 1e-05
        %v2054 = vadd.f32 %v1962, 1e-05
        %v2055 = vadd.f32 %v1963, 1e-05
        %v2056 = vadd.f32 %v1964, 1e-05
        %v2057 = vadd.f32 %v1965, 1e-05
        %v2058 = vadd.f32 %v1966, 1e-05
        %v2059 = vadd.f32 %v1967, 1e-05
        %v2060 = vadd.f32 %v1968, 1e-05
        %v2061 = vadd.f32 %v1969, 1e-05
        %v2062 = vadd.f32 %v1970, 1e-05
        %v2063 = vadd.f32 %v1971, 1e-05
        %v2064 = vadd.f32 %v1972, 1e-05
        %v2065 = vadd.f32 %v1973, 1e-05
        %v2066 = vadd.f32 %v1974, 1e-05
        %v2067 = vadd.f32 %v1975, 1e-05
        %v2068 = vadd.f32 %v1976, 1e-05
        %v2069 = vadd.f32 %v1977, 1e-05
        %v2070 = vadd.f32 %v1978, 1e-05
        %v2071 = vadd.f32 %v1979, 1e-05
        %v2072 = vadd.f32 %v1980, 1e-05
        %v2073 = vadd.f32 %v1981, 1e-05
        %v2074 = vadd.f32 %v1982, 1e-05
        %v2075 = vadd.f32 %v1983, 1e-05
        %v2076 = vadd.f32 %v1984, 1e-05
        %v2077 = vadd.f32 %v1985, 1e-05
        %v2078 = vadd.f32 %v1986, 1e-05
        %v2079 = vadd.f32 %v1987, 1e-05
        %v2080 = vadd.f32 %v1988, 1e-05
        %v2081 = vadd.f32 %v1989, 1e-05
        %v2082 = vadd.f32 %v1990, 1e-05
        %v2083 = vadd.f32 %v1991, 1e-05
        %v2084 = vadd.f32 %v1992, 1e-05
        %v2085 = vadd.f32 %v1993, 1e-05
        %v2086 = vadd.f32 %v1994, 1e-05
        %v2087 = vadd.f32 %v1995, 1e-05
        %v2088 = vrsqrt.pop %v1996
        %v2089 = vrsqrt.pop %v1997
        %v2090 = vrsqrt.pop %v1998
        %v2091 = vrsqrt.pop %v1999
        %v2092 = vrsqrt.pop %v2000
        %v2093 = vrsqrt.pop %v2001
        %v2094 = vrsqrt.pop %v2002
        %v2095 = vrsqrt.pop %v2003
        %v2096 = vrsqrt.pop %v2004
        %v2097 = vrsqrt.pop %v2005
        %v2098 = vrsqrt.pop %v2006
        %v2099 = vrsqrt.pop %v2007
        %v2100 = vrsqrt.pop %v2008
        %v2101 = vrsqrt.pop %v2009
        %v2102 = vrsqrt.pop %v2010
        %v2103 = vrsqrt.pop %v2011
        %v2104 = vrsqrt.pop %v2012
        %v2105 = vrsqrt.pop %v2013
        %v2106 = vrsqrt.pop %v2014
        %v2107 = vrsqrt.pop %v2015
        %v2108 = vrsqrt.pop %v2016
        %v2109 = vrsqrt.pop %v2017
        %v2110 = vrsqrt.pop %v2018
        %v2111 = vrsqrt.pop %v2019
        %v2112 = vrsqrt.pop %v2020
        %v2113 = vrsqrt.pop %v2021
        %v2114 = vrsqrt.pop %v2022
        %v2115 = vrsqrt.pop %v2023
        %v2116 = vrsqrt.pop %v2024
        %v2117 = vrsqrt.pop %v2025
        %v2118 = vrsqrt.pop %v2026
        %v2119 = vrsqrt.pop %v2027
        %v2120 = vrsqrt.pop %v2028
        %v2121 = vrsqrt.pop %v2029
        %v2122 = vrsqrt.pop %v2030
        %v2123 = vrsqrt.pop %v2031
        %v2124 = vrsqrt.pop %v2032
        %v2125 = vrsqrt.pop %v2033
        %v2126 = vrsqrt.pop %v2034
        %v2127 = vrsqrt.pop %v2035
        %v2128 = vrsqrt.pop %v2036
        %v2129 = vrsqrt.pop %v2037
        %v2130 = vrsqrt.pop %v2038
        %v2131 = vrsqrt.pop %v2039
        %v2132 = vrsqrt.pop %v2040
        %v2133 = vrsqrt.pop %v2041
        %v2134 = vrsqrt.pop %v2042
        %v2135 = vrsqrt.pop %v2043
        %v2136 = vrsqrt.pop %v2044
        %v2137 = vrsqrt.pop %v2045
        %v2138 = vrsqrt.pop %v2046
        %v2139 = vrsqrt.pop %v2047
        %v2140 = vrsqrt.pop %v2048
        %v2141 = vrsqrt.pop %v2049
        %v2142 = vrsqrt.pop %v2050
        %v2143 = vrsqrt.pop %v2051
        %v2144 = vrsqrt.pop %v2052
        %v2145 = vrsqrt.pop %v2053
        %v2146 = vrsqrt.pop %v2054
        %v2147 = vrsqrt.pop %v2055
        %v2148 = vrsqrt.pop %v2056
        %v2149 = vrsqrt.pop %v2057
        %v2150 = vrsqrt.pop %v2058
        %v2151 = vrsqrt.pop %v2059
        %v2152 = vrsqrt.pop %v2060
        %v2153 = vrsqrt.pop %v2061
        %v2154 = vrsqrt.pop %v2062
        %v2155 = vrsqrt.pop %v2063
        %v2156 = vrsqrt.pop %v2064
        %v2157 = vrsqrt.pop %v2065
        %v2158 = vrsqrt.pop %v2066
        %v2159 = vrsqrt.pop %v2067
        %v2160 = vrsqrt.pop %v2068
        %v2161 = vrsqrt.pop %v2069
        %v2162 = vrsqrt.pop %v2070
        %v2163 = vrsqrt.pop %v2071
        %v2164 = vrsqrt.pop %v2072
        %v2165 = vrsqrt.pop %v2073
        %v2166 = vrsqrt.pop %v2074
        %v2167 = vrsqrt.pop %v2075
        %v2168 = vrsqrt.pop %v2076
        %v2169 = vrsqrt.pop %v2077
        %v2170 = vrsqrt.pop %v2078
        %v2171 = vrsqrt.pop %v2079
        %v2172 = vrsqrt.pop %v2080
        %v2173 = vrsqrt.pop %v2081
        %v2174 = vrsqrt.pop %v2082
        %v2175 = vrsqrt.pop %v2083
        %v2176 = vrsqrt.pop %v2084
        %v2177 = vrsqrt.pop %v2085
        %v2178 = vrsqrt.pop %v2086
        %v2179 = vrsqrt.pop %v2087
        %v2180 = vsub.f32 %v710, %v1536
        %v2181 = vsub.f32 %v713, %v1537
        %v2182 = vsub.f32 %v718, %v1538
        %v2183 = vsub.f32 %v721, %v1539
        %v2184 = vsub.f32 %v726, %v1540
        %v2185 = vsub.f32 %v729, %v1541
        %v2186 = vsub.f32 %v734, %v1542
        %v2187 = vsub.f32 %v737, %v1543
        %v2188 = vsub.f32 %v742, %v1544
        %v2189 = vsub.f32 %v745, %v1545
        %v2190 = vsub.f32 %v750, %v1546
        %v2191 = vsub.f32 %v753, %v1547
        %v2192 = vsub.f32 %v758, %v1548
        %v2193 = vsub.f32 %v761, %v1549
        %v2194 = vsub.f32 %v766, %v1550
        %v2195 = vsub.f32 %v769, %v1551
        %v2196 = vsub.f32 %v774, %v1552
        %v2197 = vsub.f32 %v777, %v1553
        %v2198 = vsub.f32 %v782, %v1554
        %v2199 = vsub.f32 %v785, %v1555
        %v2200 = vsub.f32 %v790, %v1556
        %v2201 = vsub.f32 %v793, %v1557
        %v2202 = vsub.f32 %v798, %v1558
        %v2203 = vsub.f32 %v801, %v1559
        %v2204 = vsub.f32 %v806, %v1560
        %v2205 = vsub.f32 %v809, %v1561
        %v2206 = vsub.f32 %v814, %v1562
        %v2207 = vsub.f32 %v817, %v1563
        %v2208 = vsub.f32 %v822, %v1564
        %v2209 = vsub.f32 %v825, %v1565
        %v2210 = vsub.f32 %v830, %v1566
        %v2211 = vsub.f32 %v833, %v1567
        %v2212 = vsub.f32 %v838, %v1568
        %v2213 = vsub.f32 %v841, %v1569
        %v2214 = vsub.f32 %v846, %v1570
        %v2215 = vsub.f32 %v849, %v1571
        %v2216 = vsub.f32 %v854, %v1572
        %v2217 = vsub.f32 %v857, %v1573
        %v2218 = vsub.f32 %v862, %v1574
        %v2219 = vsub.f32 %v865, %v1575
        %v2220 = vsub.f32 %v870, %v1576
        %v2221 = vsub.f32 %v873, %v1577
        %v2222 = vsub.f32 %v878, %v1578
        %v2223 = vsub.f32 %v881, %v1579
        %v2224 = vsub.f32 %v886, %v1580
        %v2225 = vsub.f32 %v889, %v1581
        %v2226 = vsub.f32 %v894, %v1582
        %v2227 = vsub.f32 %v897, %v1583
        %v2228 = vsub.f32 %v902, %v1584
        %v2229 = vsub.f32 %v905, %v1585
        %v2230 = vsub.f32 %v910, %v1586
        %v2231 = vsub.f32 %v913, %v1587
        %v2232 = vsub.f32 %v918, %v1588
        %v2233 = vsub.f32 %v921, %v1589
        %v2234 = vsub.f32 %v926, %v1590
        %v2235 = vsub.f32 %v929, %v1591
        %v2236 = vsub.f32 %v934, %v1592
        %v2237 = vsub.f32 %v937, %v1593
        %v2238 = vsub.f32 %v942, %v1594
        %v2239 = vsub.f32 %v945, %v1595
        %v2240 = vsub.f32 %v950, %v1596
        %v2241 = vsub.f32 %v953, %v1597
        %v2242 = vsub.f32 %v958, %v1598
        %v2243 = vsub.f32 %v961, %v1599
        %v2244 = vsub.f32 %v966, %v1600
        %v2245 = vsub.f32 %v969, %v1601
        %v2246 = vsub.f32 %v974, %v1602
        %v2247 = vsub.f32 %v977, %v1603
        %v2248 = vsub.f32 %v982, %v1604
        %v2249 = vsub.f32 %v985, %v1605
        %v2250 = vsub.f32 %v990, %v1606
        %v2251 = vsub.f32 %v993, %v1607
        %v2252 = vsub.f32 %v998, %v1608
        %v2253 = vsub.f32 %v1001, %v1609
        %v2254 = vsub.f32 %v1006, %v1610
        %v2255 = vsub.f32 %v1009, %v1611
        %v2256 = vsub.f32 %v1014, %v1612
        %v2257 = vsub.f32 %v1017, %v1613
        %v2258 = vsub.f32 %v1022, %v1614
        %v2259 = vsub.f32 %v1025, %v1615
        %v2260 = vsub.f32 %v1030, %v1616
        %v2261 = vsub.f32 %v1033, %v1617
        %v2262 = vsub.f32 %v1038, %v1618
        %v2263 = vsub.f32 %v1041, %v1619
        %v2264 = vsub.f32 %v1046, %v1620
        %v2265 = vsub.f32 %v1049, %v1621
        %v2266 = vsub.f32 %v1054, %v1622
        %v2267 = vsub.f32 %v1057, %v1623
        %v2268 = vsub.f32 %v1062, %v1624
        %v2269 = vsub.f32 %v1065, %v1625
        %v2270 = vsub.f32 %v1070, %v1626
        %v2271 = vsub.f32 %v1073, %v1627
        %v2272 = vmul.f32 %v2180, %v2088
        %v2273 = vmul.f32 %v2181, %v2089
        %v2274 = vmul.f32 %v2182, %v2090
        %v2275 = vmul.f32 %v2183, %v2091
        %v2276 = vmul.f32 %v2184, %v2092
        %v2277 = vmul.f32 %v2185, %v2093
        %v2278 = vmul.f32 %v2186, %v2094
        %v2279 = vmul.f32 %v2187, %v2095
        %v2280 = vmul.f32 %v2188, %v2096
        %v2281 = vmul.f32 %v2189, %v2097
        %v2282 = vmul.f32 %v2190, %v2098
        %v2283 = vmul.f32 %v2191, %v2099
        %v2284 = vmul.f32 %v2192, %v2100
        %v2285 = vmul.f32 %v2193, %v2101
        %v2286 = vmul.f32 %v2194, %v2102
        %v2287 = vmul.f32 %v2195, %v2103
        %v2288 = vmul.f32 %v2196, %v2104
        %v2289 = vmul.f32 %v2197, %v2105
        %v2290 = vmul.f32 %v2198, %v2106
        %v2291 = vmul.f32 %v2199, %v2107
        %v2292 = vmul.f32 %v2200, %v2108
        %v2293 = vmul.f32 %v2201, %v2109
        %v2294 = vmul.f32 %v2202, %v2110
        %v2295 = vmul.f32 %v2203, %v2111
        %v2296 = vmul.f32 %v2204, %v2112
        %v2297 = vmul.f32 %v2205, %v2113
        %v2298 = vmul.f32 %v2206, %v2114
        %v2299 = vmul.f32 %v2207, %v2115
        %v2300 = vmul.f32 %v2208, %v2116
        %v2301 = vmul.f32 %v2209, %v2117
        %v2302 = vmul.f32 %v2210, %v2118
        %v2303 = vmul.f32 %v2211, %v2119
        %v2304 = vmul.f32 %v2212, %v2120
        %v2305 = vmul.f32 %v2213, %v2121
        %v2306 = vmul.f32 %v2214, %v2122
        %v2307 = vmul.f32 %v2215, %v2123
        %v2308 = vmul.f32 %v2216, %v2124
        %v2309 = vmul.f32 %v2217, %v2125
        %v2310 = vmul.f32 %v2218, %v2126
        %v2311 = vmul.f32 %v2219, %v2127
        %v2312 = vmul.f32 %v2220, %v2128
        %v2313 = vmul.f32 %v2221, %v2129
        %v2314 = vmul.f32 %v2222, %v2130
        %v2315 = vmul.f32 %v2223, %v2131
        %v2316 = vmul.f32 %v2224, %v2132
        %v2317 = vmul.f32 %v2225, %v2133
        %v2318 = vmul.f32 %v2226, %v2134
        %v2319 = vmul.f32 %v2227, %v2135
        %v2320 = vmul.f32 %v2228, %v2136
        %v2321 = vmul.f32 %v2229, %v2137
        %v2322 = vmul.f32 %v2230, %v2138
        %v2323 = vmul.f32 %v2231, %v2139
        %v2324 = vmul.f32 %v2232, %v2140
        %v2325 = vmul.f32 %v2233, %v2141
        %v2326 = vmul.f32 %v2234, %v2142
        %v2327 = vmul.f32 %v2235, %v2143
        %v2328 = vmul.f32 %v2236, %v2144
        %v2329 = vmul.f32 %v2237, %v2145
        %v2330 = vmul.f32 %v2238, %v2146
        %v2331 = vmul.f32 %v2239, %v2147
        %v2332 = vmul.f32 %v2240, %v2148
        %v2333 = vmul.f32 %v2241, %v2149
        %v2334 = vmul.f32 %v2242, %v2150
        %v2335 = vmul.f32 %v2243, %v2151
        %v2336 = vmul.f32 %v2244, %v2152
        %v2337 = vmul.f32 %v2245, %v2153
        %v2338 = vmul.f32 %v2246, %v2154
        %v2339 = vmul.f32 %v2247, %v2155
        %v2340 = vmul.f32 %v2248, %v2156
        %v2341 = vmul.f32 %v2249, %v2157
        %v2342 = vmul.f32 %v2250, %v2158
        %v2343 = vmul.f32 %v2251, %v2159
        %v2344 = vmul.f32 %v2252, %v2160
        %v2345 = vmul.f32 %v2253, %v2161
        %v2346 = vmul.f32 %v2254, %v2162
        %v2347 = vmul.f32 %v2255, %v2163
        %v2348 = vmul.f32 %v2256, %v2164
        %v2349 = vmul.f32 %v2257, %v2165
        %v2350 = vmul.f32 %v2258, %v2166
        %v2351 = vmul.f32 %v2259, %v2167
        %v2352 = vmul.f32 %v2260, %v2168
        %v2353 = vmul.f32 %v2261, %v2169
        %v2354 = vmul.f32 %v2262, %v2170
        %v2355 = vmul.f32 %v2263, %v2171
        %v2356 = vmul.f32 %v2264, %v2172
        %v2357 = vmul.f32 %v2265, %v2173
        %v2358 = vmul.f32 %v2266, %v2174
        %v2359 = vmul.f32 %v2267, %v2175
        %v2360 = vmul.f32 %v2268, %v2176
        %v2361 = vmul.f32 %v2269, %v2177
        %v2362 = vmul.f32 %v2270, %v2178
        %v2363 = vmul.f32 %v2271, %v2179
        %v2364 = vld [vmem:[%s2 + $0x1] sm:$0x1]
        %v2365 = vlaneseq
        %v2366 = vshrl.u32 %v2365, 7
        %v2367 = vsub.s32 0, %v2366
        %v2368 = vrot.slane %v2364, %v2367
        %v2369 = vmul.f32 %v2272, %v2368
        %v2370 = vmul.f32 %v2273, %v2368
        %v2371 = vmul.f32 %v2274, %v2368
        %v2372 = vmul.f32 %v2275, %v2368
        %v2373 = vmul.f32 %v2276, %v2368
        %v2374 = vmul.f32 %v2277, %v2368
        %v2375 = vmul.f32 %v2278, %v2368
        %v2376 = vmul.f32 %v2279, %v2368
        %v2377 = vmul.f32 %v2280, %v2368
        %v2378 = vmul.f32 %v2281, %v2368
        %v2379 = vmul.f32 %v2282, %v2368
        %v2380 = vmul.f32 %v2283, %v2368
        %v2381 = vmul.f32 %v2284, %v2368
        %v2382 = vmul.f32 %v2285, %v2368
        %v2383 = vmul.f32 %v2286, %v2368
        %v2384 = vmul.f32 %v2287, %v2368
        %v2385 = vmul.f32 %v2288, %v2368
        %v2386 = vmul.f32 %v2289, %v2368
        %v2387 = vmul.f32 %v2290, %v2368
        %v2388 = vmul.f32 %v2291, %v2368
        %v2389 = vmul.f32 %v2292, %v2368
        %v2390 = vmul.f32 %v2293, %v2368
        %v2391 = vmul.f32 %v2294, %v2368
        %v2392 = vmul.f32 %v2295, %v2368
        %v2393 = vmul.f32 %v2296, %v2368
        %v2394 = vmul.f32 %v2297, %v2368
        %v2395 = vmul.f32 %v2298, %v2368
        %v2396 = vmul.f32 %v2299, %v2368
        %v2397 = vmul.f32 %v2300, %v2368
        %v2398 = vmul.f32 %v2301, %v2368
        %v2399 = vmul.f32 %v2302, %v2368
        %v2400 = vmul.f32 %v2303, %v2368
        %v2401 = vmul.f32 %v2304, %v2368
        %v2402 = vmul.f32 %v2305, %v2368
        %v2403 = vmul.f32 %v2306, %v2368
        %v2404 = vmul.f32 %v2307, %v2368
        %v2405 = vmul.f32 %v2308, %v2368
        %v2406 = vmul.f32 %v2309, %v2368
        %v2407 = vmul.f32 %v2310, %v2368
        %v2408 = vmul.f32 %v2311, %v2368
        %v2409 = vmul.f32 %v2312, %v2368
        %v2410 = vmul.f32 %v2313, %v2368
        %v2411 = vmul.f32 %v2314, %v2368
        %v2412 = vmul.f32 %v2315, %v2368
        %v2413 = vmul.f32 %v2316, %v2368
        %v2414 = vmul.f32 %v2317, %v2368
        %v2415 = vmul.f32 %v2318, %v2368
        %v2416 = vmul.f32 %v2319, %v2368
        %v2417 = vmul.f32 %v2320, %v2368
        %v2418 = vmul.f32 %v2321, %v2368
        %v2419 = vmul.f32 %v2322, %v2368
        %v2420 = vmul.f32 %v2323, %v2368
        %v2421 = vmul.f32 %v2324, %v2368
        %v2422 = vmul.f32 %v2325, %v2368
        %v2423 = vmul.f32 %v2326, %v2368
        %v2424 = vmul.f32 %v2327, %v2368
        %v2425 = vmul.f32 %v2328, %v2368
        %v2426 = vmul.f32 %v2329, %v2368
        %v2427 = vmul.f32 %v2330, %v2368
        %v2428 = vmul.f32 %v2331, %v2368
        %v2429 = vmul.f32 %v2332, %v2368
        %v2430 = vmul.f32 %v2333, %v2368
        %v2431 = vmul.f32 %v2334, %v2368
        %v2432 = vmul.f32 %v2335, %v2368
        %v2433 = vmul.f32 %v2336, %v2368
        %v2434 = vmul.f32 %v2337, %v2368
        %v2435 = vmul.f32 %v2338, %v2368
        %v2436 = vmul.f32 %v2339, %v2368
        %v2437 = vmul.f32 %v2340, %v2368
        %v2438 = vmul.f32 %v2341, %v2368
        %v2439 = vmul.f32 %v2342, %v2368
        %v2440 = vmul.f32 %v2343, %v2368
        %v2441 = vmul.f32 %v2344, %v2368
        %v2442 = vmul.f32 %v2345, %v2368
        %v2443 = vmul.f32 %v2346, %v2368
        %v2444 = vmul.f32 %v2347, %v2368
        %v2445 = vmul.f32 %v2348, %v2368
        %v2446 = vmul.f32 %v2349, %v2368
        %v2447 = vmul.f32 %v2350, %v2368
        %v2448 = vmul.f32 %v2351, %v2368
        %v2449 = vmul.f32 %v2352, %v2368
        %v2450 = vmul.f32 %v2353, %v2368
        %v2451 = vmul.f32 %v2354, %v2368
        %v2452 = vmul.f32 %v2355, %v2368
        %v2453 = vmul.f32 %v2356, %v2368
        %v2454 = vmul.f32 %v2357, %v2368
        %v2455 = vmul.f32 %v2358, %v2368
        %v2456 = vmul.f32 %v2359, %v2368
        %v2457 = vmul.f32 %v2360, %v2368
        %v2458 = vmul.f32 %v2361, %v2368
        %v2459 = vmul.f32 %v2362, %v2368
        %v2460 = vmul.f32 %v2363, %v2368
        %v2461 = vld [vmem:[%s2 + $0x2] sm:$0x1]
        %v2462 = vlaneseq
        %v2463 = vshrl.u32 %v2462, 7
        %v2464 = vsub.s32 0, %v2463
        %v2465 = vrot.slane %v2461, %v2464
        %v2466 = vadd.f32 %v2369, %v2465
        %v2467 = vadd.f32 %v2370, %v2465
        %v2468 = vadd.f32 %v2371, %v2465
        %v2469 = vadd.f32 %v2372, %v2465
        %v2470 = vadd.f32 %v2373, %v2465
        %v2471 = vadd.f32 %v2374, %v2465
        %v2472 = vadd.f32 %v2375, %v2465
        %v2473 = vadd.f32 %v2376, %v2465
        %v2474 = vadd.f32 %v2377, %v2465
        %v2475 = vadd.f32 %v2378, %v2465
        %v2476 = vadd.f32 %v2379, %v2465
        %v2477 = vadd.f32 %v2380, %v2465
        %v2478 = vadd.f32 %v2381, %v2465
        %v2479 = vadd.f32 %v2382, %v2465
        %v2480 = vadd.f32 %v2383, %v2465
        %v2481 = vadd.f32 %v2384, %v2465
        %v2482 = vadd.f32 %v2385, %v2465
        %v2483 = vadd.f32 %v2386, %v2465
        %v2484 = vadd.f32 %v2387, %v2465
        %v2485 = vadd.f32 %v2388, %v2465
        %v2486 = vadd.f32 %v2389, %v2465
        %v2487 = vadd.f32 %v2390, %v2465
        %v2488 = vadd.f32 %v2391, %v2465
        %v2489 = vadd.f32 %v2392, %v2465
        %v2490 = vadd.f32 %v2393, %v2465
        %v2491 = vadd.f32 %v2394, %v2465
        %v2492 = vadd.f32 %v2395, %v2465
        %v2493 = vadd.f32 %v2396, %v2465
        %v2494 = vadd.f32 %v2397, %v2465
        %v2495 = vadd.f32 %v2398, %v2465
        %v2496 = vadd.f32 %v2399, %v2465
        %v2497 = vadd.f32 %v2400, %v2465
        %v2498 = vadd.f32 %v2401, %v2465
        %v2499 = vadd.f32 %v2402, %v2465
        %v2500 = vadd.f32 %v2403, %v2465
        %v2501 = vadd.f32 %v2404, %v2465
        %v2502 = vadd.f32 %v2405, %v2465
        %v2503 = vadd.f32 %v2406, %v2465
        %v2504 = vadd.f32 %v2407, %v2465
        %v2505 = vadd.f32 %v2408, %v2465
        %v2506 = vadd.f32 %v2409, %v2465
        %v2507 = vadd.f32 %v2410, %v2465
        %v2508 = vadd.f32 %v2411, %v2465
        %v2509 = vadd.f32 %v2412, %v2465
        %v2510 = vadd.f32 %v2413, %v2465
        %v2511 = vadd.f32 %v2414, %v2465
        %v2512 = vadd.f32 %v2415, %v2465
        %v2513 = vadd.f32 %v2416, %v2465
        %v2514 = vadd.f32 %v2417, %v2465
        %v2515 = vadd.f32 %v2418, %v2465
        %v2516 = vadd.f32 %v2419, %v2465
        %v2517 = vadd.f32 %v2420, %v2465
        %v2518 = vadd.f32 %v2421, %v2465
        %v2519 = vadd.f32 %v2422, %v2465
        %v2520 = vadd.f32 %v2423, %v2465
        %v2521 = vadd.f32 %v2424, %v2465
        %v2522 = vadd.f32 %v2425, %v2465
        %v2523 = vadd.f32 %v2426, %v2465
        %v2524 = vadd.f32 %v2427, %v2465
        %v2525 = vadd.f32 %v2428, %v2465
        %v2526 = vadd.f32 %v2429, %v2465
        %v2527 = vadd.f32 %v2430, %v2465
        %v2528 = vadd.f32 %v2431, %v2465
        %v2529 = vadd.f32 %v2432, %v2465
        %v2530 = vadd.f32 %v2433, %v2465
        %v2531 = vadd.f32 %v2434, %v2465
        %v2532 = vadd.f32 %v2435, %v2465
        %v2533 = vadd.f32 %v2436, %v2465
        %v2534 = vadd.f32 %v2437, %v2465
        %v2535 = vadd.f32 %v2438, %v2465
        %v2536 = vadd.f32 %v2439, %v2465
        %v2537 = vadd.f32 %v2440, %v2465
        %v2538 = vadd.f32 %v2441, %v2465
        %v2539 = vadd.f32 %v2442, %v2465
        %v2540 = vadd.f32 %v2443, %v2465
        %v2541 = vadd.f32 %v2444, %v2465
        %v2542 = vadd.f32 %v2445, %v2465
        %v2543 = vadd.f32 %v2446, %v2465
        %v2544 = vadd.f32 %v2447, %v2465
        %v2545 = vadd.f32 %v2448, %v2465
        %v2546 = vadd.f32 %v2449, %v2465
        %v2547 = vadd.f32 %v2450, %v2465
        %v2548 = vadd.f32 %v2451, %v2465
        %v2549 = vadd.f32 %v2452, %v2465
        %v2550 = vadd.f32 %v2453, %v2465
        %v2551 = vadd.f32 %v2454, %v2465
        %v2552 = vadd.f32 %v2455, %v2465
        %v2553 = vadd.f32 %v2456, %v2465
        %v2554 = vadd.f32 %v2457, %v2465
        %v2555 = vadd.f32 %v2458, %v2465
        %v2556 = vadd.f32 %v2459, %v2465
        %v2557 = vadd.f32 %v2460, %v2465
        %v2558 = vpack.c.bf16 %v2467, %v2466
        %v2559 = vpack.c.bf16 %v2469, %v2468
        %v2560 = vpack.c.bf16 %v2471, %v2470
        %v2561 = vpack.c.bf16 %v2473, %v2472
        %v2562 = vpack.c.bf16 %v2475, %v2474
        %v2563 = vpack.c.bf16 %v2477, %v2476
        %v2564 = vpack.c.bf16 %v2479, %v2478
        %v2565 = vpack.c.bf16 %v2481, %v2480
        %v2566 = vpack.c.bf16 %v2483, %v2482
        %v2567 = vpack.c.bf16 %v2485, %v2484
        %v2568 = vpack.c.bf16 %v2487, %v2486
        %v2569 = vpack.c.bf16 %v2489, %v2488
        %v2570 = vpack.c.bf16 %v2491, %v2490
        %v2571 = vpack.c.bf16 %v2493, %v2492
        %v2572 = vpack.c.bf16 %v2495, %v2494
        %v2573 = vpack.c.bf16 %v2497, %v2496
        %v2574 = vpack.c.bf16 %v2499, %v2498
        %v2575 = vpack.c.bf16 %v2501, %v2500
        %v2576 = vpack.c.bf16 %v2503, %v2502
        %v2577 = vpack.c.bf16 %v2505, %v2504
        %v2578 = vpack.c.bf16 %v2507, %v2506
        %v2579 = vpack.c.bf16 %v2509, %v2508
        %v2580 = vpack.c.bf16 %v2511, %v2510
        %v2581 = vpack.c.bf16 %v2513, %v2512
        %v2582 = vpack.c.bf16 %v2515, %v2514
        %v2583 = vpack.c.bf16 %v2517, %v2516
        %v2584 = vpack.c.bf16 %v2519, %v2518
        %v2585 = vpack.c.bf16 %v2521, %v2520
        %v2586 = vpack.c.bf16 %v2523, %v2522
        %v2587 = vpack.c.bf16 %v2525, %v2524
        %v2588 = vpack.c.bf16 %v2527, %v2526
        %v2589 = vpack.c.bf16 %v2529, %v2528
        %v2590 = vpack.c.bf16 %v2531, %v2530
        %v2591 = vpack.c.bf16 %v2533, %v2532
        %v2592 = vpack.c.bf16 %v2535, %v2534
        %v2593 = vpack.c.bf16 %v2537, %v2536
        %v2594 = vpack.c.bf16 %v2539, %v2538
        %v2595 = vpack.c.bf16 %v2541, %v2540
        %v2596 = vpack.c.bf16 %v2543, %v2542
        %v2597 = vpack.c.bf16 %v2545, %v2544
        %v2598 = vpack.c.bf16 %v2547, %v2546
        %v2599 = vpack.c.bf16 %v2549, %v2548
        %v2600 = vpack.c.bf16 %v2551, %v2550
        %v2601 = vpack.c.bf16 %v2553, %v2552
        %v2602 = vpack.c.bf16 %v2555, %v2554
        %v2603 = vpack.c.bf16 %v2557, %v2556
        %v2650 = vunpack.c.l.b16 %v2558
        %v2651 = vunpack.c.h.b16 %v2558
        %v2652 = vunpack.c.l.b16 %v2559
        %v2653 = vunpack.c.h.b16 %v2559
        %v2654 = vunpack.c.l.b16 %v2560
        %v2655 = vunpack.c.h.b16 %v2560
        %v2656 = vunpack.c.l.b16 %v2561
        %v2657 = vunpack.c.h.b16 %v2561
        %v2658 = vunpack.c.l.b16 %v2562
        %v2659 = vunpack.c.h.b16 %v2562
        %v2660 = vunpack.c.l.b16 %v2563
        %v2661 = vunpack.c.h.b16 %v2563
        %v2662 = vunpack.c.l.b16 %v2564
        %v2663 = vunpack.c.h.b16 %v2564
        %v2664 = vunpack.c.l.b16 %v2565
        %v2665 = vunpack.c.h.b16 %v2565
        %v2666 = vunpack.c.l.b16 %v2566
        %v2667 = vunpack.c.h.b16 %v2566
        %v2668 = vunpack.c.l.b16 %v2567
        %v2669 = vunpack.c.h.b16 %v2567
        %v2670 = vunpack.c.l.b16 %v2568
        %v2671 = vunpack.c.h.b16 %v2568
        %v2672 = vunpack.c.l.b16 %v2569
        %v2673 = vunpack.c.h.b16 %v2569
        %v2674 = vunpack.c.l.b16 %v2570
        %v2675 = vunpack.c.h.b16 %v2570
        %v2676 = vunpack.c.l.b16 %v2571
        %v2677 = vunpack.c.h.b16 %v2571
        %v2678 = vunpack.c.l.b16 %v2572
        %v2679 = vunpack.c.h.b16 %v2572
        %v2680 = vunpack.c.l.b16 %v2573
        %v2681 = vunpack.c.h.b16 %v2573
        %v2682 = vunpack.c.l.b16 %v2574
        %v2683 = vunpack.c.h.b16 %v2574
        %v2684 = vunpack.c.l.b16 %v2575
        %v2685 = vunpack.c.h.b16 %v2575
        %v2686 = vunpack.c.l.b16 %v2576
        %v2687 = vunpack.c.h.b16 %v2576
        %v2688 = vunpack.c.l.b16 %v2577
        %v2689 = vunpack.c.h.b16 %v2577
        %v2690 = vunpack.c.l.b16 %v2578
        %v2691 = vunpack.c.h.b16 %v2578
        %v2692 = vunpack.c.l.b16 %v2579
        %v2693 = vunpack.c.h.b16 %v2579
        %v2694 = vunpack.c.l.b16 %v2580
        %v2695 = vunpack.c.h.b16 %v2580
        %v2696 = vunpack.c.l.b16 %v2581
        %v2697 = vunpack.c.h.b16 %v2581
        %v2698 = vunpack.c.l.b16 %v2582
        %v2699 = vunpack.c.h.b16 %v2582
        %v2700 = vunpack.c.l.b16 %v2583
        %v2701 = vunpack.c.h.b16 %v2583
        %v2702 = vunpack.c.l.b16 %v2584
        %v2703 = vunpack.c.h.b16 %v2584
        %v2704 = vunpack.c.l.b16 %v2585
        %v2705 = vunpack.c.h.b16 %v2585
        %v2706 = vunpack.c.l.b16 %v2586
        %v2707 = vunpack.c.h.b16 %v2586
        %v2708 = vunpack.c.l.b16 %v2587
        %v2709 = vunpack.c.h.b16 %v2587
        %v2710 = vunpack.c.l.b16 %v2588
        %v2711 = vunpack.c.h.b16 %v2588
        %v2712 = vunpack.c.l.b16 %v2589
        %v2713 = vunpack.c.h.b16 %v2589
        %v2714 = vunpack.c.l.b16 %v2590
        %v2715 = vunpack.c.h.b16 %v2590
        %v2716 = vunpack.c.l.b16 %v2591
        %v2717 = vunpack.c.h.b16 %v2591
        %v2718 = vunpack.c.l.b16 %v2592
        %v2719 = vunpack.c.h.b16 %v2592
        %v2720 = vunpack.c.l.b16 %v2593
        %v2721 = vunpack.c.h.b16 %v2593
        %v2722 = vunpack.c.l.b16 %v2594
        %v2723 = vunpack.c.h.b16 %v2594
        %v2724 = vunpack.c.l.b16 %v2595
        %v2725 = vunpack.c.h.b16 %v2595
        %v2726 = vunpack.c.l.b16 %v2596
        %v2727 = vunpack.c.h.b16 %v2596
        %v2728 = vunpack.c.l.b16 %v2597
        %v2729 = vunpack.c.h.b16 %v2597
        %v2730 = vunpack.c.l.b16 %v2598
        %v2731 = vunpack.c.h.b16 %v2598
        %v2732 = vunpack.c.l.b16 %v2599
        %v2733 = vunpack.c.h.b16 %v2599
        %v2734 = vunpack.c.l.b16 %v2600
        %v2735 = vunpack.c.h.b16 %v2600
        %v2736 = vunpack.c.l.b16 %v2601
        %v2737 = vunpack.c.h.b16 %v2601
        %v2738 = vunpack.c.l.b16 %v2602
        %v2739 = vunpack.c.h.b16 %v2602
        %v2740 = vunpack.c.l.b16 %v2603
        %v2741 = vunpack.c.h.b16 %v2603
        %v2742 = vpack.c.b16 %v2650, %v2650
        %v2743 = vpack.c.b16 %v2651, %v2651
        %v2744 = vpack.c.b16 %v2652, %v2652
        %v2745 = vpack.c.b16 %v2653, %v2653
        %v2746 = vpack.c.b16 %v2654, %v2654
        %v2747 = vpack.c.b16 %v2655, %v2655
        %v2748 = vpack.c.b16 %v2656, %v2656
        %v2749 = vpack.c.b16 %v2657, %v2657
        %v2750 = vpack.c.b16 %v2658, %v2658
        %v2751 = vpack.c.b16 %v2659, %v2659
        %v2752 = vpack.c.b16 %v2660, %v2660
        %v2753 = vpack.c.b16 %v2661, %v2661
        %v2754 = vpack.c.b16 %v2662, %v2662
        %v2755 = vpack.c.b16 %v2663, %v2663
        %v2756 = vpack.c.b16 %v2664, %v2664
        %v2757 = vpack.c.b16 %v2665, %v2665
        %v2758 = vpack.c.b16 %v2666, %v2666
        %v2759 = vpack.c.b16 %v2667, %v2667
        %v2760 = vpack.c.b16 %v2668, %v2668
        %v2761 = vpack.c.b16 %v2669, %v2669
        %v2762 = vpack.c.b16 %v2670, %v2670
        %v2763 = vpack.c.b16 %v2671, %v2671
        %v2764 = vpack.c.b16 %v2672, %v2672
        %v2765 = vpack.c.b16 %v2673, %v2673
        %v2766 = vpack.c.b16 %v2674, %v2674
        %v2767 = vpack.c.b16 %v2675, %v2675
        %v2768 = vpack.c.b16 %v2676, %v2676
        %v2769 = vpack.c.b16 %v2677, %v2677
        %v2770 = vpack.c.b16 %v2678, %v2678
        %v2771 = vpack.c.b16 %v2679, %v2679
        %v2772 = vpack.c.b16 %v2680, %v2680
        %v2773 = vpack.c.b16 %v2681, %v2681
        %v2774 = vpack.c.b16 %v2682, %v2682
        %v2775 = vpack.c.b16 %v2683, %v2683
        %v2776 = vpack.c.b16 %v2684, %v2684
        %v2777 = vpack.c.b16 %v2685, %v2685
        %v2778 = vpack.c.b16 %v2686, %v2686
        %v2779 = vpack.c.b16 %v2687, %v2687
        %v2780 = vpack.c.b16 %v2688, %v2688
        %v2781 = vpack.c.b16 %v2689, %v2689
        %v2782 = vpack.c.b16 %v2690, %v2690
        %v2783 = vpack.c.b16 %v2691, %v2691
        %v2784 = vpack.c.b16 %v2692, %v2692
        %v2785 = vpack.c.b16 %v2693, %v2693
        %v2786 = vpack.c.b16 %v2694, %v2694
        %v2787 = vpack.c.b16 %v2695, %v2695
        %v2788 = vpack.c.b16 %v2696, %v2696
        %v2789 = vpack.c.b16 %v2697, %v2697
        %v2790 = vpack.c.b16 %v2698, %v2698
        %v2791 = vpack.c.b16 %v2699, %v2699
        %v2792 = vpack.c.b16 %v2700, %v2700
        %v2793 = vpack.c.b16 %v2701, %v2701
        %v2794 = vpack.c.b16 %v2702, %v2702
        %v2795 = vpack.c.b16 %v2703, %v2703
        %v2796 = vpack.c.b16 %v2704, %v2704
        %v2797 = vpack.c.b16 %v2705, %v2705
        %v2798 = vpack.c.b16 %v2706, %v2706
        %v2799 = vpack.c.b16 %v2707, %v2707
        %v2800 = vpack.c.b16 %v2708, %v2708
        %v2801 = vpack.c.b16 %v2709, %v2709
        %v2802 = vpack.c.b16 %v2710, %v2710
        %v2803 = vpack.c.b16 %v2711, %v2711
        %v2804 = vpack.c.b16 %v2712, %v2712
        %v2805 = vpack.c.b16 %v2713, %v2713
        %v2806 = vpack.c.b16 %v2714, %v2714
        %v2807 = vpack.c.b16 %v2715, %v2715
        %v2808 = vpack.c.b16 %v2716, %v2716
        %v2809 = vpack.c.b16 %v2717, %v2717
        %v2810 = vpack.c.b16 %v2718, %v2718
        %v2811 = vpack.c.b16 %v2719, %v2719
        %v2812 = vpack.c.b16 %v2720, %v2720
        %v2813 = vpack.c.b16 %v2721, %v2721
        %v2814 = vpack.c.b16 %v2722, %v2722
        %v2815 = vpack.c.b16 %v2723, %v2723
        %v2816 = vpack.c.b16 %v2724, %v2724
        %v2817 = vpack.c.b16 %v2725, %v2725
        %v2818 = vpack.c.b16 %v2726, %v2726
        %v2819 = vpack.c.b16 %v2727, %v2727
        %v2820 = vpack.c.b16 %v2728, %v2728
        %v2821 = vpack.c.b16 %v2729, %v2729
        %v2822 = vpack.c.b16 %v2730, %v2730
        %v2823 = vpack.c.b16 %v2731, %v2731
        %v2824 = vpack.c.b16 %v2732, %v2732
        %v2825 = vpack.c.b16 %v2733, %v2733
        %v2826 = vpack.c.b16 %v2734, %v2734
        %v2827 = vpack.c.b16 %v2735, %v2735
        %v2828 = vpack.c.b16 %v2736, %v2736
        %v2829 = vpack.c.b16 %v2737, %v2737
        %v2830 = vpack.c.b16 %v2738, %v2738
        %v2831 = vpack.c.b16 %v2739, %v2739
        %v2832 = vpack.c.b16 %v2740, %v2740
        %v2833 = vpack.c.b16 %v2741, %v2741
        %2926 = vst [vmem:[%s172] sm:$0xf] %v2742
        %2927 = vst [vmem:[%s172 + $0x4] sm:$0xf] %v2743
        %2928 = vst [vmem:[%s172 + $0x8] sm:$0xf] %v2744
        %2929 = vst [vmem:[%s172 + $0xc] sm:$0xf] %v2745
        %2930 = vst [vmem:[%s172 + $0x10] sm:$0xf] %v2746
        %2931 = vst [vmem:[%s172 + $0x14] sm:$0xf] %v2747
        %2932 = vst [vmem:[%s172 + $0x18] sm:$0xf] %v2748
        %2933 = vst [vmem:[%s172 + $0x1c] sm:$0xf] %v2749
        %2934 = vst [vmem:[%s172 + $0x20] sm:$0xf] %v2750
        %2935 = vst [vmem:[%s172 + $0x24] sm:$0xf] %v2751
        %2936 = vst [vmem:[%s172 + $0x28] sm:$0xf] %v2752
        %2937 = vst [vmem:[%s172 + $0x2c] sm:$0xf] %v2753
        %2938 = vst [vmem:[%s172 + $0x30] sm:$0xf] %v2754
        %2939 = vst [vmem:[%s172 + $0x34] sm:$0xf] %v2755
        %2940 = vst [vmem:[%s172 + $0x38] sm:$0xf] %v2756
        %2941 = vst [vmem:[%s172 + $0x3c] sm:$0xf] %v2757
        %2942 = vst [vmem:[%s172 + $0x40] sm:$0xf] %v2758
        %2943 = vst [vmem:[%s172 + $0x44] sm:$0xf] %v2759
        %2944 = vst [vmem:[%s172 + $0x48] sm:$0xf] %v2760
        %2945 = vst [vmem:[%s172 + $0x4c] sm:$0xf] %v2761
        %2946 = vst [vmem:[%s172 + $0x50] sm:$0xf] %v2762
        %2947 = vst [vmem:[%s172 + $0x54] sm:$0xf] %v2763
        %2948 = vst [vmem:[%s172 + $0x58] sm:$0xf] %v2764
        %2949 = vst [vmem:[%s172 + $0x5c] sm:$0xf] %v2765
        %2950 = vst [vmem:[%s172 + $0x60] sm:$0xf] %v2766
        %2951 = vst [vmem:[%s172 + $0x64] sm:$0xf] %v2767
        %2952 = vst [vmem:[%s172 + $0x68] sm:$0xf] %v2768
        %2953 = vst [vmem:[%s172 + $0x6c] sm:$0xf] %v2769
        %2954 = vst [vmem:[%s172 + $0x70] sm:$0xf] %v2770
        %2955 = vst [vmem:[%s172 + $0x74] sm:$0xf] %v2771
        %2956 = vst [vmem:[%s172 + $0x78] sm:$0xf] %v2772
        %2957 = vst [vmem:[%s172 + $0x7c] sm:$0xf] %v2773
        %2958 = vst [vmem:[%s172 + $0x80] sm:$0xf] %v2774
        %2959 = vst [vmem:[%s172 + $0x84] sm:$0xf] %v2775
        %2960 = vst [vmem:[%s172 + $0x88] sm:$0xf] %v2776
        %2961 = vst [vmem:[%s172 + $0x8c] sm:$0xf] %v2777
        %2962 = vst [vmem:[%s172 + $0x90] sm:$0xf] %v2778
        %2963 = vst [vmem:[%s172 + $0x94] sm:$0xf] %v2779
        %2964 = vst [vmem:[%s172 + $0x98] sm:$0xf] %v2780
        %2965 = vst [vmem:[%s172 + $0x9c] sm:$0xf] %v2781
        %2966 = vst [vmem:[%s172 + $0xa0] sm:$0xf] %v2782
        %2967 = vst [vmem:[%s172 + $0xa4] sm:$0xf] %v2783
        %2968 = vst [vmem:[%s172 + $0xa8] sm:$0xf] %v2784
        %2969 = vst [vmem:[%s172 + $0xac] sm:$0xf] %v2785
        %2970 = vst [vmem:[%s172 + $0xb0] sm:$0xf] %v2786
        %2971 = vst [vmem:[%s172 + $0xb4] sm:$0xf] %v2787
        %2972 = vst [vmem:[%s172 + $0xb8] sm:$0xf] %v2788
        %2973 = vst [vmem:[%s172 + $0xbc] sm:$0xf] %v2789
        %2974 = vst [vmem:[%s172 + $0xc0] sm:$0xf] %v2790
        %2975 = vst [vmem:[%s172 + $0xc4] sm:$0xf] %v2791
        %2976 = vst [vmem:[%s172 + $0xc8] sm:$0xf] %v2792
        %2977 = vst [vmem:[%s172 + $0xcc] sm:$0xf] %v2793
        %2978 = vst [vmem:[%s172 + $0xd0] sm:$0xf] %v2794
        %2979 = vst [vmem:[%s172 + $0xd4] sm:$0xf] %v2795
        %2980 = vst [vmem:[%s172 + $0xd8] sm:$0xf] %v2796
        %2981 = vst [vmem:[%s172 + $0xdc] sm:$0xf] %v2797
        %2982 = vst [vmem:[%s172 + $0xe0] sm:$0xf] %v2798
        %2983 = vst [vmem:[%s172 + $0xe4] sm:$0xf] %v2799
        %2984 = vst [vmem:[%s172 + $0xe8] sm:$0xf] %v2800
        %2985 = vst [vmem:[%s172 + $0xec] sm:$0xf] %v2801
        %2986 = vst [vmem:[%s172 + $0xf0] sm:$0xf] %v2802
        %2987 = vst [vmem:[%s172 + $0xf4] sm:$0xf] %v2803
        %2988 = vst [vmem:[%s172 + $0xf8] sm:$0xf] %v2804
        %2989 = vst [vmem:[%s172 + $0xfc] sm:$0xf] %v2805
        %2990 = vst [vmem:[%s172 + $0x100] sm:$0xf] %v2806
        %2991 = vst [vmem:[%s172 + $0x104] sm:$0xf] %v2807
        %2992 = vst [vmem:[%s172 + $0x108] sm:$0xf] %v2808
        %2993 = vst [vmem:[%s172 + $0x10c] sm:$0xf] %v2809
        %2994 = vst [vmem:[%s172 + $0x110] sm:$0xf] %v2810
        %2995 = vst [vmem:[%s172 + $0x114] sm:$0xf] %v2811
        %2996 = vst [vmem:[%s172 + $0x118] sm:$0xf] %v2812
        %2997 = vst [vmem:[%s172 + $0x11c] sm:$0xf] %v2813
        %2998 = vst [vmem:[%s172 + $0x120] sm:$0xf] %v2814
        %2999 = vst [vmem:[%s172 + $0x124] sm:$0xf] %v2815
        %3000 = vst [vmem:[%s172 + $0x128] sm:$0xf] %v2816
        %3001 = vst [vmem:[%s172 + $0x12c] sm:$0xf] %v2817
        %3002 = vst [vmem:[%s172 + $0x130] sm:$0xf] %v2818
        %3003 = vst [vmem:[%s172 + $0x134] sm:$0xf] %v2819
        %3004 = vst [vmem:[%s172 + $0x138] sm:$0xf] %v2820
        %3005 = vst [vmem:[%s172 + $0x13c] sm:$0xf] %v2821
        %3006 = vst [vmem:[%s172 + $0x140] sm:$0xf] %v2822
        %3007 = vst [vmem:[%s172 + $0x144] sm:$0xf] %v2823
        %3008 = vst [vmem:[%s172 + $0x148] sm:$0xf] %v2824
        %3009 = vst [vmem:[%s172 + $0x14c] sm:$0xf] %v2825
        %3010 = vst [vmem:[%s172 + $0x150] sm:$0xf] %v2826
        %3011 = vst [vmem:[%s172 + $0x154] sm:$0xf] %v2827
        %3012 = vst [vmem:[%s172 + $0x158] sm:$0xf] %v2828
        %3013 = vst [vmem:[%s172 + $0x15c] sm:$0xf] %v2829
        %3014 = vst [vmem:[%s172 + $0x160] sm:$0xf] %v2830
        %3015 = vst [vmem:[%s172 + $0x164] sm:$0xf] %v2831
        %3016 = vst [vmem:[%s172 + $0x168] sm:$0xf] %v2832
        %3017 = vst [vmem:[%s172 + $0x16c] sm:$0xf] %v2833
        %s3018 = sand.u32 %s90, 1
        %s3019 = sand.u32 %s90, 1
        %s3020 = smul.addr %s3019, 368
        %s3021 = scalar_lea.vmem [#allocation2], %s3020
        // Predicated region
        $region33: #{_forward_impl.1} parent=31 // pred_check
          %p3022 = pneg %p100
        $region34: #{_forward_impl.1} parent=31 // pred_check_branch
          %3024 = sbr.rel (%p3022) target = $region36
        $region35: #{_forward_impl.1} parent=31 // pred_region
          %s3025 = smul.u32 92, %s14
          %s3026 = ssub.s32 183, %s3025
          %p3027 = scmp.lt.s32.totalorder %s3026, 92
          %s3028 = scalar_select %p3027, %s3026, 92
          %s3029 = smul.u32 64, %s3028
          %p3030 = scmp.ne.s32.totalorder 0, %s3029
          %s3031 = smul.addr %s3025, 4
          %s3032 = scalar_lea.vmem %s3, %s3031
          // Predicated region
          $region37: #{_forward_impl.1} parent=35 // pred_check
            %p3033 = pneg %p3030
          $region38: #{_forward_impl.1} parent=35 // pred_check_branch
            %3035 = sbr.rel (%p3033) target = $region40
          $region39: #{_forward_impl.1} parent=35 // pred_region
            // Predicated region
            $region41: #{_forward_impl.1} parent=39 // pred_check
              _
            $region42: #{_forward_impl.1} parent=39 // pred_check_branch
              %3037 = sbr.rel target = $region44
            $region43: #{_forward_impl.1} parent=39 // pred_region
              // Predicated region
              $region63: #{_forward_impl.1} parent=43 // pred_check
                _
              $region64: #{_forward_impl.1} parent=43 // pred_check_branch
                %3212 = sbr.rel (0) target = $region66
              $region65: #{_forward_impl.1} parent=43 // pred_region
                %s3214 = sshrl.u32 %s3028, 6
                // While loop
                $region67: #{_forward_impl.1} parent=65 // loop_pre_header
                  _
                $region68: #{_forward_impl.1} parent=65 // loop_header
                  %s3216 = sphi 0, %s3218
                  %p3217 = scmp.ge.s32.totalorder %s3216, %s3214
                  %s3221 = sphi 0, %s3354
                  %s3222 = sphi %s3021, %s3357
                  %s3223 = sphi %s3032, %s3358
                $region69: #{_forward_impl.1} parent=65 // loop_header_branch
                  %3220 = sbr.rel (%p3217) target = $region73
                $region70: #{_forward_impl.1} parent=65 // loop_body
                  %v3224 = vld [vmem:[%s3222] sm:$0xf]
                  %3225 = vst [vmem:[%s3223] sm:$0xf] %v3224
                  %v3226 = vld [vmem:[%s3222 + $0x4] sm:$0xf]
                  %3227 = vst [vmem:[%s3223 + $0x4] sm:$0xf] %v3226
                  %v3228 = vld [vmem:[%s3222 + $0x8] sm:$0xf]
                  %3229 = vst [vmem:[%s3223 + $0x8] sm:$0xf] %v3228
                  %v3230 = vld [vmem:[%s3222 + $0xc] sm:$0xf]
                  %3231 = vst [vmem:[%s3223 + $0xc] sm:$0xf] %v3230
                  %v3232 = vld [vmem:[%s3222 + $0x10] sm:$0xf]
                  %3233 = vst [vmem:[%s3223 + $0x10] sm:$0xf] %v3232
                  %v3234 = vld [vmem:[%s3222 + $0x14] sm:$0xf]
                  %3235 = vst [vmem:[%s3223 + $0x14] sm:$0xf] %v3234
                  %v3236 = vld [vmem:[%s3222 + $0x18] sm:$0xf]
                  %3237 = vst [vmem:[%s3223 + $0x18] sm:$0xf] %v3236
                  %v3238 = vld [vmem:[%s3222 + $0x1c] sm:$0xf]
                  %3239 = vst [vmem:[%s3223 + $0x1c] sm:$0xf] %v3238
                  %v3240 = vld [vmem:[%s3222 + $0x20] sm:$0xf]
                  %3241 = vst [vmem:[%s3223 + $0x20] sm:$0xf] %v3240
                  %v3242 = vld [vmem:[%s3222 + $0x24] sm:$0xf]
                  %3243 = vst [vmem:[%s3223 + $0x24] sm:$0xf] %v3242
                  %v3244 = vld [vmem:[%s3222 + $0x28] sm:$0xf]
                  %3245 = vst [vmem:[%s3223 + $0x28] sm:$0xf] %v3244
                  %v3246 = vld [vmem:[%s3222 + $0x2c] sm:$0xf]
                  %3247 = vst [vmem:[%s3223 + $0x2c] sm:$0xf] %v3246
                  %v3248 = vld [vmem:[%s3222 + $0x30] sm:$0xf]
                  %3249 = vst [vmem:[%s3223 + $0x30] sm:$0xf] %v3248
                  %v3250 = vld [vmem:[%s3222 + $0x34] sm:$0xf]
                  %3251 = vst [vmem:[%s3223 + $0x34] sm:$0xf] %v3250
                  %v3252 = vld [vmem:[%s3222 + $0x38] sm:$0xf]
                  %3253 = vst [vmem:[%s3223 + $0x38] sm:$0xf] %v3252
                  %v3254 = vld [vmem:[%s3222 + $0x3c] sm:$0xf]
                  %3255 = vst [vmem:[%s3223 + $0x3c] sm:$0xf] %v3254
                  %v3256 = vld [vmem:[%s3222 + $0x40] sm:$0xf]
                  %3257 = vst [vmem:[%s3223 + $0x40] sm:$0xf] %v3256
                  %v3258 = vld [vmem:[%s3222 + $0x44] sm:$0xf]
                  %3259 = vst [vmem:[%s3223 + $0x44] sm:$0xf] %v3258
                  %v3260 = vld [vmem:[%s3222 + $0x48] sm:$0xf]
                  %3261 = vst [vmem:[%s3223 + $0x48] sm:$0xf] %v3260
                  %v3262 = vld [vmem:[%s3222 + $0x4c] sm:$0xf]
                  %3263 = vst [vmem:[%s3223 + $0x4c] sm:$0xf] %v3262
                  %v3264 = vld [vmem:[%s3222 + $0x50] sm:$0xf]
                  %3265 = vst [vmem:[%s3223 + $0x50] sm:$0xf] %v3264
                  %v3266 = vld [vmem:[%s3222 + $0x54] sm:$0xf]
                  %3267 = vst [vmem:[%s3223 + $0x54] sm:$0xf] %v3266
                  %v3268 = vld [vmem:[%s3222 + $0x58] sm:$0xf]
                  %3269 = vst [vmem:[%s3223 + $0x58] sm:$0xf] %v3268
                  %v3270 = vld [vmem:[%s3222 + $0x5c] sm:$0xf]
                  %3271 = vst [vmem:[%s3223 + $0x5c] sm:$0xf] %v3270
                  %v3272 = vld [vmem:[%s3222 + $0x60] sm:$0xf]
                  %3273 = vst [vmem:[%s3223 + $0x60] sm:$0xf] %v3272
                  %v3274 = vld [vmem:[%s3222 + $0x64] sm:$0xf]
                  %3275 = vst [vmem:[%s3223 + $0x64] sm:$0xf] %v3274
                  %v3276 = vld [vmem:[%s3222 + $0x68] sm:$0xf]
                  %3277 = vst [vmem:[%s3223 + $0x68] sm:$0xf] %v3276
                  %v3278 = vld [vmem:[%s3222 + $0x6c] sm:$0xf]
                  %3279 = vst [vmem:[%s3223 + $0x6c] sm:$0xf] %v3278
                  %v3280 = vld [vmem:[%s3222 + $0x70] sm:$0xf]
                  %3281 = vst [vmem:[%s3223 + $0x70] sm:$0xf] %v3280
                  %v3282 = vld [vmem:[%s3222 + $0x74] sm:$0xf]
                  %3283 = vst [vmem:[%s3223 + $0x74] sm:$0xf] %v3282
                  %v3284 = vld [vmem:[%s3222 + $0x78] sm:$0xf]
                  %3285 = vst [vmem:[%s3223 + $0x78] sm:$0xf] %v3284
                  %v3286 = vld [vmem:[%s3222 + $0x7c] sm:$0xf]
                  %3287 = vst [vmem:[%s3223 + $0x7c] sm:$0xf] %v3286
                  %v3288 = vld [vmem:[%s3222 + $0x80] sm:$0xf]
                  %3289 = vst [vmem:[%s3223 + $0x80] sm:$0xf] %v3288
                  %v3290 = vld [vmem:[%s3222 + $0x84] sm:$0xf]
                  %3291 = vst [vmem:[%s3223 + $0x84] sm:$0xf] %v3290
                  %v3292 = vld [vmem:[%s3222 + $0x88] sm:$0xf]
                  %3293 = vst [vmem:[%s3223 + $0x88] sm:$0xf] %v3292
                  %v3294 = vld [vmem:[%s3222 + $0x8c] sm:$0xf]
                  %3295 = vst [vmem:[%s3223 + $0x8c] sm:$0xf] %v3294
                  %v3296 = vld [vmem:[%s3222 + $0x90] sm:$0xf]
                  %3297 = vst [vmem:[%s3223 + $0x90] sm:$0xf] %v3296
                  %v3298 = vld [vmem:[%s3222 + $0x94] sm:$0xf]
                  %3299 = vst [vmem:[%s3223 + $0x94] sm:$0xf] %v3298
                  %v3300 = vld [vmem:[%s3222 + $0x98] sm:$0xf]
                  %3301 = vst [vmem:[%s3223 + $0x98] sm:$0xf] %v3300
                  %v3302 = vld [vmem:[%s3222 + $0x9c] sm:$0xf]
                  %3303 = vst [vmem:[%s3223 + $0x9c] sm:$0xf] %v3302
                  %v3304 = vld [vmem:[%s3222 + $0xa0] sm:$0xf]
                  %3305 = vst [vmem:[%s3223 + $0xa0] sm:$0xf] %v3304
                  %v3306 = vld [vmem:[%s3222 + $0xa4] sm:$0xf]
                  %3307 = vst [vmem:[%s3223 + $0xa4] sm:$0xf] %v3306
                  %v3308 = vld [vmem:[%s3222 + $0xa8] sm:$0xf]
                  %3309 = vst [vmem:[%s3223 + $0xa8] sm:$0xf] %v3308
                  %v3310 = vld [vmem:[%s3222 + $0xac] sm:$0xf]
                  %3311 = vst [vmem:[%s3223 + $0xac] sm:$0xf] %v3310
                  %v3312 = vld [vmem:[%s3222 + $0xb0] sm:$0xf]
                  %3313 = vst [vmem:[%s3223 + $0xb0] sm:$0xf] %v3312
                  %v3314 = vld [vmem:[%s3222 + $0xb4] sm:$0xf]
                  %3315 = vst [vmem:[%s3223 + $0xb4] sm:$0xf] %v3314
                  %v3316 = vld [vmem:[%s3222 + $0xb8] sm:$0xf]
                  %3317 = vst [vmem:[%s3223 + $0xb8] sm:$0xf] %v3316
                  %v3318 = vld [vmem:[%s3222 + $0xbc] sm:$0xf]
                  %3319 = vst [vmem:[%s3223 + $0xbc] sm:$0xf] %v3318
                  %v3320 = vld [vmem:[%s3222 + $0xc0] sm:$0xf]
                  %3321 = vst [vmem:[%s3223 + $0xc0] sm:$0xf] %v3320
                  %v3322 = vld [vmem:[%s3222 + $0xc4] sm:$0xf]
                  %3323 = vst [vmem:[%s3223 + $0xc4] sm:$0xf] %v3322
                  %v3324 = vld [vmem:[%s3222 + $0xc8] sm:$0xf]
                  %3325 = vst [vmem:[%s3223 + $0xc8] sm:$0xf] %v3324
                  %v3326 = vld [vmem:[%s3222 + $0xcc] sm:$0xf]
                  %3327 = vst [vmem:[%s3223 + $0xcc] sm:$0xf] %v3326
                  %v3328 = vld [vmem:[%s3222 + $0xd0] sm:$0xf]
                  %3329 = vst [vmem:[%s3223 + $0xd0] sm:$0xf] %v3328
                  %v3330 = vld [vmem:[%s3222 + $0xd4] sm:$0xf]
                  %3331 = vst [vmem:[%s3223 + $0xd4] sm:$0xf] %v3330
                  %v3332 = vld [vmem:[%s3222 + $0xd8] sm:$0xf]
                  %3333 = vst [vmem:[%s3223 + $0xd8] sm:$0xf] %v3332
                  %v3334 = vld [vmem:[%s3222 + $0xdc] sm:$0xf]
                  %3335 = vst [vmem:[%s3223 + $0xdc] sm:$0xf] %v3334
                  %v3336 = vld [vmem:[%s3222 + $0xe0] sm:$0xf]
                  %3337 = vst [vmem:[%s3223 + $0xe0] sm:$0xf] %v3336
                  %v3338 = vld [vmem:[%s3222 + $0xe4] sm:$0xf]
                  %3339 = vst [vmem:[%s3223 + $0xe4] sm:$0xf] %v3338
                  %v3340 = vld [vmem:[%s3222 + $0xe8] sm:$0xf]
                  %3341 = vst [vmem:[%s3223 + $0xe8] sm:$0xf] %v3340
                  %v3342 = vld [vmem:[%s3222 + $0xec] sm:$0xf]
                  %3343 = vst [vmem:[%s3223 + $0xec] sm:$0xf] %v3342
                  %v3344 = vld [vmem:[%s3222 + $0xf0] sm:$0xf]
                  %3345 = vst [vmem:[%s3223 + $0xf0] sm:$0xf] %v3344
                  %v3346 = vld [vmem:[%s3222 + $0xf4] sm:$0xf]
                  %3347 = vst [vmem:[%s3223 + $0xf4] sm:$0xf] %v3346
                  %v3348 = vld [vmem:[%s3222 + $0xf8] sm:$0xf]
                  %3349 = vst [vmem:[%s3223 + $0xf8] sm:$0xf] %v3348
                  %v3350 = vld [vmem:[%s3222 + $0xfc] sm:$0xf]
                  %3351 = vst [vmem:[%s3223 + $0xfc] sm:$0xf] %v3350
                  %s3352 = sadd.s32 1, %s3221
                  %p3353 = scmp.ge.s32.totalorder %s3352, %s3214
                  %s3354 = scalar_select %p3353, 0, %s3352
                  %s3355 = smul.u32 %s3354, 256
                  %s3356 = smul.u32 %s3354, 256
                  %s3357 = scalar_lea.vmem %s3021, %s3355 [#allocation2]
                  %s3358 = scalar_lea.vmem %s3032, %s3356
                $region71: #{_forward_impl.1} parent=65 // loop_footer
                  %s3218 = sadd.s32 %s3216, 1
                $region72: #{_forward_impl.1} parent=65 // loop_footer_branch
                  %3215 = sbr.rel target = $region68
                $region73: #{_forward_impl.1} parent=65 // loop_exit
                  _
                %s3359 = sshrl.u32 %s3028, 6
                %s3360 = sand.u32 %s3028, 63
                %s3361 = smul.u32 %s3359, 64
                %s3362 = smul.u32 4, %s3361
                %s3363 = scalar_lea.vmem %s3021, %s3362 [#allocation2]
                %s3364 = smul.u32 4, %s3361
                %s3365 = scalar_lea.vmem %s3032, %s3364
                // While loop
                $region74: #{_forward_impl.1} parent=65 // loop_pre_header
                  _
                $region75: #{_forward_impl.1} parent=65 // loop_header
                  %s3367 = sphi 0, %s3369
                  %p3368 = scmp.ge.s32.totalorder %s3367, %s3360
                  %s3372 = sphi 0, %s3379
                  %s3373 = sphi %s3363, %s3382
                  %s3374 = sphi %s3365, %s3383
                $region76: #{_forward_impl.1} parent=65 // loop_header_branch
                  %3371 = sbr.rel (%p3368) target = $region80
                $region77: #{_forward_impl.1} parent=65 // loop_body
                  %v3375 = vld [vmem:[%s3373] sm:$0xf]
                  %3376 = vst [vmem:[%s3374] sm:$0xf] %v3375
                  %s3377 = sadd.s32 1, %s3372
                  %p3378 = scmp.ge.s32.totalorder %s3377, %s3360
                  %s3379 = scalar_select %p3378, 0, %s3377
                  %s3380 = smul.u32 %s3379, 4
                  %s3381 = smul.u32 %s3379, 4
                  %s3382 = scalar_lea.vmem %s3363, %s3380 [#allocation2]
                  %s3383 = scalar_lea.vmem %s3365, %s3381
                $region78: #{_forward_impl.1} parent=65 // loop_footer
                  %s3369 = sadd.s32 %s3367, 1
                $region79: #{_forward_impl.1} parent=65 // loop_footer_branch
                  %3366 = sbr.rel target = $region75
                $region80: #{_forward_impl.1} parent=65 // loop_exit
                  _
              $region66: #{_forward_impl.1} parent=43 // pred_fallthru
                _
            $region44: #{_forward_impl.1} parent=39 // pred_fallthru
              _
            // Predicated region
            $region45: #{_forward_impl.1} parent=39 // pred_check
              _
            $region46: #{_forward_impl.1} parent=39 // pred_check_branch
              %3039 = sbr.rel (0) target = $region48
            $region47: #{_forward_impl.1} parent=39 // pred_region
              %s3041 = sshrl.u32 %s3028, 6
              // While loop
              $region49: #{_forward_impl.1} parent=47 // loop_pre_header
                _
              $region50: #{_forward_impl.1} parent=47 // loop_header
                %s3043 = sphi 0, %s3045
                %p3044 = scmp.ge.s32.totalorder %s3043, %s3041
                %s3048 = sphi 0, %s3181
                %s3049 = sphi %s3021, %s3184
                %s3050 = sphi %s3032, %s3185
              $region51: #{_forward_impl.1} parent=47 // loop_header_branch
                %3047 = sbr.rel (%p3044) target = $region55
              $region52: #{_forward_impl.1} parent=47 // loop_body
                %v3051 = vld [vmem:[%s3049] sm:$0xf]
                %3052 = vst [vmem:[%s3050] sm:$0xf] %v3051
                %v3053 = vld [vmem:[%s3049 + $0x4] sm:$0xf]
                %3054 = vst [vmem:[%s3050 + $0x4] sm:$0xf] %v3053
                %v3055 = vld [vmem:[%s3049 + $0x8] sm:$0xf]
                %3056 = vst [vmem:[%s3050 + $0x8] sm:$0xf] %v3055
                %v3057 = vld [vmem:[%s3049 + $0xc] sm:$0xf]
                %3058 = vst [vmem:[%s3050 + $0xc] sm:$0xf] %v3057
                %v3059 = vld [vmem:[%s3049 + $0x10] sm:$0xf]
                %3060 = vst [vmem:[%s3050 + $0x10] sm:$0xf] %v3059
                %v3061 = vld [vmem:[%s3049 + $0x14] sm:$0xf]
                %3062 = vst [vmem:[%s3050 + $0x14] sm:$0xf] %v3061
                %v3063 = vld [vmem:[%s3049 + $0x18] sm:$0xf]
                %3064 = vst [vmem:[%s3050 + $0x18] sm:$0xf] %v3063
                %v3065 = vld [vmem:[%s3049 + $0x1c] sm:$0xf]
                %3066 = vst [vmem:[%s3050 + $0x1c] sm:$0xf] %v3065
                %v3067 = vld [vmem:[%s3049 + $0x20] sm:$0xf]
                %3068 = vst [vmem:[%s3050 + $0x20] sm:$0xf] %v3067
                %v3069 = vld [vmem:[%s3049 + $0x24] sm:$0xf]
                %3070 = vst [vmem:[%s3050 + $0x24] sm:$0xf] %v3069
                %v3071 = vld [vmem:[%s3049 + $0x28] sm:$0xf]
                %3072 = vst [vmem:[%s3050 + $0x28] sm:$0xf] %v3071
                %v3073 = vld [vmem:[%s3049 + $0x2c] sm:$0xf]
                %3074 = vst [vmem:[%s3050 + $0x2c] sm:$0xf] %v3073
                %v3075 = vld [vmem:[%s3049 + $0x30] sm:$0xf]
                %3076 = vst [vmem:[%s3050 + $0x30] sm:$0xf] %v3075
                %v3077 = vld [vmem:[%s3049 + $0x34] sm:$0xf]
                %3078 = vst [vmem:[%s3050 + $0x34] sm:$0xf] %v3077
                %v3079 = vld [vmem:[%s3049 + $0x38] sm:$0xf]
                %3080 = vst [vmem:[%s3050 + $0x38] sm:$0xf] %v3079
                %v3081 = vld [vmem:[%s3049 + $0x3c] sm:$0xf]
                %3082 = vst [vmem:[%s3050 + $0x3c] sm:$0xf] %v3081
                %v3083 = vld [vmem:[%s3049 + $0x40] sm:$0xf]
                %3084 = vst [vmem:[%s3050 + $0x40] sm:$0xf] %v3083
                %v3085 = vld [vmem:[%s3049 + $0x44] sm:$0xf]
                %3086 = vst [vmem:[%s3050 + $0x44] sm:$0xf] %v3085
                %v3087 = vld [vmem:[%s3049 + $0x48] sm:$0xf]
                %3088 = vst [vmem:[%s3050 + $0x48] sm:$0xf] %v3087
                %v3089 = vld [vmem:[%s3049 + $0x4c] sm:$0xf]
                %3090 = vst [vmem:[%s3050 + $0x4c] sm:$0xf] %v3089
                %v3091 = vld [vmem:[%s3049 + $0x50] sm:$0xf]
                %3092 = vst [vmem:[%s3050 + $0x50] sm:$0xf] %v3091
                %v3093 = vld [vmem:[%s3049 + $0x54] sm:$0xf]
                %3094 = vst [vmem:[%s3050 + $0x54] sm:$0xf] %v3093
                %v3095 = vld [vmem:[%s3049 + $0x58] sm:$0xf]
                %3096 = vst [vmem:[%s3050 + $0x58] sm:$0xf] %v3095
                %v3097 = vld [vmem:[%s3049 + $0x5c] sm:$0xf]
                %3098 = vst [vmem:[%s3050 + $0x5c] sm:$0xf] %v3097
                %v3099 = vld [vmem:[%s3049 + $0x60] sm:$0xf]
                %3100 = vst [vmem:[%s3050 + $0x60] sm:$0xf] %v3099
                %v3101 = vld [vmem:[%s3049 + $0x64] sm:$0xf]
                %3102 = vst [vmem:[%s3050 + $0x64] sm:$0xf] %v3101
                %v3103 = vld [vmem:[%s3049 + $0x68] sm:$0xf]
                %3104 = vst [vmem:[%s3050 + $0x68] sm:$0xf] %v3103
                %v3105 = vld [vmem:[%s3049 + $0x6c] sm:$0xf]
                %3106 = vst [vmem:[%s3050 + $0x6c] sm:$0xf] %v3105
                %v3107 = vld [vmem:[%s3049 + $0x70] sm:$0xf]
                %3108 = vst [vmem:[%s3050 + $0x70] sm:$0xf] %v3107
                %v3109 = vld [vmem:[%s3049 + $0x74] sm:$0xf]
                %3110 = vst [vmem:[%s3050 + $0x74] sm:$0xf] %v3109
                %v3111 = vld [vmem:[%s3049 + $0x78] sm:$0xf]
                %3112 = vst [vmem:[%s3050 + $0x78] sm:$0xf] %v3111
                %v3113 = vld [vmem:[%s3049 + $0x7c] sm:$0xf]
                %3114 = vst [vmem:[%s3050 + $0x7c] sm:$0xf] %v3113
                %v3115 = vld [vmem:[%s3049 + $0x80] sm:$0xf]
                %3116 = vst [vmem:[%s3050 + $0x80] sm:$0xf] %v3115
                %v3117 = vld [vmem:[%s3049 + $0x84] sm:$0xf]
                %3118 = vst [vmem:[%s3050 + $0x84] sm:$0xf] %v3117
                %v3119 = vld [vmem:[%s3049 + $0x88] sm:$0xf]
                %3120 = vst [vmem:[%s3050 + $0x88] sm:$0xf] %v3119
                %v3121 = vld [vmem:[%s3049 + $0x8c] sm:$0xf]
                %3122 = vst [vmem:[%s3050 + $0x8c] sm:$0xf] %v3121
                %v3123 = vld [vmem:[%s3049 + $0x90] sm:$0xf]
                %3124 = vst [vmem:[%s3050 + $0x90] sm:$0xf] %v3123
                %v3125 = vld [vmem:[%s3049 + $0x94] sm:$0xf]
                %3126 = vst [vmem:[%s3050 + $0x94] sm:$0xf] %v3125
                %v3127 = vld [vmem:[%s3049 + $0x98] sm:$0xf]
                %3128 = vst [vmem:[%s3050 + $0x98] sm:$0xf] %v3127
                %v3129 = vld [vmem:[%s3049 + $0x9c] sm:$0xf]
                %3130 = vst [vmem:[%s3050 + $0x9c] sm:$0xf] %v3129
                %v3131 = vld [vmem:[%s3049 + $0xa0] sm:$0xf]
                %3132 = vst [vmem:[%s3050 + $0xa0] sm:$0xf] %v3131
                %v3133 = vld [vmem:[%s3049 + $0xa4] sm:$0xf]
                %3134 = vst [vmem:[%s3050 + $0xa4] sm:$0xf] %v3133
                %v3135 = vld [vmem:[%s3049 + $0xa8] sm:$0xf]
                %3136 = vst [vmem:[%s3050 + $0xa8] sm:$0xf] %v3135
                %v3137 = vld [vmem:[%s3049 + $0xac] sm:$0xf]
                %3138 = vst [vmem:[%s3050 + $0xac] sm:$0xf] %v3137
                %v3139 = vld [vmem:[%s3049 + $0xb0] sm:$0xf]
                %3140 = vst [vmem:[%s3050 + $0xb0] sm:$0xf] %v3139
                %v3141 = vld [vmem:[%s3049 + $0xb4] sm:$0xf]
                %3142 = vst [vmem:[%s3050 + $0xb4] sm:$0xf] %v3141
                %v3143 = vld [vmem:[%s3049 + $0xb8] sm:$0xf]
                %3144 = vst [vmem:[%s3050 + $0xb8] sm:$0xf] %v3143
                %v3145 = vld [vmem:[%s3049 + $0xbc] sm:$0xf]
                %3146 = vst [vmem:[%s3050 + $0xbc] sm:$0xf] %v3145
                %v3147 = vld [vmem:[%s3049 + $0xc0] sm:$0xf]
                %3148 = vst [vmem:[%s3050 + $0xc0] sm:$0xf] %v3147
                %v3149 = vld [vmem:[%s3049 + $0xc4] sm:$0xf]
                %3150 = vst [vmem:[%s3050 + $0xc4] sm:$0xf] %v3149
                %v3151 = vld [vmem:[%s3049 + $0xc8] sm:$0xf]
                %3152 = vst [vmem:[%s3050 + $0xc8] sm:$0xf] %v3151
                %v3153 = vld [vmem:[%s3049 + $0xcc] sm:$0xf]
                %3154 = vst [vmem:[%s3050 + $0xcc] sm:$0xf] %v3153
                %v3155 = vld [vmem:[%s3049 + $0xd0] sm:$0xf]
                %3156 = vst [vmem:[%s3050 + $0xd0] sm:$0xf] %v3155
                %v3157 = vld [vmem:[%s3049 + $0xd4] sm:$0xf]
                %3158 = vst [vmem:[%s3050 + $0xd4] sm:$0xf] %v3157
                %v3159 = vld [vmem:[%s3049 + $0xd8] sm:$0xf]
                %3160 = vst [vmem:[%s3050 + $0xd8] sm:$0xf] %v3159
                %v3161 = vld [vmem:[%s3049 + $0xdc] sm:$0xf]
                %3162 = vst [vmem:[%s3050 + $0xdc] sm:$0xf] %v3161
                %v3163 = vld [vmem:[%s3049 + $0xe0] sm:$0xf]
                %3164 = vst [vmem:[%s3050 + $0xe0] sm:$0xf] %v3163
                %v3165 = vld [vmem:[%s3049 + $0xe4] sm:$0xf]
                %3166 = vst [vmem:[%s3050 + $0xe4] sm:$0xf] %v3165
                %v3167 = vld [vmem:[%s3049 + $0xe8] sm:$0xf]
                %3168 = vst [vmem:[%s3050 + $0xe8] sm:$0xf] %v3167
                %v3169 = vld [vmem:[%s3049 + $0xec] sm:$0xf]
                %3170 = vst [vmem:[%s3050 + $0xec] sm:$0xf] %v3169
                %v3171 = vld [vmem:[%s3049 + $0xf0] sm:$0xf]
                %3172 = vst [vmem:[%s3050 + $0xf0] sm:$0xf] %v3171
                %v3173 = vld [vmem:[%s3049 + $0xf4] sm:$0xf]
                %3174 = vst [vmem:[%s3050 + $0xf4] sm:$0xf] %v3173
                %v3175 = vld [vmem:[%s3049 + $0xf8] sm:$0xf]
                %3176 = vst [vmem:[%s3050 + $0xf8] sm:$0xf] %v3175
                %v3177 = vld [vmem:[%s3049 + $0xfc] sm:$0xf]
                %3178 = vst [vmem:[%s3050 + $0xfc] sm:$0xf] %v3177
                %s3179 = sadd.s32 1, %s3048
                %p3180 = scmp.ge.s32.totalorder %s3179, %s3041
                %s3181 = scalar_select %p3180, 0, %s3179
                %s3182 = smul.u32 %s3181, 256
                %s3183 = smul.u32 %s3181, 256
                %s3184 = scalar_lea.vmem %s3021, %s3182 [#allocation2]
                %s3185 = scalar_lea.vmem %s3032, %s3183
              $region53: #{_forward_impl.1} parent=47 // loop_footer
                %s3045 = sadd.s32 %s3043, 1
              $region54: #{_forward_impl.1} parent=47 // loop_footer_branch
                %3042 = sbr.rel target = $region50
              $region55: #{_forward_impl.1} parent=47 // loop_exit
                _
              %s3186 = sshrl.u32 %s3028, 6
              %s3187 = sand.u32 %s3028, 63
              %s3188 = smul.u32 %s3186, 64
              %s3189 = smul.u32 4, %s3188
              %s3190 = scalar_lea.vmem %s3021, %s3189 [#allocation2]
              %s3191 = smul.u32 4, %s3188
              %s3192 = scalar_lea.vmem %s3032, %s3191
              // While loop
              $region56: #{_forward_impl.1} parent=47 // loop_pre_header
                _
              $region57: #{_forward_impl.1} parent=47 // loop_header
                %s3194 = sphi 0, %s3196
                %p3195 = scmp.ge.s32.totalorder %s3194, %s3187
                %s3199 = sphi 0, %s3206
                %s3200 = sphi %s3190, %s3209
                %s3201 = sphi %s3192, %s3210
              $region58: #{_forward_impl.1} parent=47 // loop_header_branch
                %3198 = sbr.rel (%p3195) target = $region62
              $region59: #{_forward_impl.1} parent=47 // loop_body
                %v3202 = vld [vmem:[%s3200] sm:$0xf]
                %3203 = vst [vmem:[%s3201] sm:$0xf] %v3202
                %s3204 = sadd.s32 1, %s3199
                %p3205 = scmp.ge.s32.totalorder %s3204, %s3187
                %s3206 = scalar_select %p3205, 0, %s3204
                %s3207 = smul.u32 %s3206, 4
                %s3208 = smul.u32 %s3206, 4
                %s3209 = scalar_lea.vmem %s3190, %s3207 [#allocation2]
                %s3210 = scalar_lea.vmem %s3192, %s3208
              $region60: #{_forward_impl.1} parent=47 // loop_footer
                %s3196 = sadd.s32 %s3194, 1
              $region61: #{_forward_impl.1} parent=47 // loop_footer_branch
                %3193 = sbr.rel target = $region57
              $region62: #{_forward_impl.1} parent=47 // loop_exit
                _
            $region48: #{_forward_impl.1} parent=39 // pred_fallthru
              _
          $region40: #{_forward_impl.1} parent=35 // pred_fallthru
            _
          %3384 = vnop
        $region36: #{_forward_impl.1} parent=31 // pred_fallthru
          _
      $region32: #{_forward_impl.1} parent=5 // pred_fallthru
        _
      %p3385 = scmp.le.s32.totalorder 2, %s9
      // Predicated region
      $region81: #{_forward_impl.1} parent=5 // pred_check
        %p3386 = pneg %p3385
      $region82: #{_forward_impl.1} parent=5 // pred_check_branch
        %3388 = sbr.rel (%p3386) target = $region84
      $region83: #{_forward_impl.1} parent=5 // pred_region
        %s3389 = ssub.s32 %s9, 2
        // Predicated region
        $region85: #{_forward_impl.1} parent=83 // pred_check
          %p3390 = pneg %p106
        $region86: #{_forward_impl.1} parent=83 // pred_check_branch
          %3392 = sbr.rel (%p3390) target = $region88
        $region87: #{_forward_impl.1} parent=83 // pred_region
          %s3393 = sand.u32 %s91, 1
          %s3394 = sand.u32 %s91, 1
          %s3395 = smul.addr %s3394, 368
          %s3396 = scalar_lea.vmem [#allocation2], %s3395
        $region88: #{_forward_impl.1} parent=83 // pred_fallthru
          _
      $region84: #{_forward_impl.1} parent=5 // pred_fallthru
        _
    $region6: #{_forward_impl.1} parent=1 // loop_footer
      %s13 = sadd.s32 1, %s9
    $region7: #{_forward_impl.1} parent=1 // loop_footer_branch
      %8 = sbr.rel target = $region3
    $region8: #{_forward_impl.1} parent=1 // loop_exit
      _

</llo_original>
